<compile_context>
chip_gen: v5e
topology: v5e:2x2
jax: 0.10.0
libtpu: 0.0.40
codegen_flags: <defaults>
</compile_context>

<pallas_src>
import jax
import jax.numpy as jnp
from jax import lax
from jax.experimental import pallas as pl
from jax.experimental.pallas import tpu as pltpu


def _round_up(n, m):
    return ((n + m - 1) // m) * m


def _bottleneck_kernel(x_ref, w1_ref, b1_ref, w2_ref, b2_ref, w3_ref, b3_ref, out_ref):
    """One grid step = `B` whole images (batch folded into the matmul M dim)."""
    B, H, W, Cin = x_ref.shape
    C1 = w1_ref.shape[1]
    Cout = w3_ref.shape[1]
    mm_dtype = w1_ref.dtype

    # Padded row pitch: >= 1 zero column and a multiple of 8 sublanes, so the conv2
    # vertical-tap windows are sublane-aligned free views and the horizontal taps
    # need no column masks (all out-of-image reads land on exact zeros).
    Wp = _round_up(W + 1, 8)
    Rimg = (H + 2) * Wp            # rows per image incl. one zero row above/below
    Rs = B * Rimg                  # rows of the batch-folded slab
    Ri = Rs - 2 * Wp               # interior rows: cover every real pixel of every image

    x_res = x_ref[...]                                     # residual path stays f32
    x_mm = x_res.astype(mm_dtype).reshape(B * H * W, Cin)

    # ---- conv1 (1x1) + folded-BN bias + ReLU (real pixels only) ---------------------
    y1 = jnp.dot(x_mm, w1_ref[...], preferred_element_type=jnp.float32)
    y1 = jnp.maximum(y1 + b1_ref[...], 0.0).reshape(B, H, W, C1)

    # Zero-padded slab == conv2's zero padding.  NOTE: padding must be applied to the
    # *post* bn1/relu activation (relu(bn1(0)) != 0), which is exactly what this does.
    zcol = jnp.zeros((B, H, Wp - W, C1), jnp.float32)
    zrow = jnp.zeros((B, 1, Wp, C1), jnp.float32)
    slab = jnp.concatenate(
        [zrow, jnp.concatenate([y1, zcol], axis=2), zrow], axis=1).reshape(Rs, C1)

    # ---- conv2 (3x3, stride 1, pad 1) + bias + ReLU ---------------------------------
    # kx taps: +/-1 row rolls of the flattened slab (XLU).  No masks needed: the
    # positions they expose (pad cols, pad rows, wrap-around rows) are all zero.
    y_l = pltpu.roll(slab, 1, axis=0)          # reads (h, w-1)
    y_r = pltpu.roll(slab, Rs - 1, axis=0)     # reads (h, w+1)
    # Cast each tap to bf16 *before* the concat -> ycat materializes once, in bf16.
    ycat = jnp.concatenate(
        [y_l.astype(mm_dtype), slab.astype(mm_dtype), y_r.astype(mm_dtype)], axis=-1)

    # ky taps: sublane-aligned static windows (offsets 0, Wp, 2*Wp) of ycat;
    # three deep matmuls (K = 3*C1) accumulated in f32.
    acc = jnp.dot(ycat[0:Ri], w2_ref[0], preferred_element_type=jnp.float32)
    acc = acc + jnp.dot(ycat[Wp:Wp + Ri], w2_ref[1], preferred_element_type=jnp.float32)
    acc = acc + jnp.dot(ycat[2 * Wp:2 * Wp + Ri], w2_ref[2],
                        preferred_element_type=jnp.float32)
    y2 = jnp.maximum(acc + b2_ref[...], 0.0).astype(mm_dtype)     # (Ri, C2)

    # ---- conv3 (1x1) + bias + residual (exact f32) + ReLU ---------------------------
    y3 = jnp.dot(y2, w3_ref[...], preferred_element_type=jnp.float32) + b3_ref[...]

    # Small unrolled per-image epilogue: map slab rows back to (h, w) and write out.
    for b in range(B):
        blk = y3[b * Rimg:b * Rimg + H * Wp].reshape(H, Wp, Cout)[:, :W, :]
        out_ref[b] = jnp.maximum(blk + x_res[b].astype(jnp.float32),
                                 0.0).astype(out_ref.dtype)


def bottleneck_forward(x_nchw, params, *, batch_tile=None,
                       matmul_dtype=jnp.bfloat16, out_dtype=None):
    """Eval-mode Bottleneck forward.

    x_nchw: (N, Cin, H, W).  params = (w1, s1, b1, w2, s2, b2, w3, s3, b3) with
      w1: (Cin, C1) 1x1,  w2: (3, 3, C1, C2) HWIO,  w3: (C2, Cout) 1x1,
      s*/b*: 1-D per-channel folded BatchNorm scale / bias.
    Only the configuration the reference module actually uses is supported:
    stride=1, groups=1, dilation=1, downsample=None (hence Cout == Cin).
    """
    w1, s1, b1, w2, s2, b2, w3, s3, b3 = params
    N, Cin, H, W = x_nchw.shape
    C1, C2, Cout = w1.shape[1], w2.shape[-1], w3.shape[1]
    assert w1.shape == (Cin, C1)
    assert w2.shape == (3, 3, C1, C2), "conv2 must be 3x3 / stride=1 / groups=1"
    assert w3.shape == (C2, Cout)
    assert Cout == Cin, "downsample is None -> residual needs Cin == planes*expansion"
    out_dtype = x_nchw.dtype if out_dtype is None else out_dtype

    if batch_tile is None:
        # Fold batch into the matmul M dimension until M >= ~512 rows (keeps the MXU
        # busy for small-spatial stages such as 7x7 / 14x14).
        batch_tile = 1
        for d in range(1, N + 1):
            if N % d == 0:
                batch_tile = d
                if d * H * W >= 512:
                    break
    assert N % batch_tile == 0, "batch_tile must divide N"

    # Fold eval-mode BatchNorm scale into the conv weights (per output channel);
    # only the bias-add stays in-kernel.  Weights cast to bf16 for the MXU.
    w1s = (w1 * s1[None, :]).astype(matmul_dtype)
    w2s = (w2 * s2[None, None, None, :]).astype(matmul_dtype)
    w3s = (w3 * s3[None, :]).astype(matmul_dtype)
    w2cat = w2s.reshape(3, 3 * C1, C2)       # per-ky weights, kx concatenated along K
    b1r = b1.reshape(1, C1).astype(jnp.float32)
    b2r = b2.reshape(1, C2).astype(jnp.float32)
    b3r = b3.reshape(1, Cout).astype(jnp.float32)

    # HBM activations keep their true channel width / true W (no lane padding of the
    # HBM streams) and stay f32 so the residual add is exact.
    x = jnp.transpose(x_nchw, (0, 2, 3, 1))   # NCHW -> NHWC

    # Generation-aware VMEM budget.
    try:
        vmem_cap = pltpu.get_tpu_info().vmem_capacity_bytes
    except Exception:
        vmem_cap = 64 * 1024 * 1024
    vmem_limit = int(min(vmem_cap * 5 // 8, 96 * 1024 * 1024))

    x_spec = pl.BlockSpec((batch_tile, H, W, Cin), lambda i: (i, 0, 0, 0))
    out_spec = pl.BlockSpec((batch_tile, H, W, Cout), lambda i: (i, 0, 0, 0))

    def build(single_buffer_weights):
        def const(a):
            # Constant block index -> DMA'd once and resident across the grid; a
            # second pipeline buffer would be pure VMEM waste -> single buffer.
            if single_buffer_weights:
                return pl.BlockSpec(a.shape, lambda i: (0,) * a.ndim,
                                    pipeline_mode=pl.Buffered(1))
            return pl.BlockSpec(a.shape, lambda i: (0,) * a.ndim)

        return pl.pallas_call(
            _bottleneck_kernel,
            out_shape=jax.ShapeDtypeStruct((N, H, W, Cout), out_dtype),
            grid=(N // batch_tile,),
            in_specs=[x_spec, const(w1s), const(b1r), const(w2cat), const(b2r),
                      const(w3s), const(b3r)],
            out_specs=out_spec,
            compiler_params=pltpu.CompilerParams(
                dimension_semantics=("parallel",),
                vmem_limit_bytes=vmem_limit),
        )

    args = (x, w1s, b1r, w2cat, b2r, w3s, b3r)
    try:
        out_nhwc = build(True)(*args)
    except Exception:
        # Fallback for JAX versions without BlockSpec.pipeline_mode support.
        out_nhwc = build(False)(*args)
    return jnp.transpose(out_nhwc, (0, 3, 1, 2))


def _fold_bn(gamma, beta, mean, var, eps=1e-5):
    scale = gamma / jnp.sqrt(var + eps)
    return scale, beta - mean * scale


def _reference(x_nchw, folded, matmul_dtype=jnp.bfloat16):
    """Pure-JAX reference (lax.conv == PyTorch cross-correlation).  Conv operands are
    rounded to the kernel's matmul dtype so the comparison is tight; the residual is
    the exact f32 input, as in the kernel and the PyTorch module."""
    w1s, b1, w2s, b2, w3s, b3 = folded
    q = lambda a: a.astype(matmul_dtype).astype(jnp.float32)
    dn = ('NHWC', 'HWIO', 'NHWC')
    Cin, C1 = w1s.shape
    C2, Cout = w3s.shape
    x = jnp.transpose(x_nchw, (0, 2, 3, 1))
    y = lax.conv_general_dilated(q(x), q(w1s).reshape(1, 1, Cin, C1), (1, 1), 'SAME',
                                 dimension_numbers=dn)
    y = jnp.maximum(y + b1, 0.0)
    y = lax.conv_general_dilated(q(y), q(w2s), (1, 1), 'SAME', dimension_numbers=dn)
    y = jnp.maximum(y + b2, 0.0)
    y = lax.conv_general_dilated(q(y), q(w3s).reshape(1, 1, C2, Cout), (1, 1), 'SAME',
                                 dimension_numbers=dn)
    y = jnp.maximum(y + b3 + x, 0.0)
    return jnp.transpose(y, (0, 3, 1, 2))


if __name__ == "__main__":
    # Small shapes consistent with the module: inplanes = planes*expansion = 16,
    # pruned cfg = [16, 8, 8].  batch_tile=2 exercises batch folding and a 2-step grid.
    N, H, W = 4, 8, 8
    inplanes, planes = 16, 4
    cfg = [inplanes, 8, 8]
    Cout = planes * 4                       # expansion = 4

    key = jax.random.PRNGKey(0)
    ks = jax.random.split(key, 7)
    x = jax.random.normal(ks[0], (N, inplanes, H, W), jnp.float32)
    w1 = 0.1 * jax.random.normal(ks[1], (inplanes, cfg[1]), jnp.float32)      # 1x1: (Cin, C1)
    w2 = 0.1 * jax.random.normal(ks[2], (3, 3, cfg[1], cfg[2]), jnp.float32)  # 3x3: HWIO
    w3 = 0.1 * jax.random.normal(ks[3], (cfg[2], Cout), jnp.float32)          # 1x1: (C2, Cout)

    def bn_params(k, c):
        k1, k2, k3, k4 = jax.random.split(k, 4)
        gamma = 1.0 + 0.1 * jax.random.normal(k1, (c,), jnp.float32)
        beta = 0.1 * jax.random.normal(k2, (c,), jnp.float32)
        mean = 0.1 * jax.random.normal(k3, (c,), jnp.float32)
        var = jnp.abs(jax.random.normal(k4, (c,), jnp.float32)) + 0.5
        return _fold_bn(gamma, beta, mean, var)

    s1, b1 = bn_params(ks[4], cfg[1])
    s2, b2 = bn_params(ks[5], cfg[2])
    s3, b3 = bn_params(ks[6], Cout)
    params = (w1, s1, b1, w2, s2, b2, w3, s3, b3)

    out = jax.block_until_ready(bottleneck_forward(x, params, batch_tile=2))
    assert out.shape == (N, Cout, H, W)

    folded = (w1 * s1[None, :], b1, w2 * s2[None, None, None, :], b2,
              w3 * s3[None, :], b3)
    ref = jax.block_until_ready(_reference(x, folded))
    assert jnp.allclose(out, ref, rtol=2e-2, atol=2e-2), "Pallas kernel mismatch vs reference"
    print("KERNEL_OK")
</pallas_src>

<mosaic_0001>
module attributes {stable_mosaic.version = 11 : i64} {
  func.func @_bottleneck_kernel(%arg0: i32, %arg1: memref<2x8x8x16xf32, #tpu.memory_space<vmem>>, %arg2: memref<16x8xbf16, #tpu.memory_space<vmem>>, %arg3: memref<1x8xf32, #tpu.memory_space<vmem>>, %arg4: memref<3x24x8xbf16, #tpu.memory_space<vmem>>, %arg5: memref<1x8xf32, #tpu.memory_space<vmem>>, %arg6: memref<8x16xbf16, #tpu.memory_space<vmem>>, %arg7: memref<1x16xf32, #tpu.memory_space<vmem>>, %arg8: memref<2x8x8x16xf32, #tpu.memory_space<vmem>>) attributes {dimension_semantics = [#tpu.dimension_semantics<parallel>], iteration_bounds = array<i64: 2>, scalar_prefetch = 0 : i64, scratch_operands = 0 : i64, tpu.core_type = #tpu.core_type<tc>, window_params = [{transform_indices = @transform_0, window_bounds = array<i64: 2, 8, 8, 16>}, {pipeline_mode = #tpu.pipeline_mode<synchronous>, transform_indices = @transform_1, window_bounds = array<i64: 16, 8>}, {pipeline_mode = #tpu.pipeline_mode<synchronous>, transform_indices = @transform_2, window_bounds = array<i64: 1, 8>}, {pipeline_mode = #tpu.pipeline_mode<synchronous>, transform_indices = @transform_3, window_bounds = array<i64: 3, 24, 8>}, {pipeline_mode = #tpu.pipeline_mode<synchronous>, transform_indices = @transform_4, window_bounds = array<i64: 1, 8>}, {pipeline_mode = #tpu.pipeline_mode<synchronous>, transform_indices = @transform_5, window_bounds = array<i64: 8, 16>}, {pipeline_mode = #tpu.pipeline_mode<synchronous>, transform_indices = @transform_6, window_bounds = array<i64: 1, 16>}, {transform_indices = @transform_7, window_bounds = array<i64: 2, 8, 8, 16>}]} {
    %c0 = arith.constant 0 : index
    %c0_0 = arith.constant 0 : index
    %c0_1 = arith.constant 0 : index
    %c0_2 = arith.constant 0 : index
    %0 = vector.load %arg1[%c0, %c0_0, %c0_1, %c0_2] : memref<2x8x8x16xf32, #tpu.memory_space<vmem>>, vector<2x8x8x16xf32>
    %1 = arith.truncf %0 : vector<2x8x8x16xf32> to vector<2x8x8x16xbf16>
    %2 = vector.shape_cast %1 : vector<2x8x8x16xbf16> to vector<128x16xbf16>
    %c0_3 = arith.constant 0 : index
    %c0_4 = arith.constant 0 : index
    %3 = vector.load %arg2[%c0_3, %c0_4] : memref<16x8xbf16, #tpu.memory_space<vmem>>, vector<16x8xbf16>
    %cst = arith.constant dense<0.000000e+00> : vector<128x8xf32>
    %4 = tpu.matmul %2, %3, %cst {dimension_numbers = #tpu.dot_dimension_numbers<[1], [0], [0], [1], [0, 0, 1, 1], [], []>} : vector<128x16xbf16>, vector<16x8xbf16>, vector<128x8xf32> -> vector<128x8xf32>
    %c0_5 = arith.constant 0 : index
    %c0_6 = arith.constant 0 : index
    %5 = vector.load %arg3[%c0_5, %c0_6] : memref<1x8xf32, #tpu.memory_space<vmem>>, vector<1x8xf32>
    %6 = vector.broadcast %5 : vector<1x8xf32> to vector<128x8xf32>
    %7 = arith.addf %4, %6 : vector<128x8xf32>
    %cst_7 = arith.constant 0.000000e+00 : f32
    %8 = vector.broadcast %cst_7 : f32 to vector<128x8xf32>
    %9 = arith.maximumf %7, %8 : vector<128x8xf32>
    %10 = vector.shape_cast %9 : vector<128x8xf32> to vector<2x8x8x8xf32>
    %cst_8 = arith.constant 0.000000e+00 : f32
    %11 = vector.broadcast %cst_8 : f32 to vector<2x8x8x8xf32>
    %cst_9 = arith.constant 0.000000e+00 : f32
    %12 = vector.broadcast %cst_9 : f32 to vector<2x1x16x8xf32>
    %13 = tpu.concatenate %10, %11 in 2 : vector<2x8x8x8xf32>, vector<2x8x8x8xf32> -> vector<2x8x16x8xf32>
    %14 = tpu.concatenate %12, %13, %12 in 1 : vector<2x1x16x8xf32>, vector<2x8x16x8xf32>, vector<2x1x16x8xf32> -> vector<2x10x16x8xf32>
    %15 = vector.shape_cast %14 : vector<2x10x16x8xf32> to vector<320x8xf32>
    %c1_i32 = arith.constant 1 : i32
    %16 = tpu.dynamic_rotate %15 by %c1_i32 dim 0 : vector<320x8xf32>, i32 -> vector<320x8xf32>
    %c319_i32 = arith.constant 319 : i32
    %17 = tpu.dynamic_rotate %15 by %c319_i32 dim 0 : vector<320x8xf32>, i32 -> vector<320x8xf32>
    %18 = arith.truncf %16 : vector<320x8xf32> to vector<320x8xbf16>
    %19 = arith.truncf %15 : vector<320x8xf32> to vector<320x8xbf16>
    %20 = arith.truncf %17 : vector<320x8xf32> to vector<320x8xbf16>
    %21 = tpu.concatenate %18, %19, %20 in 1 : vector<320x8xbf16>, vector<320x8xbf16>, vector<320x8xbf16> -> vector<320x24xbf16>
    %22 = vector.extract_strided_slice %21 {offsets = [0, 0], sizes = [288, 24], strides = [1, 1]} : vector<320x24xbf16> to vector<288x24xbf16>
    %c0_10 = arith.constant 0 : index
    %c0_11 = arith.constant 0 : index
    %c0_12 = arith.constant 0 : index
    %23 = vector.load %arg4[%c0_10, %c0_11, %c0_12] : memref<3x24x8xbf16, #tpu.memory_space<vmem>>, vector<1x24x8xbf16>
    %24 = vector.shape_cast %23 : vector<1x24x8xbf16> to vector<24x8xbf16>
    %cst_13 = arith.constant dense<0.000000e+00> : vector<288x8xf32>
    %25 = tpu.matmul %22, %24, %cst_13 {dimension_numbers = #tpu.dot_dimension_numbers<[1], [0], [0], [1], [0, 0, 1, 1], [], []>} : vector<288x24xbf16>, vector<24x8xbf16>, vector<288x8xf32> -> vector<288x8xf32>
    %26 = vector.extract_strided_slice %21 {offsets = [16, 0], sizes = [288, 24], strides = [1, 1]} : vector<320x24xbf16> to vector<288x24xbf16>
    %c1 = arith.constant 1 : index
    %c0_14 = arith.constant 0 : index
    %c0_15 = arith.constant 0 : index
    %27 = vector.load %arg4[%c1, %c0_14, %c0_15] : memref<3x24x8xbf16, #tpu.memory_space<vmem>>, vector<1x24x8xbf16>
    %28 = vector.shape_cast %27 : vector<1x24x8xbf16> to vector<24x8xbf16>
    %cst_16 = arith.constant dense<0.000000e+00> : vector<288x8xf32>
    %29 = tpu.matmul %26, %28, %cst_16 {dimension_numbers = #tpu.dot_dimension_numbers<[1], [0], [0], [1], [0, 0, 1, 1], [], []>} : vector<288x24xbf16>, vector<24x8xbf16>, vector<288x8xf32> -> vector<288x8xf32>
    %30 = arith.addf %25, %29 : vector<288x8xf32>
    %31 = vector.extract_strided_slice %21 {offsets = [32, 0], sizes = [288, 24], strides = [1, 1]} : vector<320x24xbf16> to vector<288x24xbf16>
    %c2 = arith.constant 2 : index
    %c0_17 = arith.constant 0 : index
    %c0_18 = arith.constant 0 : index
    %32 = vector.load %arg4[%c2, %c0_17, %c0_18] : memref<3x24x8xbf16, #tpu.memory_space<vmem>>, vector<1x24x8xbf16>
    %33 = vector.shape_cast %32 : vector<1x24x8xbf16> to vector<24x8xbf16>
    %cst_19 = arith.constant dense<0.000000e+00> : vector<288x8xf32>
    %34 = tpu.matmul %31, %33, %cst_19 {dimension_numbers = #tpu.dot_dimension_numbers<[1], [0], [0], [1], [0, 0, 1, 1], [], []>} : vector<288x24xbf16>, vector<24x8xbf16>, vector<288x8xf32> -> vector<288x8xf32>
    %35 = arith.addf %30, %34 : vector<288x8xf32>
    %c0_20 = arith.constant 0 : index
    %c0_21 = arith.constant 0 : index
    %36 = vector.load %arg5[%c0_20, %c0_21] : memref<1x8xf32, #tpu.memory_space<vmem>>, vector<1x8xf32>
    %37 = vector.broadcast %36 : vector<1x8xf32> to vector<288x8xf32>
    %38 = arith.addf %35, %37 : vector<288x8xf32>
    %cst_22 = arith.constant 0.000000e+00 : f32
    %39 = vector.broadcast %cst_22 : f32 to vector<288x8xf32>
    %40 = arith.maximumf %38, %39 : vector<288x8xf32>
    %41 = arith.truncf %40 : vector<288x8xf32> to vector<288x8xbf16>
    %c0_23 = arith.constant 0 : index
    %c0_24 = arith.constant 0 : index
    %42 = vector.load %arg6[%c0_23, %c0_24] : memref<8x16xbf16, #tpu.memory_space<vmem>>, vector<8x16xbf16>
    %cst_25 = arith.constant dense<0.000000e+00> : vector<288x16xf32>
    %43 = tpu.matmul %41, %42, %cst_25 {dimension_numbers = #tpu.dot_dimension_numbers<[1], [0], [0], [1], [0, 0, 1, 1], [], []>} : vector<288x8xbf16>, vector<8x16xbf16>, vector<288x16xf32> -> vector<288x16xf32>
    %c0_26 = arith.constant 0 : index
    %c0_27 = arith.constant 0 : index
    %44 = vector.load %arg7[%c0_26, %c0_27] : memref<1x16xf32, #tpu.memory_space<vmem>>, vector<1x16xf32>
    %45 = vector.broadcast %44 : vector<1x16xf32> to vector<288x16xf32>
    %46 = arith.addf %43, %45 : vector<288x16xf32>
    %47 = vector.extract_strided_slice %46 {offsets = [0, 0], sizes = [128, 16], strides = [1, 1]} : vector<288x16xf32> to vector<128x16xf32>
    %48 = vector.shape_cast %47 : vector<128x16xf32> to vector<8x16x16xf32>
    %49 = vector.extract_strided_slice %48 {offsets = [0, 0, 0], sizes = [8, 8, 16], strides = [1, 1, 1]} : vector<8x16x16xf32> to vector<8x8x16xf32>
    %50 = vector.extract_strided_slice %0 {offsets = [0, 0, 0, 0], sizes = [1, 8, 8, 16], strides = [1, 1, 1, 1]} : vector<2x8x8x16xf32> to vector<1x8x8x16xf32>
    %51 = vector.shape_cast %50 : vector<1x8x8x16xf32> to vector<8x8x16xf32>
    %52 = arith.addf %49, %51 : vector<8x8x16xf32>
    %cst_28 = arith.constant 0.000000e+00 : f32
    %53 = vector.broadcast %cst_28 : f32 to vector<8x8x16xf32>
    %54 = arith.maximumf %52, %53 : vector<8x8x16xf32>
    %c0_29 = arith.constant 0 : index
    %c0_30 = arith.constant 0 : index
    %c0_31 = arith.constant 0 : index
    %c0_32 = arith.constant 0 : index
    %55 = vector.load %arg8[%c0_29, %c0_30, %c0_31, %c0_32] : memref<2x8x8x16xf32, #tpu.memory_space<vmem>>, vector<1x8x8x16xf32>
    %56 = vector.shape_cast %55 : vector<1x8x8x16xf32> to vector<8x8x16xf32>
    %57 = vector.shape_cast %54 : vector<8x8x16xf32> to vector<1x8x8x16xf32>
    tpu.vector_store %arg8[%c0_29, %c0_30, %c0_31, %c0_32], %57 {strides = array<i32>} : memref<2x8x8x16xf32, #tpu.memory_space<vmem>>, vector<1x8x8x16xf32>,
    %58 = vector.extract_strided_slice %46 {offsets = [160, 0], sizes = [128, 16], strides = [1, 1]} : vector<288x16xf32> to vector<128x16xf32>
    %59 = vector.shape_cast %58 : vector<128x16xf32> to vector<8x16x16xf32>
    %60 = vector.extract_strided_slice %59 {offsets = [0, 0, 0], sizes = [8, 8, 16], strides = [1, 1, 1]} : vector<8x16x16xf32> to vector<8x8x16xf32>
    %61 = vector.extract_strided_slice %0 {offsets = [1, 0, 0, 0], sizes = [1, 8, 8, 16], strides = [1, 1, 1, 1]} : vector<2x8x8x16xf32> to vector<1x8x8x16xf32>
    %62 = vector.shape_cast %61 : vector<1x8x8x16xf32> to vector<8x8x16xf32>
    %63 = arith.addf %60, %62 : vector<8x8x16xf32>
    %cst_33 = arith.constant 0.000000e+00 : f32
    %64 = vector.broadcast %cst_33 : f32 to vector<8x8x16xf32>
    %65 = arith.maximumf %63, %64 : vector<8x8x16xf32>
    %c1_34 = arith.constant 1 : index
    %c0_35 = arith.constant 0 : index
    %c0_36 = arith.constant 0 : index
    %c0_37 = arith.constant 0 : index
    %66 = vector.load %arg8[%c1_34, %c0_35, %c0_36, %c0_37] : memref<2x8x8x16xf32, #tpu.memory_space<vmem>>, vector<1x8x8x16xf32>
    %67 = vector.shape_cast %66 : vector<1x8x8x16xf32> to vector<8x8x16xf32>
    %68 = vector.shape_cast %65 : vector<8x8x16xf32> to vector<1x8x8x16xf32>
    tpu.vector_store %arg8[%c1_34, %c0_35, %c0_36, %c0_37], %68 {strides = array<i32>} : memref<2x8x8x16xf32, #tpu.memory_space<vmem>>, vector<1x8x8x16xf32>,
    return
  }
  func.func @transform_0(%arg0: i32) -> (i32, i32, i32, i32) {
    %c0_i32 = arith.constant 0 : i32
    %c0_i32_0 = arith.constant 0 : i32
    %c0_i32_1 = arith.constant 0 : i32
    %c0_i32_2 = arith.constant 0 : i32
    return %arg0, %c0_i32, %c0_i32_0, %c0_i32_1 : i32, i32, i32, i32
  }
  func.func @transform_1(%arg0: i32) -> (i32, i32) {
    %c0_i32 = arith.constant 0 : i32
    %c0_i32_0 = arith.constant 0 : i32
    %c0_i32_1 = arith.constant 0 : i32
    return %c0_i32, %c0_i32_0 : i32, i32
  }
  func.func @transform_2(%arg0: i32) -> (i32, i32) {
    %c0_i32 = arith.constant 0 : i32
    %c0_i32_0 = arith.constant 0 : i32
    %c0_i32_1 = arith.constant 0 : i32
    return %c0_i32, %c0_i32_0 : i32, i32
  }
  func.func @transform_3(%arg0: i32) -> (i32, i32, i32) {
    %c0_i32 = arith.constant 0 : i32
    %c0_i32_0 = arith.constant 0 : i32
    %c0_i32_1 = arith.constant 0 : i32
    %c0_i32_2 = arith.constant 0 : i32
    return %c0_i32, %c0_i32_0, %c0_i32_1 : i32, i32, i32
  }
  func.func @transform_4(%arg0: i32) -> (i32, i32) {
    %c0_i32 = arith.constant 0 : i32
    %c0_i32_0 = arith.constant 0 : i32
    %c0_i32_1 = arith.constant 0 : i32
    return %c0_i32, %c0_i32_0 : i32, i32
  }
  func.func @transform_5(%arg0: i32) -> (i32, i32) {
    %c0_i32 = arith.constant 0 : i32
    %c0_i32_0 = arith.constant 0 : i32
    %c0_i32_1 = arith.constant 0 : i32
    return %c0_i32, %c0_i32_0 : i32, i32
  }
  func.func @transform_6(%arg0: i32) -> (i32, i32) {
    %c0_i32 = arith.constant 0 : i32
    %c0_i32_0 = arith.constant 0 : i32
    %c0_i32_1 = arith.constant 0 : i32
    return %c0_i32, %c0_i32_0 : i32, i32
  }
  func.func @transform_7(%arg0: i32) -> (i32, i32, i32, i32) {
    %c0_i32 = arith.constant 0 : i32
    %c0_i32_0 = arith.constant 0 : i32
    %c0_i32_1 = arith.constant 0 : i32
    %c0_i32_2 = arith.constant 0 : i32
    return %arg0, %c0_i32, %c0_i32_0, %c0_i32_1 : i32, i32, i32, i32
  }
}

module attributes {stable_mosaic.version = 11 : i64} {
  func.func @_bottleneck_kernel(%arg0: i32, %arg1: memref<2x8x8x16xf32, #tpu.memory_space<vmem>>, %arg2: memref<16x8xbf16, #tpu.memory_space<vmem>>, %arg3: memref<1x8xf32, #tpu.memory_space<vmem>>, %arg4: memref<3x24x8xbf16, #tpu.memory_space<vmem>>, %arg5: memref<1x8xf32, #tpu.memory_space<vmem>>, %arg6: memref<8x16xbf16, #tpu.memory_space<vmem>>, %arg7: memref<1x16xf32, #tpu.memory_space<vmem>>, %arg8: memref<2x8x8x16xf32, #tpu.memory_space<vmem>>) attributes {dimension_semantics = [#tpu.dimension_semantics<parallel>], iteration_bounds = array<i64: 2>, scalar_prefetch = 0 : i64, scratch_operands = 0 : i64, tpu.core_type = #tpu.core_type<tc>, window_params = [{transform_indices = @transform_0, window_bounds = array<i64: 2, 8, 8, 16>}, {pipeline_mode = #tpu.pipeline_mode<synchronous>, transform_indices = @transform_1, window_bounds = array<i64: 16, 8>}, {pipeline_mode = #tpu.pipeline_mode<synchronous>, transform_indices = @transform_2, window_bounds = array<i64: 1, 8>}, {pipeline_mode = #tpu.pipeline_mode<synchronous>, transform_indices = @transform_3, window_bounds = array<i64: 3, 24, 8>}, {pipeline_mode = #tpu.pipeline_mode<synchronous>, transform_indices = @transform_4, window_bounds = array<i64: 1, 8>}, {pipeline_mode = #tpu.pipeline_mode<synchronous>, transform_indices = @transform_5, window_bounds = array<i64: 8, 16>}, {pipeline_mode = #tpu.pipeline_mode<synchronous>, transform_indices = @transform_6, window_bounds = array<i64: 1, 16>}, {transform_indices = @transform_7, window_bounds = array<i64: 2, 8, 8, 16>}]} {
    %c0 = arith.constant 0 : index
    %c0_0 = arith.constant 0 : index
    %c0_1 = arith.constant 0 : index
    %c0_2 = arith.constant 0 : index
    %0 = vector.load %arg1[%c0, %c0_0, %c0_1, %c0_2] : memref<2x8x8x16xf32, #tpu.memory_space<vmem>>, vector<2x8x8x16xf32>
    %1 = arith.truncf %0 : vector<2x8x8x16xf32> to vector<2x8x8x16xbf16>
    %2 = vector.shape_cast %1 : vector<2x8x8x16xbf16> to vector<128x16xbf16>
    %c0_3 = arith.constant 0 : index
    %c0_4 = arith.constant 0 : index
    %3 = vector.load %arg2[%c0_3, %c0_4] : memref<16x8xbf16, #tpu.memory_space<vmem>>, vector<16x8xbf16>
    %cst = arith.constant dense<0.000000e+00> : vector<128x8xf32>
    %4 = tpu.matmul %2, %3, %cst {dimension_numbers = #tpu.dot_dimension_numbers<[1], [0], [0], [1], [0, 0, 1, 1], [], []>} : vector<128x16xbf16>, vector<16x8xbf16>, vector<128x8xf32> -> vector<128x8xf32>
    %c0_5 = arith.constant 0 : index
    %c0_6 = arith.constant 0 : index
    %5 = vector.load %arg3[%c0_5, %c0_6] : memref<1x8xf32, #tpu.memory_space<vmem>>, vector<1x8xf32>
    %6 = vector.broadcast %5 : vector<1x8xf32> to vector<128x8xf32>
    %7 = arith.addf %4, %6 : vector<128x8xf32>
    %cst_7 = arith.constant 0.000000e+00 : f32
    %8 = vector.broadcast %cst_7 : f32 to vector<128x8xf32>
    %9 = arith.maximumf %7, %8 : vector<128x8xf32>
    %10 = vector.shape_cast %9 : vector<128x8xf32> to vector<2x8x8x8xf32>
    %cst_8 = arith.constant 0.000000e+00 : f32
    %11 = vector.broadcast %cst_8 : f32 to vector<2x8x8x8xf32>
    %cst_9 = arith.constant 0.000000e+00 : f32
    %12 = vector.broadcast %cst_9 : f32 to vector<2x1x16x8xf32>
    %13 = tpu.concatenate %10, %11 in 2 : vector<2x8x8x8xf32>, vector<2x8x8x8xf32> -> vector<2x8x16x8xf32>
    %14 = tpu.concatenate %12, %13, %12 in 1 : vector<2x1x16x8xf32>, vector<2x8x16x8xf32>, vector<2x1x16x8xf32> -> vector<2x10x16x8xf32>
    %15 = vector.shape_cast %14 : vector<2x10x16x8xf32> to vector<320x8xf32>
    %c1_i32 = arith.constant 1 : i32
    %16 = tpu.dynamic_rotate %15 by %c1_i32 dim 0 : vector<320x8xf32>, i32 -> vector<320x8xf32>
    %c319_i32 = arith.constant 319 : i32
    %17 = tpu.dynamic_rotate %15 by %c319_i32 dim 0 : vector<320x8xf32>, i32 -> vector<320x8xf32>
    %18 = arith.truncf %16 : vector<320x8xf32> to vector<320x8xbf16>
    %19 = arith.truncf %15 : vector<320x8xf32> to vector<320x8xbf16>
    %20 = arith.truncf %17 : vector<320x8xf32> to vector<320x8xbf16>
    %21 = tpu.concatenate %18, %19, %20 in 1 : vector<320x8xbf16>, vector<320x8xbf16>, vector<320x8xbf16> -> vector<320x24xbf16>
    %22 = vector.extract_strided_slice %21 {offsets = [0, 0], sizes = [288, 24], strides = [1, 1]} : vector<320x24xbf16> to vector<288x24xbf16>
    %c0_10 = arith.constant 0 : index
    %c0_11 = arith.constant 0 : index
    %c0_12 = arith.constant 0 : index
    %23 = vector.load %arg4[%c0_10, %c0_11, %c0_12] : memref<3x24x8xbf16, #tpu.memory_space<vmem>>, vector<1x24x8xbf16>
    %24 = vector.shape_cast %23 : vector<1x24x8xbf16> to vector<24x8xbf16>
    %cst_13 = arith.constant dense<0.000000e+00> : vector<288x8xf32>
    %25 = tpu.matmul %22, %24, %cst_13 {dimension_numbers = #tpu.dot_dimension_numbers<[1], [0], [0], [1], [0, 0, 1, 1], [], []>} : vector<288x24xbf16>, vector<24x8xbf16>, vector<288x8xf32> -> vector<288x8xf32>
    %26 = vector.extract_strided_slice %21 {offsets = [16, 0], sizes = [288, 24], strides = [1, 1]} : vector<320x24xbf16> to vector<288x24xbf16>
    %c1 = arith.constant 1 : index
    %c0_14 = arith.constant 0 : index
    %c0_15 = arith.constant 0 : index
    %27 = vector.load %arg4[%c1, %c0_14, %c0_15] : memref<3x24x8xbf16, #tpu.memory_space<vmem>>, vector<1x24x8xbf16>
    %28 = vector.shape_cast %27 : vector<1x24x8xbf16> to vector<24x8xbf16>
    %cst_16 = arith.constant dense<0.000000e+00> : vector<288x8xf32>
    %29 = tpu.matmul %26, %28, %cst_16 {dimension_numbers = #tpu.dot_dimension_numbers<[1], [0], [0], [1], [0, 0, 1, 1], [], []>} : vector<288x24xbf16>, vector<24x8xbf16>, vector<288x8xf32> -> vector<288x8xf32>
    %30 = arith.addf %25, %29 : vector<288x8xf32>
    %31 = vector.extract_strided_slice %21 {offsets = [32, 0], sizes = [288, 24], strides = [1, 1]} : vector<320x24xbf16> to vector<288x24xbf16>
    %c2 = arith.constant 2 : index
    %c0_17 = arith.constant 0 : index
    %c0_18 = arith.constant 0 : index
    %32 = vector.load %arg4[%c2, %c0_17, %c0_18] : memref<3x24x8xbf16, #tpu.memory_space<vmem>>, vector<1x24x8xbf16>
    %33 = vector.shape_cast %32 : vector<1x24x8xbf16> to vector<24x8xbf16>
    %cst_19 = arith.constant dense<0.000000e+00> : vector<288x8xf32>
    %34 = tpu.matmul %31, %33, %cst_19 {dimension_numbers = #tpu.dot_dimension_numbers<[1], [0], [0], [1], [0, 0, 1, 1], [], []>} : vector<288x24xbf16>, vector<24x8xbf16>, vector<288x8xf32> -> vector<288x8xf32>
    %35 = arith.addf %30, %34 : vector<288x8xf32>
    %c0_20 = arith.constant 0 : index
    %c0_21 = arith.constant 0 : index
    %36 = vector.load %arg5[%c0_20, %c0_21] : memref<1x8xf32, #tpu.memory_space<vmem>>, vector<1x8xf32>
    %37 = vector.broadcast %36 : vector<1x8xf32> to vector<288x8xf32>
    %38 = arith.addf %35, %37 : vector<288x8xf32>
    %cst_22 = arith.constant 0.000000e+00 : f32
    %39 = vector.broadcast %cst_22 : f32 to vector<288x8xf32>
    %40 = arith.maximumf %38, %39 : vector<288x8xf32>
    %41 = arith.truncf %40 : vector<288x8xf32> to vector<288x8xbf16>
    %c0_23 = arith.constant 0 : index
    %c0_24 = arith.constant 0 : index
    %42 = vector.load %arg6[%c0_23, %c0_24] : memref<8x16xbf16, #tpu.memory_space<vmem>>, vector<8x16xbf16>
    %cst_25 = arith.constant dense<0.000000e+00> : vector<288x16xf32>
    %43 = tpu.matmul %41, %42, %cst_25 {dimension_numbers = #tpu.dot_dimension_numbers<[1], [0], [0], [1], [0, 0, 1, 1], [], []>} : vector<288x8xbf16>, vector<8x16xbf16>, vector<288x16xf32> -> vector<288x16xf32>
    %c0_26 = arith.constant 0 : index
    %c0_27 = arith.constant 0 : index
    %44 = vector.load %arg7[%c0_26, %c0_27] : memref<1x16xf32, #tpu.memory_space<vmem>>, vector<1x16xf32>
    %45 = vector.broadcast %44 : vector<1x16xf32> to vector<288x16xf32>
    %46 = arith.addf %43, %45 : vector<288x16xf32>
    %47 = vector.extract_strided_slice %46 {offsets = [0, 0], sizes = [128, 16], strides = [1, 1]} : vector<288x16xf32> to vector<128x16xf32>
    %48 = vector.shape_cast %47 : vector<128x16xf32> to vector<8x16x16xf32>
    %49 = vector.extract_strided_slice %48 {offsets = [0, 0, 0], sizes = [8, 8, 16], strides = [1, 1, 1]} : vector<8x16x16xf32> to vector<8x8x16xf32>
    %50 = vector.extract_strided_slice %0 {offsets = [0, 0, 0, 0], sizes = [1, 8, 8, 16], strides = [1, 1, 1, 1]} : vector<2x8x8x16xf32> to vector<1x8x8x16xf32>
    %51 = vector.shape_cast %50 : vector<1x8x8x16xf32> to vector<8x8x16xf32>
    %52 = arith.addf %49, %51 : vector<8x8x16xf32>
    %cst_28 = arith.constant 0.000000e+00 : f32
    %53 = vector.broadcast %cst_28 : f32 to vector<8x8x16xf32>
    %54 = arith.maximumf %52, %53 : vector<8x8x16xf32>
    %c0_29 = arith.constant 0 : index
    %c0_30 = arith.constant 0 : index
    %c0_31 = arith.constant 0 : index
    %c0_32 = arith.constant 0 : index
    %55 = vector.load %arg8[%c0_29, %c0_30, %c0_31, %c0_32] : memref<2x8x8x16xf32, #tpu.memory_space<vmem>>, vector<1x8x8x16xf32>
    %56 = vector.shape_cast %55 : vector<1x8x8x16xf32> to vector<8x8x16xf32>
    %57 = vector.shape_cast %54 : vector<8x8x16xf32> to vector<1x8x8x16xf32>
    tpu.vector_store %arg8[%c0_29, %c0_30, %c0_31, %c0_32], %57 {strides = array<i32>} : memref<2x8x8x16xf32, #tpu.memory_space<vmem>>, vector<1x8x8x16xf32>,
    %58 = vector.extract_strided_slice %46 {offsets = [160, 0], sizes = [128, 16], strides = [1, 1]} : vector<288x16xf32> to vector<128x16xf32>
    %59 = vector.shape_cast %58 : vector<128x16xf32> to vector<8x16x16xf32>
    %60 = vector.extract_strided_slice %59 {offsets = [0, 0, 0], sizes = [8, 8, 16], strides = [1, 1, 1]} : vector<8x16x16xf32> to vector<8x8x16xf32>
    %61 = vector.extract_strided_slice %0 {offsets = [1, 0, 0, 0], sizes = [1, 8, 8, 16], strides = [1, 1, 1, 1]} : vector<2x8x8x16xf32> to vector<1x8x8x16xf32>
    %62 = vector.shape_cast %61 : vector<1x8x8x16xf32> to vector<8x8x16xf32>
    %63 = arith.addf %60, %62 : vector<8x8x16xf32>
    %cst_33 = arith.constant 0.000000e+00 : f32
    %64 = vector.broadcast %cst_33 : f32 to vector<8x8x16xf32>
    %65 = arith.maximumf %63, %64 : vector<8x8x16xf32>
    %c1_34 = arith.constant 1 : index
    %c0_35 = arith.constant 0 : index
    %c0_36 = arith.constant 0 : index
    %c0_37 = arith.constant 0 : index
    %66 = vector.load %arg8[%c1_34, %c0_35, %c0_36, %c0_37] : memref<2x8x8x16xf32, #tpu.memory_space<vmem>>, vector<1x8x8x16xf32>
    %67 = vector.shape_cast %66 : vector<1x8x8x16xf32> to vector<8x8x16xf32>
    %68 = vector.shape_cast %65 : vector<8x8x16xf32> to vector<1x8x8x16xf32>
    tpu.vector_store %arg8[%c1_34, %c0_35, %c0_36, %c0_37], %68 {strides = array<i32>} : memref<2x8x8x16xf32, #tpu.memory_space<vmem>>, vector<1x8x8x16xf32>,
    return
  }
  func.func @transform_0(%arg0: i32) -> (i32, i32, i32, i32) {
    %c0_i32 = arith.constant 0 : i32
    %c0_i32_0 = arith.constant 0 : i32
    %c0_i32_1 = arith.constant 0 : i32
    %c0_i32_2 = arith.constant 0 : i32
    return %arg0, %c0_i32, %c0_i32_0, %c0_i32_1 : i32, i32, i32, i32
  }
  func.func @transform_1(%arg0: i32) -> (i32, i32) {
    %c0_i32 = arith.constant 0 : i32
    %c0_i32_0 = arith.constant 0 : i32
    %c0_i32_1 = arith.constant 0 : i32
    return %c0_i32, %c0_i32_0 : i32, i32
  }
  func.func @transform_2(%arg0: i32) -> (i32, i32) {
    %c0_i32 = arith.constant 0 : i32
    %c0_i32_0 = arith.constant 0 : i32
    %c0_i32_1 = arith.constant 0 : i32
    return %c0_i32, %c0_i32_0 : i32, i32
  }
  func.func @transform_3(%arg0: i32) -> (i32, i32, i32) {
    %c0_i32 = arith.constant 0 : i32
    %c0_i32_0 = arith.constant 0 : i32
    %c0_i32_1 = arith.constant 0 : i32
    %c0_i32_2 = arith.constant 0 : i32
    return %c0_i32, %c0_i32_0, %c0_i32_1 : i32, i32, i32
  }
  func.func @transform_4(%arg0: i32) -> (i32, i32) {
    %c0_i32 = arith.constant 0 : i32
    %c0_i32_0 = arith.constant 0 : i32
    %c0_i32_1 = arith.constant 0 : i32
    return %c0_i32, %c0_i32_0 : i32, i32
  }
  func.func @transform_5(%arg0: i32) -> (i32, i32) {
    %c0_i32 = arith.constant 0 : i32
    %c0_i32_0 = arith.constant 0 : i32
    %c0_i32_1 = arith.constant 0 : i32
    return %c0_i32, %c0_i32_0 : i32, i32
  }
  func.func @transform_6(%arg0: i32) -> (i32, i32) {
    %c0_i32 = arith.constant 0 : i32
    %c0_i32_0 = arith.constant 0 : i32
    %c0_i32_1 = arith.constant 0 : i32
    return %c0_i32, %c0_i32_0 : i32, i32
  }
  func.func @transform_7(%arg0: i32) -> (i32, i32, i32, i32) {
    %c0_i32 = arith.constant 0 : i32
    %c0_i32_0 = arith.constant 0 : i32
    %c0_i32_1 = arith.constant 0 : i32
    %c0_i32_2 = arith.constant 0 : i32
    return %arg0, %c0_i32, %c0_i32_0, %c0_i32_1 : i32, i32, i32, i32
  }
}

</mosaic_0001>

<llo_original>
// kernel: tpu_custom_call.1
$region0: #{tpu_custom_call.1}
  #allocation0 [shape = 'u32[]', space=smem, size = 0x4, offset = 0x4, fixed_abs, tag = 'smem constant byte address 0x4 - core index']
  #allocation1 [shape = 'u32[72,128]{1,0:T(1,128)}', space=vmem, size = 0x9000, scoped, tag = 'internal scratch']
  %s0 = inlined_call_operand.hbm [shape: f32[4,8,8,16], index: 0, kind: input, shape index: {}]
  %s1 = inlined_call_operand.vmem [shape: bf16[16,8], index: 1, kind: input, shape index: {}]
  %s2 = inlined_call_operand.vmem [shape: f32[1,8], index: 2, kind: input, shape index: {}]
  %s3 = inlined_call_operand.vmem [shape: bf16[3,24,8], index: 3, kind: input, shape index: {}]
  %s4 = inlined_call_operand.vmem [shape: f32[1,8], index: 4, kind: input, shape index: {}]
  %s5 = inlined_call_operand.vmem [shape: bf16[8,16], index: 5, kind: input, shape index: {}]
  %s6 = inlined_call_operand.vmem [shape: f32[1,16], index: 6, kind: input, shape index: {}]
  %s7 = inlined_call_operand.hbm [shape: f32[4,8,8,16], index: 7, kind: output, shape index: {}]
  %s8 = sld [smem:[#allocation0]]
  $region65: #{tpu_custom_call.1} parent=0
    _
  %s10 = ssub.s32 1, %s8
  %s11 = scalar_select 0, %s10, %s8
  $region1: #{tpu_custom_call.1} parent=0
    #allocation2 [shape = 'u8[131072]{0}', space=vmem, size = 0x20000, scoped, tag = 'input window, operand 0']
    #allocation3 [shape = 's32[2]{0}', space=sflag, size = 0x8, scoped, tag = 'scoped memory for tpu_custom_call.1']
    #allocation4 [shape = 's32[2]{0}', space=sflag, size = 0x8, scoped, tag = 'scoped memory for tpu_custom_call.1']
    #allocation5 [shape = 'u8[131072]{0}', space=vmem, size = 0x20000, scoped, tag = 'output window, operand 0']
    %12 = vsyncpa [#allocation3], 0
    %s13 = scalar_lea.sflag [#allocation3], 1
    %14 = vsyncpa %s13, 0
    %15 = vsyncpa [#allocation4], 0
    %s16 = scalar_lea.sflag [#allocation4], 1
    %17 = vsyncpa %s16, 0
    loop: start=0, step=1, limit=4
    $region2: #{tpu_custom_call.1} parent=1 // loop_pre_header
      _
    $region3: #{tpu_custom_call.1} parent=1 // loop_header
      %s19 = sphi 0, %s23
      %p20 = scmp.ge.s32.totalorder %s19, 4
      %s29 = sphi 0, %s31
      %s32 = sphi 0, %s29
      %s33 = sphi 0, %s32
      %s49 = sphi 0, %s33
      %s53 = sphi 0, %s53
      %s55 = sphi 0, %s53
      %s56 = sphi 0, %s55
      %s70 = sphi 0, %s56
      %s74 = sphi 0, %s74
      %s76 = sphi 0, %s74
      %s77 = sphi 0, %s76
      %s91 = sphi 0, %s77
      %s95 = sphi 0, %s95
      %s97 = sphi 0, %s95
      %s98 = sphi 0, %s97
      %s112 = sphi 0, %s98
      %s116 = sphi 0, %s116
      %s118 = sphi 0, %s116
      %s119 = sphi 0, %s118
      %s133 = sphi 0, %s119
      %s137 = sphi 0, %s137
      %s139 = sphi 0, %s137
      %s140 = sphi 0, %s139
      %s154 = sphi 0, %s140
      %s158 = sphi 0, %s158
      %s160 = sphi 0, %s158
      %s161 = sphi 0, %s160
      %s175 = sphi 0, %s161
      %s181 = sphi 0, %s183
      %s184 = sphi 0, %s181
      %s185 = sphi 0, %s184
      %s201 = sphi 0, %s185
    $region4: #{tpu_custom_call.1} parent=1 // loop_header_branch
      %22 = sbr.rel (%p20) target = $region8
    $region5: #{tpu_custom_call.1} parent=1 // loop_body
      %s24 = ssub.s32 %s19, 1
      %s25 = ssub.s32 %s19, 2
      %s26 = sadd.s32 %s19, 1
      %s27 = ssub.s32 %s19, %s26
      %p28 = scmp.eq.s32.totalorder %s27, 0
      %s30 = sadd.s32 %s29, 1
      %s31 = scalar_select %p28, %s29, %s30
      %p34 = pneg %p28
      %p35 = scmp.eq.s32.totalorder %s19, 1
      %p36 = por %p34, %p35
      %p37 = scmp.ne.s32.totalorder %s29, %s32
      %p38 = scmp.eq.s32.totalorder %s19, 0
      %p39 = por %p37, %p38
      %p40 = scmp.ne.s32.totalorder %s29, %s32
      %p41 = scmp.eq.s32.totalorder %s24, 1
      %p42 = por %p40, %p41
      %p43 = scmp.ne.s32.totalorder %s32, %s33
      %p44 = scmp.eq.s32.totalorder %s24, 0
      %p45 = por %p43, %p44
      %p46 = scmp.ne.s32.totalorder %s32, %s33
      %p47 = scmp.eq.s32.totalorder %s25, 1
      %p48 = por %p46, %p47
      %p50 = scmp.ne.s32.totalorder %s33, %s49
      %p51 = scmp.eq.s32.totalorder %s25, 0
      %p52 = por %p50, %p51
      %s54 = sadd.s32 %s53, 1
      %p57 = scmp.eq.s32.totalorder %s19, 1
      %p58 = scmp.ne.s32.totalorder %s53, %s55
      %p59 = scmp.eq.s32.totalorder %s19, 0
      %p60 = por %p58, %p59
      %p61 = scmp.ne.s32.totalorder %s53, %s55
      %p62 = scmp.eq.s32.totalorder %s24, 1
      %p63 = por %p61, %p62
      %p64 = scmp.ne.s32.totalorder %s55, %s56
      %p65 = scmp.eq.s32.totalorder %s24, 0
      %p66 = por %p64, %p65
      %p67 = scmp.ne.s32.totalorder %s55, %s56
      %p68 = scmp.eq.s32.totalorder %s25, 1
      %p69 = por %p67, %p68
      %p71 = scmp.ne.s32.totalorder %s56, %s70
      %p72 = scmp.eq.s32.totalorder %s25, 0
      %p73 = por %p71, %p72
      %s75 = sadd.s32 %s74, 1
      %p78 = scmp.eq.s32.totalorder %s19, 1
      %p79 = scmp.ne.s32.totalorder %s74, %s76
      %p80 = scmp.eq.s32.totalorder %s19, 0
      %p81 = por %p79, %p80
      %p82 = scmp.ne.s32.totalorder %s74, %s76
      %p83 = scmp.eq.s32.totalorder %s24, 1
      %p84 = por %p82, %p83
      %p85 = scmp.ne.s32.totalorder %s76, %s77
      %p86 = scmp.eq.s32.totalorder %s24, 0
      %p87 = por %p85, %p86
      %p88 = scmp.ne.s32.totalorder %s76, %s77
      %p89 = scmp.eq.s32.totalorder %s25, 1
      %p90 = por %p88, %p89
      %p92 = scmp.ne.s32.totalorder %s77, %s91
      %p93 = scmp.eq.s32.totalorder %s25, 0
      %p94 = por %p92, %p93
      %s96 = sadd.s32 %s95, 1
      %p99 = scmp.eq.s32.totalorder %s19, 1
      %p100 = scmp.ne.s32.totalorder %s95, %s97
      %p101 = scmp.eq.s32.totalorder %s19, 0
      %p102 = por %p100, %p101
      %p103 = scmp.ne.s32.totalorder %s95, %s97
      %p104 = scmp.eq.s32.totalorder %s24, 1
      %p105 = por %p103, %p104
      %p106 = scmp.ne.s32.totalorder %s97, %s98
      %p107 = scmp.eq.s32.totalorder %s24, 0
      %p108 = por %p106, %p107
      %p109 = scmp.ne.s32.totalorder %s97, %s98
      %p110 = scmp.eq.s32.totalorder %s25, 1
      %p111 = por %p109, %p110
      %p113 = scmp.ne.s32.totalorder %s98, %s112
      %p114 = scmp.eq.s32.totalorder %s25, 0
      %p115 = por %p113, %p114
      %s117 = sadd.s32 %s116, 1
      %p120 = scmp.eq.s32.totalorder %s19, 1
      %p121 = scmp.ne.s32.totalorder %s116, %s118
      %p122 = scmp.eq.s32.totalorder %s19, 0
      %p123 = por %p121, %p122
      %p124 = scmp.ne.s32.totalorder %s116, %s118
      %p125 = scmp.eq.s32.totalorder %s24, 1
      %p126 = por %p124, %p125
      %p127 = scmp.ne.s32.totalorder %s118, %s119
      %p128 = scmp.eq.s32.totalorder %s24, 0
      %p129 = por %p127, %p128
      %p130 = scmp.ne.s32.totalorder %s118, %s119
      %p131 = scmp.eq.s32.totalorder %s25, 1
      %p132 = por %p130, %p131
      %p134 = scmp.ne.s32.totalorder %s119, %s133
      %p135 = scmp.eq.s32.totalorder %s25, 0
      %p136 = por %p134, %p135
      %s138 = sadd.s32 %s137, 1
      %p141 = scmp.eq.s32.totalorder %s19, 1
      %p142 = scmp.ne.s32.totalorder %s137, %s139
      %p143 = scmp.eq.s32.totalorder %s19, 0
      %p144 = por %p142, %p143
      %p145 = scmp.ne.s32.totalorder %s137, %s139
      %p146 = scmp.eq.s32.totalorder %s24, 1
      %p147 = por %p145, %p146
      %p148 = scmp.ne.s32.totalorder %s139, %s140
      %p149 = scmp.eq.s32.totalorder %s24, 0
      %p150 = por %p148, %p149
      %p151 = scmp.ne.s32.totalorder %s139, %s140
      %p152 = scmp.eq.s32.totalorder %s25, 1
      %p153 = por %p151, %p152
      %p155 = scmp.ne.s32.totalorder %s140, %s154
      %p156 = scmp.eq.s32.totalorder %s25, 0
      %p157 = por %p155, %p156
      %s159 = sadd.s32 %s158, 1
      %p162 = scmp.eq.s32.totalorder %s19, 1
      %p163 = scmp.ne.s32.totalorder %s158, %s160
      %p164 = scmp.eq.s32.totalorder %s19, 0
      %p165 = por %p163, %p164
      %p166 = scmp.ne.s32.totalorder %s158, %s160
      %p167 = scmp.eq.s32.totalorder %s24, 1
      %p168 = por %p166, %p167
      %p169 = scmp.ne.s32.totalorder %s160, %s161
      %p170 = scmp.eq.s32.totalorder %s24, 0
      %p171 = por %p169, %p170
      %p172 = scmp.ne.s32.totalorder %s160, %s161
      %p173 = scmp.eq.s32.totalorder %s25, 1
      %p174 = por %p172, %p173
      %p176 = scmp.ne.s32.totalorder %s161, %s175
      %p177 = scmp.eq.s32.totalorder %s25, 0
      %p178 = por %p176, %p177
      %s179 = ssub.s32 %s19, %s26
      %p180 = scmp.eq.s32.totalorder %s179, 0
      %s182 = sadd.s32 %s181, 1
      %s183 = scalar_select %p180, %s181, %s182
      %p186 = pneg %p180
      %p187 = scmp.eq.s32.totalorder %s19, 1
      %p188 = por %p186, %p187
      %p189 = scmp.ne.s32.totalorder %s181, %s184
      %p190 = scmp.eq.s32.totalorder %s19, 0
      %p191 = por %p189, %p190
      %p192 = scmp.ne.s32.totalorder %s181, %s184
      %p193 = scmp.eq.s32.totalorder %s24, 1
      %p194 = por %p192, %p193
      %p195 = scmp.ne.s32.totalorder %s184, %s185
      %p196 = scmp.eq.s32.totalorder %s24, 0
      %p197 = por %p195, %p196
      %p198 = scmp.ne.s32.totalorder %s184, %s185
      %p199 = scmp.eq.s32.totalorder %s25, 1
      %p200 = por %p198, %p199
      %p202 = scmp.ne.s32.totalorder %s185, %s201
      %p203 = scmp.eq.s32.totalorder %s25, 0
      %p204 = por %p202, %p203
      %p205 = scmp.le.s32.totalorder 1, %s19
      %p206 = scmp.lt.s32.totalorder %s19, 3
      %p207 = pnand %p205, %p206
      %p208 = pneg %p207
      // Predicated region
      $region9: #{tpu_custom_call.1} parent=5 // pred_check
        _
      $region10: #{tpu_custom_call.1} parent=5 // pred_check_branch
        %210 = sbr.rel (%p207) target = $region12
      $region11: #{tpu_custom_call.1} parent=5 // pred_region
        %s211 = ssub.s32 %s19, 1
        // Predicated region
        $region13: #{tpu_custom_call.1} parent=11 // pred_check
          %p212 = pneg %p66
        $region14: #{tpu_custom_call.1} parent=11 // pred_check_branch
          %214 = sbr.rel (%p212) target = $region16
        $region15: #{tpu_custom_call.1} parent=11 // pred_region
          _
        $region16: #{tpu_custom_call.1} parent=11 // pred_fallthru
          _
        // Predicated region
        $region17: #{tpu_custom_call.1} parent=11 // pred_check
          %p215 = pneg %p87
        $region18: #{tpu_custom_call.1} parent=11 // pred_check_branch
          %217 = sbr.rel (%p215) target = $region20
        $region19: #{tpu_custom_call.1} parent=11 // pred_region
          _
        $region20: #{tpu_custom_call.1} parent=11 // pred_fallthru
          _
        // Predicated region
        $region21: #{tpu_custom_call.1} parent=11 // pred_check
          %p218 = pneg %p108
        $region22: #{tpu_custom_call.1} parent=11 // pred_check_branch
          %220 = sbr.rel (%p218) target = $region24
        $region23: #{tpu_custom_call.1} parent=11 // pred_region
          _
        $region24: #{tpu_custom_call.1} parent=11 // pred_fallthru
          _
        // Predicated region
        $region25: #{tpu_custom_call.1} parent=11 // pred_check
          %p221 = pneg %p129
        $region26: #{tpu_custom_call.1} parent=11 // pred_check_branch
          %223 = sbr.rel (%p221) target = $region28
        $region27: #{tpu_custom_call.1} parent=11 // pred_region
          _
        $region28: #{tpu_custom_call.1} parent=11 // pred_fallthru
          _
        // Predicated region
        $region29: #{tpu_custom_call.1} parent=11 // pred_check
          %p224 = pneg %p150
        $region30: #{tpu_custom_call.1} parent=11 // pred_check_branch
          %226 = sbr.rel (%p224) target = $region32
        $region31: #{tpu_custom_call.1} parent=11 // pred_region
          _
        $region32: #{tpu_custom_call.1} parent=11 // pred_fallthru
          _
        // Predicated region
        $region33: #{tpu_custom_call.1} parent=11 // pred_check
          %p227 = pneg %p171
        $region34: #{tpu_custom_call.1} parent=11 // pred_check_branch
          %229 = sbr.rel (%p227) target = $region36
        $region35: #{tpu_custom_call.1} parent=11 // pred_region
          _
        $region36: #{tpu_custom_call.1} parent=11 // pred_fallthru
          _
      $region12: #{tpu_custom_call.1} parent=5 // pred_fallthru
        _
      %p230 = scmp.lt.s32.totalorder %s19, 2
      // Predicated region
      $region37: #{tpu_custom_call.1} parent=5 // pred_check
        %p231 = pneg %p230
      $region38: #{tpu_custom_call.1} parent=5 // pred_check_branch
        %233 = sbr.rel (%p231) target = $region40
      $region39: #{tpu_custom_call.1} parent=5 // pred_region
        // Predicated region
        $region41: #{tpu_custom_call.1} parent=39 // pred_check
          %p234 = pneg %p39
        $region42: #{tpu_custom_call.1} parent=39 // pred_check_branch
          %236 = sbr.rel (%p234) target = $region44
        $region43: #{tpu_custom_call.1} parent=39 // pred_region
          %s237 = sand.u32 %s29, 1
          %s238 = scalar_lea.sflag [#allocation3], %s237
          %s239 = sand.u32 %s29, 1
          %s240 = smul.addr %s239, 128
          %s241 = scalar_lea.vmem [#allocation2], %s240
          %s242 = smul.u32 2, %s19
          %244 = vsyncadd %s238, 0
          %s245 = smul.addr %s242, 8
          %s246 = smul.addr %s245, 8
          %s247 = scalar_lea.hbm %s0, %s246
          %s248 = sshll.u32 %s247, 4
          %s249 = int_to_ptr.hbm [resolvable:$true] %s248
          %s250 = sshll.u32 %s241, 4
          %s251 = int_to_ptr.vmem [resolvable:$true] %s250
          %256 = dma.hbm_to_vmem [thread:$0]  %s249, 2048, %s251, %s238, 128, 128, 8
        $region44: #{tpu_custom_call.1} parent=39 // pred_fallthru
          _
      $region40: #{tpu_custom_call.1} parent=5 // pred_fallthru
        _
      %p257 = scmp.le.s32.totalorder 1, %s19
      %p258 = scmp.lt.s32.totalorder %s19, 3
      %p259 = pnand %p257, %p258
      %p260 = pneg %p259
      // Predicated region
      $region45: #{tpu_custom_call.1} parent=5 // pred_check
        _
      $region46: #{tpu_custom_call.1} parent=5 // pred_check_branch
        %262 = sbr.rel (%p259) target = $region48
      $region47: #{tpu_custom_call.1} parent=5 // pred_region
        %s263 = ssub.s32 %s19, 1
        %s264 = sand.u32 %s32, 1
        %s265 = scalar_lea.sflag [#allocation3], %s264
        %s266 = sand.u32 %s32, 1
        %s267 = smul.addr %s266, 128
        %s268 = scalar_lea.vmem [#allocation2], %s267
        // Predicated region
        $region49: #{tpu_custom_call.1} parent=47 // pred_check
          %p269 = pneg %p45
        $region50: #{tpu_custom_call.1} parent=47 // pred_check_branch
          %271 = sbr.rel (%p269) target = $region52
        $region51: #{tpu_custom_call.1} parent=47 // pred_region
          %273 = dma.done %s265, 2048
        $region52: #{tpu_custom_call.1} parent=47 // pred_fallthru
          _
        %s274 = sand.u32 %s32, 1
        %s275 = scalar_lea.sflag [#allocation3], %s274
        %s276 = sand.u32 %s32, 1
        %s277 = smul.addr %s276, 128
        %s278 = scalar_lea.vmem [#allocation2], %s277
        %p279 = pneg %p45
        %p280 = pneg %p42
        %p281 = pneg %p66
        %p282 = pneg %p63
        %p283 = pneg %p87
        %p284 = pneg %p84
        %p285 = pneg %p108
        %p286 = pneg %p105
        %p287 = pneg %p129
        %p288 = pneg %p126
        %p289 = pneg %p150
        %p290 = pneg %p147
        %p291 = pneg %p171
        %p292 = pneg %p168
        %p293 = pneg %p197
        %p294 = pneg %p194
        %s295 = sand.u32 %s184, 1
        %s296 = scalar_lea.sflag [#allocation4], %s295
        %s297 = sand.u32 %s184, 1
        %s298 = smul.addr %s297, 128
        %s299 = scalar_lea.vmem [#allocation5], %s298
        %s300 = smul.u32 2, %s24
        %s301 = smul.u32 2, %s24
        %v303 = vld [vmem:[%s268] sm:$0xff]
        %v304 = vld [vmem:[%s268 + $0x8] sm:$0xff]
        %v305 = vld [vmem:[%s268 + $0x10] sm:$0xff]
        %v306 = vld [vmem:[%s268 + $0x18] sm:$0xff]
        %v307 = vld [vmem:[%s268 + $0x20] sm:$0xff]
        %v308 = vld [vmem:[%s268 + $0x28] sm:$0xff]
        %v309 = vld [vmem:[%s268 + $0x30] sm:$0xff]
        %v310 = vld [vmem:[%s268 + $0x38] sm:$0xff]
        %v311 = vld [vmem:[%s268 + $0x40] sm:$0xff]
        %v312 = vld [vmem:[%s268 + $0x48] sm:$0xff]
        %v313 = vld [vmem:[%s268 + $0x50] sm:$0xff]
        %v314 = vld [vmem:[%s268 + $0x58] sm:$0xff]
        %v315 = vld [vmem:[%s268 + $0x60] sm:$0xff]
        %v316 = vld [vmem:[%s268 + $0x68] sm:$0xff]
        %v317 = vld [vmem:[%s268 + $0x70] sm:$0xff]
        %v318 = vld [vmem:[%s268 + $0x78] sm:$0xff]
        %v319 = vpack.c.bf16 %v303, %v303
        %v320 = vpack.c.bf16 %v304, %v304
        %v321 = vpack.c.bf16 %v305, %v305
        %v322 = vpack.c.bf16 %v306, %v306
        %v323 = vpack.c.bf16 %v307, %v307
        %v324 = vpack.c.bf16 %v308, %v308
        %v325 = vpack.c.bf16 %v309, %v309
        %v326 = vpack.c.bf16 %v310, %v310
        %v327 = vpack.c.bf16 %v311, %v311
        %v328 = vpack.c.bf16 %v312, %v312
        %v329 = vpack.c.bf16 %v313, %v313
        %v330 = vpack.c.bf16 %v314, %v314
        %v331 = vpack.c.bf16 %v315, %v315
        %v332 = vpack.c.bf16 %v316, %v316
        %v333 = vpack.c.bf16 %v317, %v317
        %v334 = vpack.c.bf16 %v318, %v318
        %v335 = vld [vmem:[%s1] sm:$0xf]
        %v336 = vld [vmem:[%s1 + $0x4] sm:$0xf]
        %v337 = vld [vmem:[%s2] sm:$0x1]
        %v339 = vperm.slane %v337, 0
        %v357 = vunpack.c.l.b16 %v319
        %v358 = vunpack.c.l.b16 %v320
        %v359 = vunpack.c.l.b16 %v321
        %v360 = vunpack.c.l.b16 %v322
        %v361 = vunpack.c.l.b16 %v323
        %v362 = vunpack.c.l.b16 %v324
        %v363 = vunpack.c.l.b16 %v325
        %v364 = vunpack.c.l.b16 %v326
        %v365 = vunpack.c.l.b16 %v327
        %v366 = vunpack.c.l.b16 %v328
        %v367 = vunpack.c.l.b16 %v329
        %v368 = vunpack.c.l.b16 %v330
        %v369 = vunpack.c.l.b16 %v331
        %v370 = vunpack.c.l.b16 %v332
        %v371 = vunpack.c.l.b16 %v333
        %v372 = vunpack.c.l.b16 %v334
        %v373 = vpack.c.b16 %v358, %v357
        %v374 = vpack.c.b16 %v360, %v359
        %v375 = vpack.c.b16 %v362, %v361
        %v376 = vpack.c.b16 %v364, %v363
        %v377 = vpack.c.b16 %v366, %v365
        %v378 = vpack.c.b16 %v368, %v367
        %v379 = vpack.c.b16 %v370, %v369
        %v380 = vpack.c.b16 %v372, %v371
        %v383 = vunpack.c.l.b16 %v335
        %v384 = vunpack.c.l.b16 %v336
        %v385 = vpack.c.b16 %v384, %v383
        %vm387 = vcmask 130048
        %v389 = vsel %vm387, %v373, 0
        %v392 = vsel %vm387, %v374, 0
        %v395 = vsel %vm387, %v375, 0
        %v398 = vsel %vm387, %v376, 0
        %v401 = vsel %vm387, %v377, 0
        %v404 = vsel %vm387, %v378, 0
        %v407 = vsel %vm387, %v379, 0
        %v410 = vsel %vm387, %v380, 0
        %412 = vmatpush.bf16.msra.mxu0 0
        %413 = vmatpush.bf16.msra.mxu0 0
        %414 = vmatpush.bf16.msra.mxu0 0
        %415 = vmatpush.bf16.msra.mxu0 0
        %416 = vmatpush.bf16.msra.mxu0 0
        %417 = vmatpush.bf16.msra.mxu0 0
        %418 = vmatpush.bf16.msra.mxu0 0
        %419 = vmatpush.bf16.msra.mxu0 %v385
        %420 = vmatmul.bf16.gmra.mxu0 %v389
        %v421 = vpop.f32.mrf.mxu0
        %v422 = vadd.f32 %v339, %v421
        %v423 = vpop.f32.mrf.mxu0
        %v424 = vadd.f32 %v339, %v423
        %425 = vmatmul.bf16.gmra.mxu0 %v392
        %v426 = vpop.f32.mrf.mxu0
        %v427 = vadd.f32 %v339, %v426
        %v428 = vpop.f32.mrf.mxu0
        %v429 = vadd.f32 %v339, %v428
        %430 = vmatmul.bf16.gmra.mxu0 %v395
        %v431 = vpop.f32.mrf.mxu0
        %v432 = vadd.f32 %v339, %v431
        %v433 = vpop.f32.mrf.mxu0
        %v434 = vadd.f32 %v339, %v433
        %435 = vmatmul.bf16.gmra.mxu0 %v398
        %v436 = vpop.f32.mrf.mxu0
        %v437 = vadd.f32 %v339, %v436
        %v438 = vpop.f32.mrf.mxu0
        %v439 = vadd.f32 %v339, %v438
        %440 = vmatmul.bf16.gmra.mxu0 %v401
        %v441 = vpop.f32.mrf.mxu0
        %v442 = vadd.f32 %v339, %v441
        %v443 = vpop.f32.mrf.mxu0
        %v444 = vadd.f32 %v339, %v443
        %445 = vmatmul.bf16.gmra.mxu0 %v404
        %v446 = vpop.f32.mrf.mxu0
        %v447 = vadd.f32 %v339, %v446
        %v448 = vpop.f32.mrf.mxu0
        %v449 = vadd.f32 %v339, %v448
        %450 = vmatmul.bf16.gmra.mxu0 %v407
        %v451 = vpop.f32.mrf.mxu0
        %v452 = vadd.f32 %v339, %v451
        %v453 = vpop.f32.mrf.mxu0
        %v454 = vadd.f32 %v339, %v453
        %455 = vmatmul.bf16.gmra.mxu0 %v410
        %v456 = vpop.f32.mrf.mxu0
        %v457 = vadd.f32 %v339, %v456
        %v458 = vpop.f32.mrf.mxu0
        %v459 = vadd.f32 %v339, %v458
        %460 = vdwg.mxu0
        %v461 = vmax.f32 %v422, 0.0
        %v462 = vmax.f32 %v424, 0.0
        %v463 = vmax.f32 %v427, 0.0
        %v464 = vmax.f32 %v429, 0.0
        %v465 = vmax.f32 %v432, 0.0
        %v466 = vmax.f32 %v434, 0.0
        %v467 = vmax.f32 %v437, 0.0
        %v468 = vmax.f32 %v439, 0.0
        %v469 = vmax.f32 %v442, 0.0
        %v470 = vmax.f32 %v444, 0.0
        %v471 = vmax.f32 %v447, 0.0
        %v472 = vmax.f32 %v449, 0.0
        %v473 = vmax.f32 %v452, 0.0
        %v474 = vmax.f32 %v454, 0.0
        %v475 = vmax.f32 %v457, 0.0
        %v476 = vmax.f32 %v459, 0.0
        %v477 = vrot.slane %v461, 7
        %v478 = vrot.slane %v462, 7
        %v479 = vrot.slane %v463, 7
        %v480 = vrot.slane %v464, 7
        %v481 = vrot.slane %v465, 7
        %v482 = vrot.slane %v466, 7
        %v483 = vrot.slane %v467, 7
        %v484 = vrot.slane %v468, 7
        %v485 = vrot.slane %v469, 7
        %v486 = vrot.slane %v470, 7
        %v487 = vrot.slane %v471, 7
        %v488 = vrot.slane %v472, 7
        %v489 = vrot.slane %v473, 7
        %v490 = vrot.slane %v474, 7
        %v491 = vrot.slane %v475, 7
        %v492 = vrot.slane %v476, 7
        %v493 = vlaneseq
        %v494 = vshrl.u32 %v493, 7
        %vm495 = vcmp.lt.s32.totalorder %v494, 1
        %v496 = vsel %vm495, %v492, 0.0
        %v497 = vsel %vm495, 0.0, %v492
        %v498 = vsel %vm495, %v491, 0.0
        %v499 = vsel %vm495, 0.0, %v491
        %v500 = vsel %vm495, %v490, 0.0
        %v501 = vsel %vm495, 0.0, %v490
        %v502 = vsel %vm495, %v489, 0.0
        %v503 = vsel %vm495, 0.0, %v489
        %v504 = vsel %vm495, %v488, 0.0
        %v505 = vsel %vm495, 0.0, %v488
        %v506 = vsel %vm495, %v487, 0.0
        %v507 = vsel %vm495, 0.0, %v487
        %v508 = vsel %vm495, %v486, 0.0
        %v509 = vsel %vm495, 0.0, %v486
        %v510 = vsel %vm495, %v485, 0.0
        %v511 = vsel %vm495, 0.0, %v485
        %v512 = vsel %vm495, %v484, 0.0
        %v513 = vsel %vm495, 0.0, %v484
        %v514 = vsel %vm495, %v483, 0.0
        %v515 = vsel %vm495, 0.0, %v483
        %v516 = vsel %vm495, %v482, 0.0
        %v517 = vsel %vm495, 0.0, %v482
        %v518 = vsel %vm495, %v481, 0.0
        %v519 = vsel %vm495, 0.0, %v481
        %v520 = vsel %vm495, %v480, 0.0
        %v521 = vsel %vm495, 0.0, %v480
        %v522 = vsel %vm495, %v479, 0.0
        %v523 = vsel %vm495, 0.0, %v479
        %v524 = vsel %vm495, %v478, 0.0
        %v525 = vsel %vm495, 0.0, %v478
        %v526 = vsel %vm495, %v477, 0.0
        %v527 = vsel %vm495, 0.0, %v477
        %v528 = vrot.slane %v461, 1
        %v529 = vrot.slane %v462, 1
        %v530 = vrot.slane %v463, 1
        %v531 = vrot.slane %v464, 1
        %v532 = vrot.slane %v465, 1
        %v533 = vrot.slane %v466, 1
        %v534 = vrot.slane %v467, 1
        %v535 = vrot.slane %v468, 1
        %v536 = vrot.slane %v469, 1
        %v537 = vrot.slane %v470, 1
        %v538 = vrot.slane %v471, 1
        %v539 = vrot.slane %v472, 1
        %v540 = vrot.slane %v473, 1
        %v541 = vrot.slane %v474, 1
        %v542 = vrot.slane %v475, 1
        %v543 = vrot.slane %v476, 1
        %vm544 = vcmp.lt.s32.totalorder %v494, 7
        %v545 = vsel %vm544, %v543, 0.0
        %v546 = vsel %vm544, 0.0, %v543
        %v547 = vsel %vm544, %v542, 0.0
        %v548 = vsel %vm544, 0.0, %v542
        %v549 = vsel %vm544, %v541, 0.0
        %v550 = vsel %vm544, 0.0, %v541
        %v551 = vsel %vm544, %v540, 0.0
        %v552 = vsel %vm544, 0.0, %v540
        %v553 = vsel %vm544, %v539, 0.0
        %v554 = vsel %vm544, 0.0, %v539
        %v555 = vsel %vm544, %v538, 0.0
        %v556 = vsel %vm544, 0.0, %v538
        %v557 = vsel %vm544, %v537, 0.0
        %v558 = vsel %vm544, 0.0, %v537
        %v559 = vsel %vm544, %v536, 0.0
        %v560 = vsel %vm544, 0.0, %v536
        %v561 = vsel %vm544, %v535, 0.0
        %v562 = vsel %vm544, 0.0, %v535
        %v563 = vsel %vm544, %v534, 0.0
        %v564 = vsel %vm544, 0.0, %v534
        %v565 = vsel %vm544, %v533, 0.0
        %v566 = vsel %vm544, 0.0, %v533
        %v567 = vsel %vm544, %v532, 0.0
        %v568 = vsel %vm544, 0.0, %v532
        %v569 = vsel %vm544, %v531, 0.0
        %v570 = vsel %vm544, 0.0, %v531
        %v571 = vsel %vm544, %v530, 0.0
        %v572 = vsel %vm544, 0.0, %v530
        %v573 = vsel %vm544, %v529, 0.0
        %v574 = vsel %vm544, 0.0, %v529
        %v575 = vsel %vm544, %v528, 0.0
        %v576 = vsel %vm544, 0.0, %v528
        %v577 = vpack.c.bf16 0.0, 0.0
        %v578 = vpack.c.bf16 %v527, %v527
        %v579 = vpack.c.bf16 %v526, %v526
        %v580 = vpack.c.bf16 %v525, %v525
        %v581 = vpack.c.bf16 %v524, %v524
        %v582 = vpack.c.bf16 %v523, %v523
        %v583 = vpack.c.bf16 %v522, %v522
        %v584 = vpack.c.bf16 %v521, %v521
        %v585 = vpack.c.bf16 %v520, %v520
        %v586 = vpack.c.bf16 %v519, %v519
        %v587 = vpack.c.bf16 %v518, %v518
        %v588 = vpack.c.bf16 %v517, %v517
        %v589 = vpack.c.bf16 %v516, %v516
        %v590 = vpack.c.bf16 %v515, %v515
        %v591 = vpack.c.bf16 %v514, %v514
        %v592 = vpack.c.bf16 %v513, %v513
        %v593 = vpack.c.bf16 %v512, %v512
        %v594 = vpack.c.bf16 %v511, %v511
        %v595 = vpack.c.bf16 %v510, %v510
        %v596 = vpack.c.bf16 %v509, %v509
        %v597 = vpack.c.bf16 %v508, %v508
        %v598 = vpack.c.bf16 %v507, %v507
        %v599 = vpack.c.bf16 %v506, %v506
        %v600 = vpack.c.bf16 %v505, %v505
        %v601 = vpack.c.bf16 %v504, %v504
        %v602 = vpack.c.bf16 %v503, %v503
        %v603 = vpack.c.bf16 %v502, %v502
        %v604 = vpack.c.bf16 %v501, %v501
        %v605 = vpack.c.bf16 %v500, %v500
        %v606 = vpack.c.bf16 %v499, %v499
        %v607 = vpack.c.bf16 %v498, %v498
        %v608 = vpack.c.bf16 %v497, %v497
        %v609 = vpack.c.bf16 %v496, %v496
        %v610 = vpack.c.bf16 0.0, 0.0
        %v611 = vpack.c.bf16 %v461, %v461
        %v612 = vpack.c.bf16 %v462, %v462
        %v613 = vpack.c.bf16 %v463, %v463
        %v614 = vpack.c.bf16 %v464, %v464
        %v615 = vpack.c.bf16 %v465, %v465
        %v616 = vpack.c.bf16 %v466, %v466
        %v617 = vpack.c.bf16 %v467, %v467
        %v618 = vpack.c.bf16 %v468, %v468
        %v619 = vpack.c.bf16 %v469, %v469
        %v620 = vpack.c.bf16 %v470, %v470
        %v621 = vpack.c.bf16 %v471, %v471
        %v622 = vpack.c.bf16 %v472, %v472
        %v623 = vpack.c.bf16 %v473, %v473
        %v624 = vpack.c.bf16 %v474, %v474
        %v625 = vpack.c.bf16 %v475, %v475
        %v626 = vpack.c.bf16 %v476, %v476
        %v627 = vpack.c.bf16 0.0, 0.0
        %v628 = vpack.c.bf16 %v576, %v576
        %v629 = vpack.c.bf16 %v575, %v575
        %v630 = vpack.c.bf16 %v574, %v574
        %v631 = vpack.c.bf16 %v573, %v573
        %v632 = vpack.c.bf16 %v572, %v572
        %v633 = vpack.c.bf16 %v571, %v571
        %v634 = vpack.c.bf16 %v570, %v570
        %v635 = vpack.c.bf16 %v569, %v569
        %v636 = vpack.c.bf16 %v568, %v568
        %v637 = vpack.c.bf16 %v567, %v567
        %v638 = vpack.c.bf16 %v566, %v566
        %v639 = vpack.c.bf16 %v565, %v565
        %v640 = vpack.c.bf16 %v564, %v564
        %v641 = vpack.c.bf16 %v563, %v563
        %v642 = vpack.c.bf16 %v562, %v562
        %v643 = vpack.c.bf16 %v561, %v561
        %v644 = vpack.c.bf16 %v560, %v560
        %v645 = vpack.c.bf16 %v559, %v559
        %v646 = vpack.c.bf16 %v558, %v558
        %v647 = vpack.c.bf16 %v557, %v557
        %v648 = vpack.c.bf16 %v556, %v556
        %v649 = vpack.c.bf16 %v555, %v555
        %v650 = vpack.c.bf16 %v554, %v554
        %v651 = vpack.c.bf16 %v553, %v553
        %v652 = vpack.c.bf16 %v552, %v552
        %v653 = vpack.c.bf16 %v551, %v551
        %v654 = vpack.c.bf16 %v550, %v550
        %v655 = vpack.c.bf16 %v549, %v549
        %v656 = vpack.c.bf16 %v548, %v548
        %v657 = vpack.c.bf16 %v547, %v547
        %v658 = vpack.c.bf16 %v546, %v546
        %v659 = vpack.c.bf16 %v545, %v545
        %v693 = vunpack.c.l.b16 %v577
        %v694 = vunpack.c.l.b16 %v578
        %v695 = vunpack.c.l.b16 %v579
        %v696 = vunpack.c.l.b16 %v580
        %v697 = vunpack.c.l.b16 %v581
        %v698 = vunpack.c.l.b16 %v582
        %v699 = vunpack.c.l.b16 %v583
        %v700 = vunpack.c.l.b16 %v584
        %v701 = vunpack.c.l.b16 %v585
        %v702 = vunpack.c.l.b16 %v586
        %v703 = vunpack.c.l.b16 %v587
        %v704 = vunpack.c.l.b16 %v588
        %v705 = vunpack.c.l.b16 %v589
        %v706 = vunpack.c.l.b16 %v590
        %v707 = vunpack.c.l.b16 %v591
        %v708 = vunpack.c.l.b16 %v592
        %v709 = vunpack.c.l.b16 %v593
        %v710 = vunpack.c.l.b16 %v594
        %v711 = vunpack.c.l.b16 %v595
        %v712 = vunpack.c.l.b16 %v596
        %v713 = vunpack.c.l.b16 %v597
        %v714 = vunpack.c.l.b16 %v598
        %v715 = vunpack.c.l.b16 %v599
        %v716 = vunpack.c.l.b16 %v600
        %v717 = vunpack.c.l.b16 %v601
        %v718 = vunpack.c.l.b16 %v602
        %v719 = vunpack.c.l.b16 %v603
        %v720 = vunpack.c.l.b16 %v604
        %v721 = vunpack.c.l.b16 %v605
        %v722 = vunpack.c.l.b16 %v606
        %v723 = vunpack.c.l.b16 %v607
        %v724 = vunpack.c.l.b16 %v608
        %v725 = vunpack.c.l.b16 %v609
        %v726 = vpack.c.b16 %v693, %v693
        %v727 = vpack.c.b16 %v695, %v694
        %v728 = vpack.c.b16 %v697, %v696
        %v729 = vpack.c.b16 %v699, %v698
        %v730 = vpack.c.b16 %v701, %v700
        %v731 = vpack.c.b16 %v703, %v702
        %v732 = vpack.c.b16 %v705, %v704
        %v733 = vpack.c.b16 %v707, %v706
        %v734 = vpack.c.b16 %v709, %v708
        %v735 = vpack.c.b16 %v711, %v710
        %v736 = vpack.c.b16 %v713, %v712
        %v737 = vpack.c.b16 %v715, %v714
        %v738 = vpack.c.b16 %v717, %v716
        %v739 = vpack.c.b16 %v719, %v718
        %v740 = vpack.c.b16 %v721, %v720
        %v741 = vpack.c.b16 %v723, %v722
        %v742 = vpack.c.b16 %v725, %v724
        %v760 = vunpack.c.l.b16 %v610
        %v761 = vunpack.c.l.b16 %v611
        %v762 = vunpack.c.l.b16 %v612
        %v763 = vunpack.c.l.b16 %v613
        %v764 = vunpack.c.l.b16 %v614
        %v765 = vunpack.c.l.b16 %v615
        %v766 = vunpack.c.l.b16 %v616
        %v767 = vunpack.c.l.b16 %v617
        %v768 = vunpack.c.l.b16 %v618
        %v769 = vunpack.c.l.b16 %v619
        %v770 = vunpack.c.l.b16 %v620
        %v771 = vunpack.c.l.b16 %v621
        %v772 = vunpack.c.l.b16 %v622
        %v773 = vunpack.c.l.b16 %v623
        %v774 = vunpack.c.l.b16 %v624
        %v775 = vunpack.c.l.b16 %v625
        %v776 = vunpack.c.l.b16 %v626
        %v777 = vpack.c.b16 %v760, %v760
        %v778 = vpack.c.b16 %v760, %v761
        %v779 = vpack.c.b16 %v760, %v762
        %v780 = vpack.c.b16 %v760, %v763
        %v781 = vpack.c.b16 %v760, %v764
        %v782 = vpack.c.b16 %v760, %v765
        %v783 = vpack.c.b16 %v760, %v766
        %v784 = vpack.c.b16 %v760, %v767
        %v785 = vpack.c.b16 %v760, %v768
        %v786 = vpack.c.b16 %v760, %v769
        %v787 = vpack.c.b16 %v760, %v770
        %v788 = vpack.c.b16 %v760, %v771
        %v789 = vpack.c.b16 %v760, %v772
        %v790 = vpack.c.b16 %v760, %v773
        %v791 = vpack.c.b16 %v760, %v774
        %v792 = vpack.c.b16 %v760, %v775
        %v793 = vpack.c.b16 %v760, %v776
        %794 = vrot.lane.b32.xlu0 %v777, 8
        %v795 = vpop.permute.xlu0 %794
        %796 = vrot.lane.b32.xlu0 %v778, 8
        %v797 = vpop.permute.xlu0 %796
        %798 = vrot.lane.b32.xlu0 %v779, 8
        %v799 = vpop.permute.xlu0 %798
        %800 = vrot.lane.b32.xlu0 %v780, 8
        %v801 = vpop.permute.xlu0 %800
        %802 = vrot.lane.b32.xlu0 %v781, 8
        %v803 = vpop.permute.xlu0 %802
        %804 = vrot.lane.b32.xlu0 %v782, 8
        %v805 = vpop.permute.xlu0 %804
        %806 = vrot.lane.b32.xlu0 %v783, 8
        %v807 = vpop.permute.xlu0 %806
        %808 = vrot.lane.b32.xlu0 %v784, 8
        %v809 = vpop.permute.xlu0 %808
        %810 = vrot.lane.b32.xlu0 %v785, 8
        %v811 = vpop.permute.xlu0 %810
        %812 = vrot.lane.b32.xlu0 %v786, 8
        %v813 = vpop.permute.xlu0 %812
        %814 = vrot.lane.b32.xlu0 %v787, 8
        %v815 = vpop.permute.xlu0 %814
        %816 = vrot.lane.b32.xlu0 %v788, 8
        %v817 = vpop.permute.xlu0 %816
        %818 = vrot.lane.b32.xlu0 %v789, 8
        %v819 = vpop.permute.xlu0 %818
        %820 = vrot.lane.b32.xlu0 %v790, 8
        %v821 = vpop.permute.xlu0 %820
        %822 = vrot.lane.b32.xlu0 %v791, 8
        %v823 = vpop.permute.xlu0 %822
        %824 = vrot.lane.b32.xlu0 %v792, 8
        %v825 = vpop.permute.xlu0 %824
        %826 = vrot.lane.b32.xlu0 %v793, 8
        %v827 = vpop.permute.xlu0 %826
        %v861 = vunpack.c.l.b16 %v627
        %v862 = vunpack.c.l.b16 %v628
        %v863 = vunpack.c.l.b16 %v629
        %v864 = vunpack.c.l.b16 %v630
        %v865 = vunpack.c.l.b16 %v631
        %v866 = vunpack.c.l.b16 %v632
        %v867 = vunpack.c.l.b16 %v633
        %v868 = vunpack.c.l.b16 %v634
        %v869 = vunpack.c.l.b16 %v635
        %v870 = vunpack.c.l.b16 %v636
        %v871 = vunpack.c.l.b16 %v637
        %v872 = vunpack.c.l.b16 %v638
        %v873 = vunpack.c.l.b16 %v639
        %v874 = vunpack.c.l.b16 %v640
        %v875 = vunpack.c.l.b16 %v641
        %v876 = vunpack.c.l.b16 %v642
        %v877 = vunpack.c.l.b16 %v643
        %v878 = vunpack.c.l.b16 %v644
        %v879 = vunpack.c.l.b16 %v645
        %v880 = vunpack.c.l.b16 %v646
        %v881 = vunpack.c.l.b16 %v647
        %v882 = vunpack.c.l.b16 %v648
        %v883 = vunpack.c.l.b16 %v649
        %v884 = vunpack.c.l.b16 %v650
        %v885 = vunpack.c.l.b16 %v651
        %v886 = vunpack.c.l.b16 %v652
        %v887 = vunpack.c.l.b16 %v653
        %v888 = vunpack.c.l.b16 %v654
        %v889 = vunpack.c.l.b16 %v655
        %v890 = vunpack.c.l.b16 %v656
        %v891 = vunpack.c.l.b16 %v657
        %v892 = vunpack.c.l.b16 %v658
        %v893 = vunpack.c.l.b16 %v659
        %v894 = vpack.c.b16 %v862, %v861
        %v895 = vpack.c.b16 %v864, %v863
        %v896 = vpack.c.b16 %v866, %v865
        %v897 = vpack.c.b16 %v868, %v867
        %v898 = vpack.c.b16 %v870, %v869
        %v899 = vpack.c.b16 %v872, %v871
        %v900 = vpack.c.b16 %v874, %v873
        %v901 = vpack.c.b16 %v876, %v875
        %v902 = vpack.c.b16 %v861, %v877
        %v903 = vpack.c.b16 %v861, %v861
        %v904 = vpack.c.b16 %v878, %v861
        %v905 = vpack.c.b16 %v880, %v879
        %v906 = vpack.c.b16 %v882, %v881
        %v907 = vpack.c.b16 %v884, %v883
        %v908 = vpack.c.b16 %v886, %v885
        %v909 = vpack.c.b16 %v888, %v887
        %v910 = vpack.c.b16 %v890, %v889
        %v911 = vpack.c.b16 %v892, %v891
        %v912 = vpack.c.b16 %v861, %v893
        %913 = vrot.lane.b32.xlu0 %v894, 16
        %v914 = vpop.permute.xlu0 %913
        %915 = vrot.lane.b32.xlu0 %v895, 16
        %v916 = vpop.permute.xlu0 %915
        %917 = vrot.lane.b32.xlu0 %v896, 16
        %v918 = vpop.permute.xlu0 %917
        %919 = vrot.lane.b32.xlu0 %v897, 16
        %v920 = vpop.permute.xlu0 %919
        %921 = vrot.lane.b32.xlu0 %v898, 16
        %v922 = vpop.permute.xlu0 %921
        %923 = vrot.lane.b32.xlu0 %v899, 16
        %v924 = vpop.permute.xlu0 %923
        %925 = vrot.lane.b32.xlu0 %v900, 16
        %v926 = vpop.permute.xlu0 %925
        %927 = vrot.lane.b32.xlu0 %v901, 16
        %v928 = vpop.permute.xlu0 %927
        %929 = vrot.lane.b32.xlu0 %v902, 16
        %v930 = vpop.permute.xlu0 %929
        %931 = vrot.lane.b32.xlu0 %v903, 16
        %v932 = vpop.permute.xlu0 %931
        %933 = vrot.lane.b32.xlu0 %v904, 16
        %v934 = vpop.permute.xlu0 %933
        %935 = vrot.lane.b32.xlu0 %v905, 16
        %v936 = vpop.permute.xlu0 %935
        %937 = vrot.lane.b32.xlu0 %v906, 16
        %v938 = vpop.permute.xlu0 %937
        %939 = vrot.lane.b32.xlu0 %v907, 16
        %v940 = vpop.permute.xlu0 %939
        %941 = vrot.lane.b32.xlu0 %v908, 16
        %v942 = vpop.permute.xlu0 %941
        %943 = vrot.lane.b32.xlu0 %v909, 16
        %v944 = vpop.permute.xlu0 %943
        %945 = vrot.lane.b32.xlu0 %v910, 16
        %v946 = vpop.permute.xlu0 %945
        %947 = vrot.lane.b32.xlu0 %v911, 16
        %v948 = vpop.permute.xlu0 %947
        %949 = vrot.lane.b32.xlu0 %v912, 16
        %v950 = vpop.permute.xlu0 %949
        %vm951 = vcmask 64512
        %v954 = vsel %vm951, %v726, %v795
        %v957 = vsel %vm951, %v727, %v797
        %v960 = vsel %vm951, %v728, %v799
        %v963 = vsel %vm951, %v729, %v801
        %v966 = vsel %vm951, %v730, %v803
        %v969 = vsel %vm951, %v731, %v805
        %v972 = vsel %vm951, %v732, %v807
        %v975 = vsel %vm951, %v733, %v809
        %v978 = vsel %vm951, %v734, %v811
        %v981 = vsel %vm951, %v735, %v813
        %v984 = vsel %vm951, %v736, %v815
        %v987 = vsel %vm951, %v737, %v817
        %v990 = vsel %vm951, %v738, %v819
        %v993 = vsel %vm951, %v739, %v821
        %v996 = vsel %vm951, %v740, %v823
        %v999 = vsel %vm951, %v741, %v825
        %v1002 = vsel %vm951, %v742, %v827
        %v1004 = vsel %vm387, %v954, %v914
        %v1006 = vsel %vm387, %v957, %v916
        %v1008 = vsel %vm387, %v960, %v918
        %v1010 = vsel %vm387, %v963, %v920
        %v1012 = vsel %vm387, %v966, %v922
        %v1014 = vsel %vm387, %v969, %v924
        %v1016 = vsel %vm387, %v972, %v926
        %v1018 = vsel %vm387, %v975, %v928
        %v1020 = vsel %vm387, %v978, %v930
        %v1022 = vsel %vm387, %v954, %v932
        %v1024 = vsel %vm387, %v954, %v934
        %v1026 = vsel %vm387, %v981, %v936
        %v1028 = vsel %vm387, %v984, %v938
        %v1030 = vsel %vm387, %v987, %v940
        %v1032 = vsel %vm387, %v990, %v942
        %v1034 = vsel %vm387, %v993, %v944
        %v1036 = vsel %vm387, %v996, %v946
        %v1038 = vsel %vm387, %v999, %v948
        %v1040 = vsel %vm387, %v1002, %v950
        %v1041 = vld [vmem:[%s3] sm:$0xf]
        %v1042 = vld [vmem:[%s3 + $0x4] sm:$0xf]
        %v1043 = vld [vmem:[%s3 + $0x8] sm:$0xf]
        %s1044 = scalar_lea.vmem %s3, 12
        %v1045 = vld [vmem:[%s1044] sm:$0xf]
        %v1046 = vld [vmem:[%s1044 + $0x4] sm:$0xf]
        %v1047 = vld [vmem:[%s1044 + $0x8] sm:$0xf]
        %v1051 = vunpack.c.l.b16 %v1045
        %v1052 = vunpack.c.l.b16 %v1046
        %v1053 = vunpack.c.l.b16 %v1047
        %v1054 = vpack.c.b16 %v1052, %v1051
        %v1055 = vpack.c.b16 %v1053, %v1053
        %vm1057 = vcmask 195584
        %v1058 = vsel %vm1057, %v1006, 0
        %v1060 = vsel %vm1057, %v1008, 0
        %v1062 = vsel %vm1057, %v1010, 0
        %v1064 = vsel %vm1057, %v1012, 0
        %v1066 = vsel %vm1057, %v1014, 0
        %v1068 = vsel %vm1057, %v1016, 0
        %v1070 = vsel %vm1057, %v1018, 0
        %v1072 = vsel %vm1057, %v1020, 0
        %v1074 = vsel %vm1057, %v1022, 0
        %v1076 = vsel %vm1057, %v1024, 0
        %v1078 = vsel %vm1057, %v1026, 0
        %v1080 = vsel %vm1057, %v1028, 0
        %v1082 = vsel %vm1057, %v1030, 0
        %v1084 = vsel %vm1057, %v1032, 0
        %v1086 = vsel %vm1057, %v1034, 0
        %v1088 = vsel %vm1057, %v1036, 0
        %v1090 = vsel %vm1057, %v1038, 0
        %v1092 = vsel %vm1057, %v1040, 0
        %vm1094 = vcmask 1043456
        %v1096 = vsel %vm1094, %v1055, 0
        %1098 = vmatpush.bf16.msra.mxu0 0
        %1099 = vmatpush.bf16.msra.mxu0 0
        %1100 = vmatpush.bf16.msra.mxu0 0
        %1101 = vmatpush.bf16.msra.mxu0 0
        %1102 = vmatpush.bf16.msra.mxu0 0
        %1103 = vmatpush.bf16.msra.mxu0 0
        %1104 = vmatpush.bf16.msra.mxu0 %v1096
        %1105 = vmatpush.bf16.msra.mxu0 %v1054
        %1106 = vmatmul.bf16.gmra.mxu0 %v1058
        %v1107 = vpop.f32.mrf.mxu0
        %v1108 = vadd.f32 0.0, %v1107
        %v1109 = vpop.f32.mrf.mxu0
        %v1110 = vadd.f32 0.0, %v1109
        %1111 = vmatmul.bf16.gmra.mxu0 %v1060
        %v1112 = vpop.f32.mrf.mxu0
        %v1113 = vadd.f32 0.0, %v1112
        %v1114 = vpop.f32.mrf.mxu0
        %v1115 = vadd.f32 0.0, %v1114
        %1116 = vmatmul.bf16.gmra.mxu0 %v1062
        %v1117 = vpop.f32.mrf.mxu0
        %v1118 = vadd.f32 0.0, %v1117
        %v1119 = vpop.f32.mrf.mxu0
        %v1120 = vadd.f32 0.0, %v1119
        %1121 = vmatmul.bf16.gmra.mxu0 %v1064
        %v1122 = vpop.f32.mrf.mxu0
        %v1123 = vadd.f32 0.0, %v1122
        %v1124 = vpop.f32.mrf.mxu0
        %v1125 = vadd.f32 0.0, %v1124
        %1126 = vmatmul.bf16.gmra.mxu0 %v1066
        %v1127 = vpop.f32.mrf.mxu0
        %v1128 = vadd.f32 0.0, %v1127
        %v1129 = vpop.f32.mrf.mxu0
        %v1130 = vadd.f32 0.0, %v1129
        %1131 = vmatmul.bf16.gmra.mxu0 %v1068
        %v1132 = vpop.f32.mrf.mxu0
        %v1133 = vadd.f32 0.0, %v1132
        %v1134 = vpop.f32.mrf.mxu0
        %v1135 = vadd.f32 0.0, %v1134
        %1136 = vmatmul.bf16.gmra.mxu0 %v1070
        %v1137 = vpop.f32.mrf.mxu0
        %v1138 = vadd.f32 0.0, %v1137
        %v1139 = vpop.f32.mrf.mxu0
        %v1140 = vadd.f32 0.0, %v1139
        %1141 = vmatmul.bf16.gmra.mxu0 %v1072
        %v1142 = vpop.f32.mrf.mxu0
        %v1143 = vadd.f32 0.0, %v1142
        %v1144 = vpop.f32.mrf.mxu0
        %v1145 = vadd.f32 0.0, %v1144
        %1146 = vmatmul.bf16.gmra.mxu0 %v1074
        %v1147 = vpop.f32.mrf.mxu0
        %v1148 = vadd.f32 0.0, %v1147
        %v1149 = vpop.f32.mrf.mxu0
        %v1150 = vadd.f32 0.0, %v1149
        %1151 = vmatmul.bf16.gmra.mxu0 %v1076
        %v1152 = vpop.f32.mrf.mxu0
        %v1153 = vadd.f32 0.0, %v1152
        %v1154 = vpop.f32.mrf.mxu0
        %v1155 = vadd.f32 0.0, %v1154
        %1156 = vmatmul.bf16.gmra.mxu0 %v1078
        %v1157 = vpop.f32.mrf.mxu0
        %v1158 = vadd.f32 0.0, %v1157
        %v1159 = vpop.f32.mrf.mxu0
        %v1160 = vadd.f32 0.0, %v1159
        %1161 = vmatmul.bf16.gmra.mxu0 %v1080
        %v1162 = vpop.f32.mrf.mxu0
        %v1163 = vadd.f32 0.0, %v1162
        %v1164 = vpop.f32.mrf.mxu0
        %v1165 = vadd.f32 0.0, %v1164
        %1166 = vmatmul.bf16.gmra.mxu0 %v1082
        %v1167 = vpop.f32.mrf.mxu0
        %v1168 = vadd.f32 0.0, %v1167
        %v1169 = vpop.f32.mrf.mxu0
        %v1170 = vadd.f32 0.0, %v1169
        %1171 = vmatmul.bf16.gmra.mxu0 %v1084
        %v1172 = vpop.f32.mrf.mxu0
        %v1173 = vadd.f32 0.0, %v1172
        %v1174 = vpop.f32.mrf.mxu0
        %v1175 = vadd.f32 0.0, %v1174
        %1176 = vmatmul.bf16.gmra.mxu0 %v1086
        %v1177 = vpop.f32.mrf.mxu0
        %v1178 = vadd.f32 0.0, %v1177
        %v1179 = vpop.f32.mrf.mxu0
        %v1180 = vadd.f32 0.0, %v1179
        %1181 = vmatmul.bf16.gmra.mxu0 %v1088
        %v1182 = vpop.f32.mrf.mxu0
        %v1183 = vadd.f32 0.0, %v1182
        %v1184 = vpop.f32.mrf.mxu0
        %v1185 = vadd.f32 0.0, %v1184
        %1186 = vmatmul.bf16.gmra.mxu0 %v1090
        %v1187 = vpop.f32.mrf.mxu0
        %v1188 = vadd.f32 0.0, %v1187
        %v1189 = vpop.f32.mrf.mxu0
        %v1190 = vadd.f32 0.0, %v1189
        %1191 = vmatmul.bf16.gmra.mxu0 %v1092
        %v1192 = vpop.f32.mrf.mxu0
        %v1193 = vadd.f32 0.0, %v1192
        %v1194 = vpop.f32.mrf.mxu0
        %v1195 = vadd.f32 0.0, %v1194
        %1196 = vdwg.mxu0
        %v1200 = vunpack.c.l.b16 %v1041
        %v1201 = vunpack.c.l.b16 %v1042
        %v1202 = vunpack.c.l.b16 %v1043
        %v1203 = vpack.c.b16 %v1201, %v1200
        %v1204 = vpack.c.b16 %v1202, %v1202
        %v1206 = vsel %vm1057, %v1004, 0
        %v1209 = vsel %vm1094, %v1204, 0
        %1211 = vmatpush.bf16.msra.mxu0 0
        %1212 = vmatpush.bf16.msra.mxu0 0
        %1213 = vmatpush.bf16.msra.mxu0 0
        %1214 = vmatpush.bf16.msra.mxu0 0
        %1215 = vmatpush.bf16.msra.mxu0 0
        %1216 = vmatpush.bf16.msra.mxu0 0
        %1217 = vmatpush.bf16.msra.mxu0 %v1209
        %1218 = vmatpush.bf16.msra.mxu0 %v1203
        %1219 = vmatmul.bf16.gmra.mxu0 %v1206
        %v1220 = vpop.f32.mrf.mxu0
        %v1221 = vadd.f32 %v1108, %v1220
        %v1222 = vpop.f32.mrf.mxu0
        %v1223 = vadd.f32 %v1110, %v1222
        %1224 = vmatmul.bf16.gmra.mxu0 %v1058
        %v1225 = vpop.f32.mrf.mxu0
        %v1226 = vadd.f32 %v1113, %v1225
        %v1227 = vpop.f32.mrf.mxu0
        %v1228 = vadd.f32 %v1115, %v1227
        %1229 = vmatmul.bf16.gmra.mxu0 %v1060
        %v1230 = vpop.f32.mrf.mxu0
        %v1231 = vadd.f32 %v1118, %v1230
        %v1232 = vpop.f32.mrf.mxu0
        %v1233 = vadd.f32 %v1120, %v1232
        %1234 = vmatmul.bf16.gmra.mxu0 %v1062
        %v1235 = vpop.f32.mrf.mxu0
        %v1236 = vadd.f32 %v1123, %v1235
        %v1237 = vpop.f32.mrf.mxu0
        %v1238 = vadd.f32 %v1125, %v1237
        %1239 = vmatmul.bf16.gmra.mxu0 %v1064
        %v1240 = vpop.f32.mrf.mxu0
        %v1241 = vadd.f32 %v1128, %v1240
        %v1242 = vpop.f32.mrf.mxu0
        %v1243 = vadd.f32 %v1130, %v1242
        %1244 = vmatmul.bf16.gmra.mxu0 %v1066
        %v1245 = vpop.f32.mrf.mxu0
        %v1246 = vadd.f32 %v1133, %v1245
        %v1247 = vpop.f32.mrf.mxu0
        %v1248 = vadd.f32 %v1135, %v1247
        %1249 = vmatmul.bf16.gmra.mxu0 %v1068
        %v1250 = vpop.f32.mrf.mxu0
        %v1251 = vadd.f32 %v1138, %v1250
        %v1252 = vpop.f32.mrf.mxu0
        %v1253 = vadd.f32 %v1140, %v1252
        %1254 = vmatmul.bf16.gmra.mxu0 %v1070
        %v1255 = vpop.f32.mrf.mxu0
        %v1256 = vadd.f32 %v1143, %v1255
        %v1257 = vpop.f32.mrf.mxu0
        %v1258 = vadd.f32 %v1145, %v1257
        %1259 = vmatmul.bf16.gmra.mxu0 %v1072
        %v1260 = vpop.f32.mrf.mxu0
        %v1261 = vadd.f32 %v1148, %v1260
        %v1262 = vpop.f32.mrf.mxu0
        %v1263 = vadd.f32 %v1150, %v1262
        %1264 = vmatmul.bf16.gmra.mxu0 %v1074
        %v1265 = vpop.f32.mrf.mxu0
        %v1266 = vadd.f32 %v1153, %v1265
        %v1267 = vpop.f32.mrf.mxu0
        %v1268 = vadd.f32 %v1155, %v1267
        %1269 = vmatmul.bf16.gmra.mxu0 %v1076
        %v1270 = vpop.f32.mrf.mxu0
        %v1271 = vadd.f32 %v1158, %v1270
        %v1272 = vpop.f32.mrf.mxu0
        %v1273 = vadd.f32 %v1160, %v1272
        %1274 = vmatmul.bf16.gmra.mxu0 %v1078
        %v1275 = vpop.f32.mrf.mxu0
        %v1276 = vadd.f32 %v1163, %v1275
        %v1277 = vpop.f32.mrf.mxu0
        %v1278 = vadd.f32 %v1165, %v1277
        %1279 = vmatmul.bf16.gmra.mxu0 %v1080
        %v1280 = vpop.f32.mrf.mxu0
        %v1281 = vadd.f32 %v1168, %v1280
        %v1282 = vpop.f32.mrf.mxu0
        %v1283 = vadd.f32 %v1170, %v1282
        %1284 = vmatmul.bf16.gmra.mxu0 %v1082
        %v1285 = vpop.f32.mrf.mxu0
        %v1286 = vadd.f32 %v1173, %v1285
        %v1287 = vpop.f32.mrf.mxu0
        %v1288 = vadd.f32 %v1175, %v1287
        %1289 = vmatmul.bf16.gmra.mxu0 %v1084
        %v1290 = vpop.f32.mrf.mxu0
        %v1291 = vadd.f32 %v1178, %v1290
        %v1292 = vpop.f32.mrf.mxu0
        %v1293 = vadd.f32 %v1180, %v1292
        %1294 = vmatmul.bf16.gmra.mxu0 %v1086
        %v1295 = vpop.f32.mrf.mxu0
        %v1296 = vadd.f32 %v1183, %v1295
        %v1297 = vpop.f32.mrf.mxu0
        %v1298 = vadd.f32 %v1185, %v1297
        %1299 = vmatmul.bf16.gmra.mxu0 %v1088
        %v1300 = vpop.f32.mrf.mxu0
        %v1301 = vadd.f32 %v1188, %v1300
        %v1302 = vpop.f32.mrf.mxu0
        %v1303 = vadd.f32 %v1190, %v1302
        %1304 = vmatmul.bf16.gmra.mxu0 %v1090
        %v1305 = vpop.f32.mrf.mxu0
        %v1306 = vadd.f32 %v1193, %v1305
        %v1307 = vpop.f32.mrf.mxu0
        %v1308 = vadd.f32 %v1195, %v1307
        %1309 = vdwg.mxu0
        %s1310 = scalar_lea.vmem %s3, 24
        %v1311 = vld [vmem:[%s1310] sm:$0xf]
        %v1312 = vld [vmem:[%s1310 + $0x4] sm:$0xf]
        %v1313 = vld [vmem:[%s1310 + $0x8] sm:$0xf]
        %v1317 = vunpack.c.l.b16 %v1311
        %v1318 = vunpack.c.l.b16 %v1312
        %v1319 = vunpack.c.l.b16 %v1313
        %v1320 = vpack.c.b16 %v1318, %v1317
        %v1321 = vpack.c.b16 %v1319, %v1319
        %v1324 = vsel %vm1094, %v1321, 0
        %1326 = vmatpush.bf16.msra.mxu0 0
        %1327 = vmatpush.bf16.msra.mxu0 0
        %1328 = vmatpush.bf16.msra.mxu0 0
        %1329 = vmatpush.bf16.msra.mxu0 0
        %1330 = vmatpush.bf16.msra.mxu0 0
        %1331 = vmatpush.bf16.msra.mxu0 0
        %1332 = vmatpush.bf16.msra.mxu0 %v1324
        %1333 = vmatpush.bf16.msra.mxu0 %v1320
        %1334 = vmatmul.bf16.gmra.mxu0 %v1060
        %v1335 = vpop.f32.mrf.mxu0
        %v1336 = vadd.f32 0.0, %v1335
        %v1337 = vpop.f32.mrf.mxu0
        %v1338 = vadd.f32 0.0, %v1337
        %1339 = vmatmul.bf16.gmra.mxu0 %v1062
        %v1340 = vpop.f32.mrf.mxu0
        %v1341 = vadd.f32 0.0, %v1340
        %v1342 = vpop.f32.mrf.mxu0
        %v1343 = vadd.f32 0.0, %v1342
        %1344 = vmatmul.bf16.gmra.mxu0 %v1064
        %v1345 = vpop.f32.mrf.mxu0
        %v1346 = vadd.f32 0.0, %v1345
        %v1347 = vpop.f32.mrf.mxu0
        %v1348 = vadd.f32 0.0, %v1347
        %1349 = vmatmul.bf16.gmra.mxu0 %v1066
        %v1350 = vpop.f32.mrf.mxu0
        %v1351 = vadd.f32 0.0, %v1350
        %v1352 = vpop.f32.mrf.mxu0
        %v1353 = vadd.f32 0.0, %v1352
        %1354 = vmatmul.bf16.gmra.mxu0 %v1068
        %v1355 = vpop.f32.mrf.mxu0
        %v1356 = vadd.f32 0.0, %v1355
        %v1357 = vpop.f32.mrf.mxu0
        %v1358 = vadd.f32 0.0, %v1357
        %1359 = vmatmul.bf16.gmra.mxu0 %v1070
        %v1360 = vpop.f32.mrf.mxu0
        %v1361 = vadd.f32 0.0, %v1360
        %v1362 = vpop.f32.mrf.mxu0
        %v1363 = vadd.f32 0.0, %v1362
        %1364 = vmatmul.bf16.gmra.mxu0 %v1072
        %v1365 = vpop.f32.mrf.mxu0
        %v1366 = vadd.f32 0.0, %v1365
        %v1367 = vpop.f32.mrf.mxu0
        %v1368 = vadd.f32 0.0, %v1367
        %1369 = vmatmul.bf16.gmra.mxu0 %v1074
        %v1370 = vpop.f32.mrf.mxu0
        %v1371 = vadd.f32 0.0, %v1370
        %v1372 = vpop.f32.mrf.mxu0
        %v1373 = vadd.f32 0.0, %v1372
        %1374 = vmatmul.bf16.gmra.mxu0 %v1076
        %v1375 = vpop.f32.mrf.mxu0
        %v1376 = vadd.f32 0.0, %v1375
        %v1377 = vpop.f32.mrf.mxu0
        %v1378 = vadd.f32 0.0, %v1377
        %1379 = vmatmul.bf16.gmra.mxu0 %v1078
        %v1380 = vpop.f32.mrf.mxu0
        %v1381 = vadd.f32 0.0, %v1380
        %v1382 = vpop.f32.mrf.mxu0
        %v1383 = vadd.f32 0.0, %v1382
        %1384 = vmatmul.bf16.gmra.mxu0 %v1080
        %v1385 = vpop.f32.mrf.mxu0
        %v1386 = vadd.f32 0.0, %v1385
        %v1387 = vpop.f32.mrf.mxu0
        %v1388 = vadd.f32 0.0, %v1387
        %1389 = vmatmul.bf16.gmra.mxu0 %v1082
        %v1390 = vpop.f32.mrf.mxu0
        %v1391 = vadd.f32 0.0, %v1390
        %v1392 = vpop.f32.mrf.mxu0
        %v1393 = vadd.f32 0.0, %v1392
        %1394 = vmatmul.bf16.gmra.mxu0 %v1084
        %v1395 = vpop.f32.mrf.mxu0
        %v1396 = vadd.f32 0.0, %v1395
        %v1397 = vpop.f32.mrf.mxu0
        %v1398 = vadd.f32 0.0, %v1397
        %1399 = vmatmul.bf16.gmra.mxu0 %v1086
        %v1400 = vpop.f32.mrf.mxu0
        %v1401 = vadd.f32 0.0, %v1400
        %v1402 = vpop.f32.mrf.mxu0
        %v1403 = vadd.f32 0.0, %v1402
        %1404 = vmatmul.bf16.gmra.mxu0 %v1088
        %v1405 = vpop.f32.mrf.mxu0
        %v1406 = vadd.f32 0.0, %v1405
        %v1407 = vpop.f32.mrf.mxu0
        %v1408 = vadd.f32 0.0, %v1407
        %1409 = vmatmul.bf16.gmra.mxu0 %v1090
        %v1410 = vpop.f32.mrf.mxu0
        %v1411 = vadd.f32 0.0, %v1410
        %v1412 = vpop.f32.mrf.mxu0
        %v1413 = vadd.f32 0.0, %v1412
        %1414 = vmatmul.bf16.gmra.mxu0 %v1092
        %v1415 = vpop.f32.mrf.mxu0
        %v1416 = vadd.f32 0.0, %v1415
        %v1417 = vpop.f32.mrf.mxu0
        %v1418 = vadd.f32 0.0, %v1417
        %1419 = vmatmul.bf16.gmra.mxu0 %v1074
        %v1420 = vpop.f32.mrf.mxu0
        %v1421 = vadd.f32 0.0, %v1420
        %v1422 = vpop.f32.mrf.mxu0
        %v1423 = vadd.f32 0.0, %v1422
        %1424 = vdwg.mxu0
        %v1425 = vadd.f32 %v1221, %v1336
        %v1426 = vadd.f32 %v1223, %v1338
        %v1427 = vadd.f32 %v1226, %v1341
        %v1428 = vadd.f32 %v1228, %v1343
        %v1429 = vadd.f32 %v1231, %v1346
        %v1430 = vadd.f32 %v1233, %v1348
        %v1431 = vadd.f32 %v1236, %v1351
        %v1432 = vadd.f32 %v1238, %v1353
        %v1433 = vadd.f32 %v1241, %v1356
        %v1434 = vadd.f32 %v1243, %v1358
        %v1435 = vadd.f32 %v1246, %v1361
        %v1436 = vadd.f32 %v1248, %v1363
        %v1437 = vadd.f32 %v1251, %v1366
        %v1438 = vadd.f32 %v1253, %v1368
        %v1439 = vadd.f32 %v1256, %v1371
        %v1440 = vadd.f32 %v1258, %v1373
        %v1441 = vadd.f32 %v1261, %v1376
        %v1442 = vadd.f32 %v1263, %v1378
        %v1443 = vadd.f32 %v1266, %v1381
        %v1444 = vadd.f32 %v1268, %v1383
        %v1445 = vadd.f32 %v1271, %v1386
        %v1446 = vadd.f32 %v1273, %v1388
        %v1447 = vadd.f32 %v1276, %v1391
        %v1448 = vadd.f32 %v1278, %v1393
        %v1449 = vadd.f32 %v1281, %v1396
        %v1450 = vadd.f32 %v1283, %v1398
        %v1451 = vadd.f32 %v1286, %v1401
        %v1452 = vadd.f32 %v1288, %v1403
        %v1453 = vadd.f32 %v1291, %v1406
        %v1454 = vadd.f32 %v1293, %v1408
        %v1455 = vadd.f32 %v1296, %v1411
        %v1456 = vadd.f32 %v1298, %v1413
        %v1457 = vadd.f32 %v1301, %v1416
        %v1458 = vadd.f32 %v1303, %v1418
        %v1459 = vadd.f32 %v1306, %v1421
        %v1460 = vadd.f32 %v1308, %v1423
        %v1461 = vld [vmem:[%s4] sm:$0x1]
        %v1463 = vperm.slane %v1461, 0
        %v1465 = vadd.f32 %v1425, %v1463
        %v1466 = vadd.f32 %v1426, %v1463
        %v1467 = vadd.f32 %v1427, %v1463
        %v1468 = vadd.f32 %v1428, %v1463
        %v1469 = vadd.f32 %v1429, %v1463
        %v1470 = vadd.f32 %v1430, %v1463
        %v1471 = vadd.f32 %v1431, %v1463
        %v1472 = vadd.f32 %v1432, %v1463
        %v1473 = vadd.f32 %v1433, %v1463
        %v1474 = vadd.f32 %v1434, %v1463
        %v1475 = vadd.f32 %v1435, %v1463
        %v1476 = vadd.f32 %v1436, %v1463
        %v1477 = vadd.f32 %v1437, %v1463
        %v1478 = vadd.f32 %v1438, %v1463
        %v1479 = vadd.f32 %v1439, %v1463
        %v1480 = vadd.f32 %v1440, %v1463
        %v1481 = vadd.f32 %v1441, %v1463
        %v1482 = vadd.f32 %v1442, %v1463
        %v1483 = vadd.f32 %v1443, %v1463
        %v1484 = vadd.f32 %v1444, %v1463
        %v1485 = vadd.f32 %v1445, %v1463
        %v1486 = vadd.f32 %v1446, %v1463
        %v1487 = vadd.f32 %v1447, %v1463
        %v1488 = vadd.f32 %v1448, %v1463
        %v1489 = vadd.f32 %v1449, %v1463
        %v1490 = vadd.f32 %v1450, %v1463
        %v1491 = vadd.f32 %v1451, %v1463
        %v1492 = vadd.f32 %v1452, %v1463
        %v1493 = vadd.f32 %v1453, %v1463
        %v1494 = vadd.f32 %v1454, %v1463
        %v1495 = vadd.f32 %v1455, %v1463
        %v1496 = vadd.f32 %v1456, %v1463
        %v1497 = vadd.f32 %v1457, %v1463
        %v1498 = vadd.f32 %v1458, %v1463
        %v1499 = vadd.f32 %v1459, %v1463
        %v1500 = vadd.f32 %v1460, %v1463
        %v1501 = vmax.f32 %v1465, 0.0
        %v1502 = vmax.f32 %v1466, 0.0
        %v1503 = vmax.f32 %v1467, 0.0
        %v1504 = vmax.f32 %v1468, 0.0
        %v1505 = vmax.f32 %v1469, 0.0
        %v1506 = vmax.f32 %v1470, 0.0
        %v1507 = vmax.f32 %v1471, 0.0
        %v1508 = vmax.f32 %v1472, 0.0
        %v1509 = vmax.f32 %v1473, 0.0
        %v1510 = vmax.f32 %v1474, 0.0
        %v1511 = vmax.f32 %v1475, 0.0
        %v1512 = vmax.f32 %v1476, 0.0
        %v1513 = vmax.f32 %v1477, 0.0
        %v1514 = vmax.f32 %v1478, 0.0
        %v1515 = vmax.f32 %v1479, 0.0
        %v1516 = vmax.f32 %v1480, 0.0
        %v1517 = vmax.f32 %v1481, 0.0
        %v1518 = vmax.f32 %v1482, 0.0
        %v1519 = vmax.f32 %v1483, 0.0
        %v1520 = vmax.f32 %v1484, 0.0
        %v1521 = vmax.f32 %v1485, 0.0
        %v1522 = vmax.f32 %v1486, 0.0
        %v1523 = vmax.f32 %v1487, 0.0
        %v1524 = vmax.f32 %v1488, 0.0
        %v1525 = vmax.f32 %v1489, 0.0
        %v1526 = vmax.f32 %v1490, 0.0
        %v1527 = vmax.f32 %v1491, 0.0
        %v1528 = vmax.f32 %v1492, 0.0
        %v1529 = vmax.f32 %v1493, 0.0
        %v1530 = vmax.f32 %v1494, 0.0
        %v1531 = vmax.f32 %v1495, 0.0
        %v1532 = vmax.f32 %v1496, 0.0
        %v1533 = vmax.f32 %v1497, 0.0
        %v1534 = vmax.f32 %v1498, 0.0
        %v1535 = vmax.f32 %v1499, 0.0
        %v1536 = vmax.f32 %v1500, 0.0
        %v1537 = vpack.c.bf16 %v1502, %v1501
        %v1538 = vpack.c.bf16 %v1504, %v1503
        %v1539 = vpack.c.bf16 %v1506, %v1505
        %v1540 = vpack.c.bf16 %v1508, %v1507
        %v1541 = vpack.c.bf16 %v1510, %v1509
        %v1542 = vpack.c.bf16 %v1512, %v1511
        %v1543 = vpack.c.bf16 %v1514, %v1513
        %v1544 = vpack.c.bf16 %v1516, %v1515
        %v1545 = vpack.c.bf16 %v1518, %v1517
        %v1546 = vpack.c.bf16 %v1520, %v1519
        %v1547 = vpack.c.bf16 %v1522, %v1521
        %v1548 = vpack.c.bf16 %v1524, %v1523
        %v1549 = vpack.c.bf16 %v1526, %v1525
        %v1550 = vpack.c.bf16 %v1528, %v1527
        %v1551 = vpack.c.bf16 %v1530, %v1529
        %v1552 = vpack.c.bf16 %v1532, %v1531
        %v1553 = vpack.c.bf16 %v1534, %v1533
        %v1554 = vpack.c.bf16 %v1536, %v1535
        %v1555 = vld [vmem:[%s5] sm:$0xf]
        %v1556 = vld [vmem:[%s6] sm:$0x1]
        %v1558 = vperm.slane %v1556, 0
        %v1561 = vsel %vm951, %v1537, 0
        %v1564 = vsel %vm951, %v1538, 0
        %v1567 = vsel %vm951, %v1539, 0
        %v1570 = vsel %vm951, %v1540, 0
        %v1573 = vsel %vm951, %v1541, 0
        %v1576 = vsel %vm951, %v1542, 0
        %v1579 = vsel %vm951, %v1543, 0
        %v1582 = vsel %vm951, %v1544, 0
        %v1585 = vsel %vm951, %v1545, 0
        %v1588 = vsel %vm951, %v1546, 0
        %v1591 = vsel %vm951, %v1547, 0
        %v1594 = vsel %vm951, %v1548, 0
        %v1597 = vsel %vm951, %v1549, 0
        %v1600 = vsel %vm951, %v1550, 0
        %v1603 = vsel %vm951, %v1551, 0
        %v1606 = vsel %vm951, %v1552, 0
        %v1609 = vsel %vm951, %v1553, 0
        %v1612 = vsel %vm951, %v1554, 0
        %v1615 = vsel %vm1094, %v1555, 0
        %1617 = vmatpush.bf16.msra.mxu0 0
        %1618 = vmatpush.bf16.msra.mxu0 0
        %1619 = vmatpush.bf16.msra.mxu0 0
        %1620 = vmatpush.bf16.msra.mxu0 0
        %1621 = vmatpush.bf16.msra.mxu0 0
        %1622 = vmatpush.bf16.msra.mxu0 0
        %1623 = vmatpush.bf16.msra.mxu0 0
        %1624 = vmatpush.bf16.msra.mxu0 %v1615
        %1625 = vmatmul.bf16.gmra.mxu0 %v1561
        %v1626 = vpop.f32.mrf.mxu0
        %v1627 = vadd.f32 %v1558, %v1626
        %v1628 = vpop.f32.mrf.mxu0
        %1629 = vmatmul.bf16.gmra.mxu0 %v1564
        %v1630 = vpop.f32.mrf.mxu0
        %v1631 = vadd.f32 %v1558, %v1630
        %v1632 = vpop.f32.mrf.mxu0
        %1633 = vmatmul.bf16.gmra.mxu0 %v1567
        %v1634 = vpop.f32.mrf.mxu0
        %v1635 = vadd.f32 %v1558, %v1634
        %v1636 = vpop.f32.mrf.mxu0
        %1637 = vmatmul.bf16.gmra.mxu0 %v1570
        %v1638 = vpop.f32.mrf.mxu0
        %v1639 = vadd.f32 %v1558, %v1638
        %v1640 = vpop.f32.mrf.mxu0
        %1641 = vmatmul.bf16.gmra.mxu0 %v1573
        %v1642 = vpop.f32.mrf.mxu0
        %v1643 = vadd.f32 %v1558, %v1642
        %v1644 = vpop.f32.mrf.mxu0
        %1645 = vmatmul.bf16.gmra.mxu0 %v1576
        %v1646 = vpop.f32.mrf.mxu0
        %v1647 = vadd.f32 %v1558, %v1646
        %v1648 = vpop.f32.mrf.mxu0
        %1649 = vmatmul.bf16.gmra.mxu0 %v1579
        %v1650 = vpop.f32.mrf.mxu0
        %v1651 = vadd.f32 %v1558, %v1650
        %v1652 = vpop.f32.mrf.mxu0
        %1653 = vmatmul.bf16.gmra.mxu0 %v1582
        %v1654 = vpop.f32.mrf.mxu0
        %v1655 = vadd.f32 %v1558, %v1654
        %v1656 = vpop.f32.mrf.mxu0
        %1657 = vmatmul.bf16.gmra.mxu0 %v1585
        %v1658 = vpop.f32.mrf.mxu0
        %v1659 = vpop.f32.mrf.mxu0
        %1660 = vmatmul.bf16.gmra.mxu0 %v1588
        %v1661 = vpop.f32.mrf.mxu0
        %v1662 = vpop.f32.mrf.mxu0
        %1663 = vmatmul.bf16.gmra.mxu0 %v1591
        %v1664 = vpop.f32.mrf.mxu0
        %v1665 = vadd.f32 %v1558, %v1664
        %v1666 = vpop.f32.mrf.mxu0
        %1667 = vmatmul.bf16.gmra.mxu0 %v1594
        %v1668 = vpop.f32.mrf.mxu0
        %v1669 = vadd.f32 %v1558, %v1668
        %v1670 = vpop.f32.mrf.mxu0
        %1671 = vmatmul.bf16.gmra.mxu0 %v1597
        %v1672 = vpop.f32.mrf.mxu0
        %v1673 = vadd.f32 %v1558, %v1672
        %v1674 = vpop.f32.mrf.mxu0
        %1675 = vmatmul.bf16.gmra.mxu0 %v1600
        %v1676 = vpop.f32.mrf.mxu0
        %v1677 = vadd.f32 %v1558, %v1676
        %v1678 = vpop.f32.mrf.mxu0
        %1679 = vmatmul.bf16.gmra.mxu0 %v1603
        %v1680 = vpop.f32.mrf.mxu0
        %v1681 = vadd.f32 %v1558, %v1680
        %v1682 = vpop.f32.mrf.mxu0
        %1683 = vmatmul.bf16.gmra.mxu0 %v1606
        %v1684 = vpop.f32.mrf.mxu0
        %v1685 = vadd.f32 %v1558, %v1684
        %v1686 = vpop.f32.mrf.mxu0
        %1687 = vmatmul.bf16.gmra.mxu0 %v1609
        %v1688 = vpop.f32.mrf.mxu0
        %v1689 = vadd.f32 %v1558, %v1688
        %v1690 = vpop.f32.mrf.mxu0
        %1691 = vmatmul.bf16.gmra.mxu0 %v1612
        %v1692 = vpop.f32.mrf.mxu0
        %v1693 = vadd.f32 %v1558, %v1692
        %v1694 = vpop.f32.mrf.mxu0
        %1695 = vdwg.mxu0
        %v1696 = vadd.f32 %v1627, %v303
        %v1697 = vadd.f32 %v1631, %v304
        %v1698 = vadd.f32 %v1635, %v305
        %v1699 = vadd.f32 %v1639, %v306
        %v1700 = vadd.f32 %v1643, %v307
        %v1701 = vadd.f32 %v1647, %v308
        %v1702 = vadd.f32 %v1651, %v309
        %v1703 = vadd.f32 %v1655, %v310
        %v1704 = vmax.f32 %v1696, 0.0
        %v1705 = vmax.f32 %v1697, 0.0
        %v1706 = vmax.f32 %v1698, 0.0
        %v1707 = vmax.f32 %v1699, 0.0
        %v1708 = vmax.f32 %v1700, 0.0
        %v1709 = vmax.f32 %v1701, 0.0
        %v1710 = vmax.f32 %v1702, 0.0
        %v1711 = vmax.f32 %v1703, 0.0
        %1712 = vst.msk [vmem:[%s299] sm:$0xff] %vm387, %v1704
        %1713 = vst.msk [vmem:[%s299 + $0x8] sm:$0xff] %vm387, %v1705
        %1714 = vst.msk [vmem:[%s299 + $0x10] sm:$0xff] %vm387, %v1706
        %1715 = vst.msk [vmem:[%s299 + $0x18] sm:$0xff] %vm387, %v1707
        %1716 = vst.msk [vmem:[%s299 + $0x20] sm:$0xff] %vm387, %v1708
        %1717 = vst.msk [vmem:[%s299 + $0x28] sm:$0xff] %vm387, %v1709
        %1718 = vst.msk [vmem:[%s299 + $0x30] sm:$0xff] %vm387, %v1710
        %1719 = vst.msk [vmem:[%s299 + $0x38] sm:$0xff] %vm387, %v1711
        %v1720 = vadd.f32 %v1665, %v311
        %v1721 = vadd.f32 %v1669, %v312
        %v1722 = vadd.f32 %v1673, %v313
        %v1723 = vadd.f32 %v1677, %v314
        %v1724 = vadd.f32 %v1681, %v315
        %v1725 = vadd.f32 %v1685, %v316
        %v1726 = vadd.f32 %v1689, %v317
        %v1727 = vadd.f32 %v1693, %v318
        %v1728 = vmax.f32 %v1720, 0.0
        %v1729 = vmax.f32 %v1721, 0.0
        %v1730 = vmax.f32 %v1722, 0.0
        %v1731 = vmax.f32 %v1723, 0.0
        %v1732 = vmax.f32 %v1724, 0.0
        %v1733 = vmax.f32 %v1725, 0.0
        %v1734 = vmax.f32 %v1726, 0.0
        %v1735 = vmax.f32 %v1727, 0.0
        %s1736 = scalar_lea.vmem %s299, 64 [#allocation5]
        %1737 = vst.msk [vmem:[%s1736] sm:$0xff] %vm387, %v1728
        %1738 = vst.msk [vmem:[%s1736 + $0x8] sm:$0xff] %vm387, %v1729
        %1739 = vst.msk [vmem:[%s1736 + $0x10] sm:$0xff] %vm387, %v1730
        %1740 = vst.msk [vmem:[%s1736 + $0x18] sm:$0xff] %vm387, %v1731
        %1741 = vst.msk [vmem:[%s1736 + $0x20] sm:$0xff] %vm387, %v1732
        %1742 = vst.msk [vmem:[%s1736 + $0x28] sm:$0xff] %vm387, %v1733
        %1743 = vst.msk [vmem:[%s1736 + $0x30] sm:$0xff] %vm387, %v1734
        %1744 = vst.msk [vmem:[%s1736 + $0x38] sm:$0xff] %vm387, %v1735
        %s1745 = sand.u32 %s184, 1
        %s1746 = scalar_lea.sflag [#allocation4], %s1745
        %s1747 = sand.u32 %s184, 1
        %s1748 = smul.addr %s1747, 128
        %s1749 = scalar_lea.vmem [#allocation5], %s1748
        // Predicated region
        $region53: #{tpu_custom_call.1} parent=47 // pred_check
          %p1750 = pneg %p194
        $region54: #{tpu_custom_call.1} parent=47 // pred_check_branch
          %1752 = sbr.rel (%p1750) target = $region56
        $region55: #{tpu_custom_call.1} parent=47 // pred_region
          %s1753 = smul.u32 2, %s24
          %1755 = vsyncadd %s1746, 0
          %s1756 = smul.addr %s1753, 8
          %s1757 = smul.addr %s1756, 8
          %s1758 = scalar_lea.hbm %s7, %s1757
          %s1759 = sshll.u32 %s1749, 4
          %s1760 = int_to_ptr.vmem [resolvable:$true] %s1759
          %s1761 = sshll.u32 %s1758, 4
          %s1762 = int_to_ptr.hbm [resolvable:$true] %s1761
          %1767 = dma.vmem_to_hbm [thread:$0]  %s1760, 2048, %s1762, %s1746, 128, 128, 8
        $region56: #{tpu_custom_call.1} parent=47 // pred_fallthru
          _
      $region48: #{tpu_custom_call.1} parent=5 // pred_fallthru
        _
      %p1768 = scmp.le.s32.totalorder 2, %s19
      // Predicated region
      $region57: #{tpu_custom_call.1} parent=5 // pred_check
        %p1769 = pneg %p1768
      $region58: #{tpu_custom_call.1} parent=5 // pred_check_branch
        %1771 = sbr.rel (%p1769) target = $region60
      $region59: #{tpu_custom_call.1} parent=5 // pred_region
        %s1772 = ssub.s32 %s19, 2
        // Predicated region
        $region61: #{tpu_custom_call.1} parent=59 // pred_check
          %p1773 = pneg %p200
        $region62: #{tpu_custom_call.1} parent=59 // pred_check_branch
          %1775 = sbr.rel (%p1773) target = $region64
        $region63: #{tpu_custom_call.1} parent=59 // pred_region
          %s1776 = sand.u32 %s185, 1
          %s1777 = scalar_lea.sflag [#allocation4], %s1776
          %s1778 = sand.u32 %s185, 1
          %s1779 = smul.addr %s1778, 128
          %s1780 = scalar_lea.vmem [#allocation5], %s1779
          %1782 = dma.done %s1777, 2048
        $region64: #{tpu_custom_call.1} parent=59 // pred_fallthru
          _
      $region60: #{tpu_custom_call.1} parent=5 // pred_fallthru
        _
    $region6: #{tpu_custom_call.1} parent=1 // loop_footer
      %s23 = sadd.s32 1, %s19
    $region7: #{tpu_custom_call.1} parent=1 // loop_footer_branch
      %18 = sbr.rel target = $region3
    $region8: #{tpu_custom_call.1} parent=1 // loop_exit
      _
    %1783 = vsyncpa [#allocation3], 1
    %s1784 = scalar_lea.sflag [#allocation3], 1
    %1785 = vsyncpa %s1784, 1
    %1786 = vsyncpa [#allocation4], 1
    %s1787 = scalar_lea.sflag [#allocation4], 1
    %1788 = vsyncpa %s1787, 1

// kernel: tpu_custom_call.1
$region0: #{tpu_custom_call.1}
  #allocation0 [shape = 'u32[]', space=smem, size = 0x4, offset = 0x4, fixed_abs, tag = 'smem constant byte address 0x4 - core index']
  #allocation1 [shape = 'u32[72,128]{1,0:T(1,128)}', space=vmem, size = 0x9000, scoped, tag = 'internal scratch']
  %s0 = inlined_call_operand.hbm [shape: f32[4,8,8,16], index: 0, kind: input, shape index: {}]
  %s1 = inlined_call_operand.vmem [shape: bf16[16,8], index: 1, kind: input, shape index: {}]
  %s2 = inlined_call_operand.vmem [shape: f32[1,8], index: 2, kind: input, shape index: {}]
  %s3 = inlined_call_operand.vmem [shape: bf16[3,24,8], index: 3, kind: input, shape index: {}]
  %s4 = inlined_call_operand.vmem [shape: f32[1,8], index: 4, kind: input, shape index: {}]
  %s5 = inlined_call_operand.vmem [shape: bf16[8,16], index: 5, kind: input, shape index: {}]
  %s6 = inlined_call_operand.vmem [shape: f32[1,16], index: 6, kind: input, shape index: {}]
  %s7 = inlined_call_operand.hbm [shape: f32[4,8,8,16], index: 7, kind: output, shape index: {}]
  %s8 = sld [smem:[#allocation0]]
  $region65: #{tpu_custom_call.1} parent=0
    _
  %s10 = ssub.s32 1, %s8
  %s11 = scalar_select 0, %s10, %s8
  $region1: #{tpu_custom_call.1} parent=0
    #allocation2 [shape = 'u8[131072]{0}', space=vmem, size = 0x20000, scoped, tag = 'input window, operand 0']
    #allocation3 [shape = 's32[2]{0}', space=sflag, size = 0x8, scoped, tag = 'scoped memory for tpu_custom_call.1']
    #allocation4 [shape = 's32[2]{0}', space=sflag, size = 0x8, scoped, tag = 'scoped memory for tpu_custom_call.1']
    #allocation5 [shape = 'u8[131072]{0}', space=vmem, size = 0x20000, scoped, tag = 'output window, operand 0']
    %12 = vsyncpa [#allocation3], 0
    %s13 = scalar_lea.sflag [#allocation3], 1
    %14 = vsyncpa %s13, 0
    %15 = vsyncpa [#allocation4], 0
    %s16 = scalar_lea.sflag [#allocation4], 1
    %17 = vsyncpa %s16, 0
    loop: start=0, step=1, limit=4
    $region2: #{tpu_custom_call.1} parent=1 // loop_pre_header
      _
    $region3: #{tpu_custom_call.1} parent=1 // loop_header
      %s19 = sphi 0, %s23
      %p20 = scmp.ge.s32.totalorder %s19, 4
      %s29 = sphi 0, %s31
      %s32 = sphi 0, %s29
      %s33 = sphi 0, %s32
      %s49 = sphi 0, %s33
      %s53 = sphi 0, %s53
      %s55 = sphi 0, %s53
      %s56 = sphi 0, %s55
      %s70 = sphi 0, %s56
      %s74 = sphi 0, %s74
      %s76 = sphi 0, %s74
      %s77 = sphi 0, %s76
      %s91 = sphi 0, %s77
      %s95 = sphi 0, %s95
      %s97 = sphi 0, %s95
      %s98 = sphi 0, %s97
      %s112 = sphi 0, %s98
      %s116 = sphi 0, %s116
      %s118 = sphi 0, %s116
      %s119 = sphi 0, %s118
      %s133 = sphi 0, %s119
      %s137 = sphi 0, %s137
      %s139 = sphi 0, %s137
      %s140 = sphi 0, %s139
      %s154 = sphi 0, %s140
      %s158 = sphi 0, %s158
      %s160 = sphi 0, %s158
      %s161 = sphi 0, %s160
      %s175 = sphi 0, %s161
      %s181 = sphi 0, %s183
      %s184 = sphi 0, %s181
      %s185 = sphi 0, %s184
      %s201 = sphi 0, %s185
    $region4: #{tpu_custom_call.1} parent=1 // loop_header_branch
      %22 = sbr.rel (%p20) target = $region8
    $region5: #{tpu_custom_call.1} parent=1 // loop_body
      %s24 = ssub.s32 %s19, 1
      %s25 = ssub.s32 %s19, 2
      %s26 = sadd.s32 %s19, 1
      %s27 = ssub.s32 %s19, %s26
      %p28 = scmp.eq.s32.totalorder %s27, 0
      %s30 = sadd.s32 %s29, 1
      %s31 = scalar_select %p28, %s29, %s30
      %p34 = pneg %p28
      %p35 = scmp.eq.s32.totalorder %s19, 1
      %p36 = por %p34, %p35
      %p37 = scmp.ne.s32.totalorder %s29, %s32
      %p38 = scmp.eq.s32.totalorder %s19, 0
      %p39 = por %p37, %p38
      %p40 = scmp.ne.s32.totalorder %s29, %s32
      %p41 = scmp.eq.s32.totalorder %s24, 1
      %p42 = por %p40, %p41
      %p43 = scmp.ne.s32.totalorder %s32, %s33
      %p44 = scmp.eq.s32.totalorder %s24, 0
      %p45 = por %p43, %p44
      %p46 = scmp.ne.s32.totalorder %s32, %s33
      %p47 = scmp.eq.s32.totalorder %s25, 1
      %p48 = por %p46, %p47
      %p50 = scmp.ne.s32.totalorder %s33, %s49
      %p51 = scmp.eq.s32.totalorder %s25, 0
      %p52 = por %p50, %p51
      %s54 = sadd.s32 %s53, 1
      %p57 = scmp.eq.s32.totalorder %s19, 1
      %p58 = scmp.ne.s32.totalorder %s53, %s55
      %p59 = scmp.eq.s32.totalorder %s19, 0
      %p60 = por %p58, %p59
      %p61 = scmp.ne.s32.totalorder %s53, %s55
      %p62 = scmp.eq.s32.totalorder %s24, 1
      %p63 = por %p61, %p62
      %p64 = scmp.ne.s32.totalorder %s55, %s56
      %p65 = scmp.eq.s32.totalorder %s24, 0
      %p66 = por %p64, %p65
      %p67 = scmp.ne.s32.totalorder %s55, %s56
      %p68 = scmp.eq.s32.totalorder %s25, 1
      %p69 = por %p67, %p68
      %p71 = scmp.ne.s32.totalorder %s56, %s70
      %p72 = scmp.eq.s32.totalorder %s25, 0
      %p73 = por %p71, %p72
      %s75 = sadd.s32 %s74, 1
      %p78 = scmp.eq.s32.totalorder %s19, 1
      %p79 = scmp.ne.s32.totalorder %s74, %s76
      %p80 = scmp.eq.s32.totalorder %s19, 0
      %p81 = por %p79, %p80
      %p82 = scmp.ne.s32.totalorder %s74, %s76
      %p83 = scmp.eq.s32.totalorder %s24, 1
      %p84 = por %p82, %p83
      %p85 = scmp.ne.s32.totalorder %s76, %s77
      %p86 = scmp.eq.s32.totalorder %s24, 0
      %p87 = por %p85, %p86
      %p88 = scmp.ne.s32.totalorder %s76, %s77
      %p89 = scmp.eq.s32.totalorder %s25, 1
      %p90 = por %p88, %p89
      %p92 = scmp.ne.s32.totalorder %s77, %s91
      %p93 = scmp.eq.s32.totalorder %s25, 0
      %p94 = por %p92, %p93
      %s96 = sadd.s32 %s95, 1
      %p99 = scmp.eq.s32.totalorder %s19, 1
      %p100 = scmp.ne.s32.totalorder %s95, %s97
      %p101 = scmp.eq.s32.totalorder %s19, 0
      %p102 = por %p100, %p101
      %p103 = scmp.ne.s32.totalorder %s95, %s97
      %p104 = scmp.eq.s32.totalorder %s24, 1
      %p105 = por %p103, %p104
      %p106 = scmp.ne.s32.totalorder %s97, %s98
      %p107 = scmp.eq.s32.totalorder %s24, 0
      %p108 = por %p106, %p107
      %p109 = scmp.ne.s32.totalorder %s97, %s98
      %p110 = scmp.eq.s32.totalorder %s25, 1
      %p111 = por %p109, %p110
      %p113 = scmp.ne.s32.totalorder %s98, %s112
      %p114 = scmp.eq.s32.totalorder %s25, 0
      %p115 = por %p113, %p114
      %s117 = sadd.s32 %s116, 1
      %p120 = scmp.eq.s32.totalorder %s19, 1
      %p121 = scmp.ne.s32.totalorder %s116, %s118
      %p122 = scmp.eq.s32.totalorder %s19, 0
      %p123 = por %p121, %p122
      %p124 = scmp.ne.s32.totalorder %s116, %s118
      %p125 = scmp.eq.s32.totalorder %s24, 1
      %p126 = por %p124, %p125
      %p127 = scmp.ne.s32.totalorder %s118, %s119
      %p128 = scmp.eq.s32.totalorder %s24, 0
      %p129 = por %p127, %p128
      %p130 = scmp.ne.s32.totalorder %s118, %s119
      %p131 = scmp.eq.s32.totalorder %s25, 1
      %p132 = por %p130, %p131
      %p134 = scmp.ne.s32.totalorder %s119, %s133
      %p135 = scmp.eq.s32.totalorder %s25, 0
      %p136 = por %p134, %p135
      %s138 = sadd.s32 %s137, 1
      %p141 = scmp.eq.s32.totalorder %s19, 1
      %p142 = scmp.ne.s32.totalorder %s137, %s139
      %p143 = scmp.eq.s32.totalorder %s19, 0
      %p144 = por %p142, %p143
      %p145 = scmp.ne.s32.totalorder %s137, %s139
      %p146 = scmp.eq.s32.totalorder %s24, 1
      %p147 = por %p145, %p146
      %p148 = scmp.ne.s32.totalorder %s139, %s140
      %p149 = scmp.eq.s32.totalorder %s24, 0
      %p150 = por %p148, %p149
      %p151 = scmp.ne.s32.totalorder %s139, %s140
      %p152 = scmp.eq.s32.totalorder %s25, 1
      %p153 = por %p151, %p152
      %p155 = scmp.ne.s32.totalorder %s140, %s154
      %p156 = scmp.eq.s32.totalorder %s25, 0
      %p157 = por %p155, %p156
      %s159 = sadd.s32 %s158, 1
      %p162 = scmp.eq.s32.totalorder %s19, 1
      %p163 = scmp.ne.s32.totalorder %s158, %s160
      %p164 = scmp.eq.s32.totalorder %s19, 0
      %p165 = por %p163, %p164
      %p166 = scmp.ne.s32.totalorder %s158, %s160
      %p167 = scmp.eq.s32.totalorder %s24, 1
      %p168 = por %p166, %p167
      %p169 = scmp.ne.s32.totalorder %s160, %s161
      %p170 = scmp.eq.s32.totalorder %s24, 0
      %p171 = por %p169, %p170
      %p172 = scmp.ne.s32.totalorder %s160, %s161
      %p173 = scmp.eq.s32.totalorder %s25, 1
      %p174 = por %p172, %p173
      %p176 = scmp.ne.s32.totalorder %s161, %s175
      %p177 = scmp.eq.s32.totalorder %s25, 0
      %p178 = por %p176, %p177
      %s179 = ssub.s32 %s19, %s26
      %p180 = scmp.eq.s32.totalorder %s179, 0
      %s182 = sadd.s32 %s181, 1
      %s183 = scalar_select %p180, %s181, %s182
      %p186 = pneg %p180
      %p187 = scmp.eq.s32.totalorder %s19, 1
      %p188 = por %p186, %p187
      %p189 = scmp.ne.s32.totalorder %s181, %s184
      %p190 = scmp.eq.s32.totalorder %s19, 0
      %p191 = por %p189, %p190
      %p192 = scmp.ne.s32.totalorder %s181, %s184
      %p193 = scmp.eq.s32.totalorder %s24, 1
      %p194 = por %p192, %p193
      %p195 = scmp.ne.s32.totalorder %s184, %s185
      %p196 = scmp.eq.s32.totalorder %s24, 0
      %p197 = por %p195, %p196
      %p198 = scmp.ne.s32.totalorder %s184, %s185
      %p199 = scmp.eq.s32.totalorder %s25, 1
      %p200 = por %p198, %p199
      %p202 = scmp.ne.s32.totalorder %s185, %s201
      %p203 = scmp.eq.s32.totalorder %s25, 0
      %p204 = por %p202, %p203
      %p205 = scmp.le.s32.totalorder 1, %s19
      %p206 = scmp.lt.s32.totalorder %s19, 3
      %p207 = pnand %p205, %p206
      %p208 = pneg %p207
      // Predicated region
      $region9: #{tpu_custom_call.1} parent=5 // pred_check
        _
      $region10: #{tpu_custom_call.1} parent=5 // pred_check_branch
        %210 = sbr.rel (%p207) target = $region12
      $region11: #{tpu_custom_call.1} parent=5 // pred_region
        %s211 = ssub.s32 %s19, 1
        // Predicated region
        $region13: #{tpu_custom_call.1} parent=11 // pred_check
          %p212 = pneg %p66
        $region14: #{tpu_custom_call.1} parent=11 // pred_check_branch
          %214 = sbr.rel (%p212) target = $region16
        $region15: #{tpu_custom_call.1} parent=11 // pred_region
          _
        $region16: #{tpu_custom_call.1} parent=11 // pred_fallthru
          _
        // Predicated region
        $region17: #{tpu_custom_call.1} parent=11 // pred_check
          %p215 = pneg %p87
        $region18: #{tpu_custom_call.1} parent=11 // pred_check_branch
          %217 = sbr.rel (%p215) target = $region20
        $region19: #{tpu_custom_call.1} parent=11 // pred_region
          _
        $region20: #{tpu_custom_call.1} parent=11 // pred_fallthru
          _
        // Predicated region
        $region21: #{tpu_custom_call.1} parent=11 // pred_check
          %p218 = pneg %p108
        $region22: #{tpu_custom_call.1} parent=11 // pred_check_branch
          %220 = sbr.rel (%p218) target = $region24
        $region23: #{tpu_custom_call.1} parent=11 // pred_region
          _
        $region24: #{tpu_custom_call.1} parent=11 // pred_fallthru
          _
        // Predicated region
        $region25: #{tpu_custom_call.1} parent=11 // pred_check
          %p221 = pneg %p129
        $region26: #{tpu_custom_call.1} parent=11 // pred_check_branch
          %223 = sbr.rel (%p221) target = $region28
        $region27: #{tpu_custom_call.1} parent=11 // pred_region
          _
        $region28: #{tpu_custom_call.1} parent=11 // pred_fallthru
          _
        // Predicated region
        $region29: #{tpu_custom_call.1} parent=11 // pred_check
          %p224 = pneg %p150
        $region30: #{tpu_custom_call.1} parent=11 // pred_check_branch
          %226 = sbr.rel (%p224) target = $region32
        $region31: #{tpu_custom_call.1} parent=11 // pred_region
          _
        $region32: #{tpu_custom_call.1} parent=11 // pred_fallthru
          _
        // Predicated region
        $region33: #{tpu_custom_call.1} parent=11 // pred_check
          %p227 = pneg %p171
        $region34: #{tpu_custom_call.1} parent=11 // pred_check_branch
          %229 = sbr.rel (%p227) target = $region36
        $region35: #{tpu_custom_call.1} parent=11 // pred_region
          _
        $region36: #{tpu_custom_call.1} parent=11 // pred_fallthru
          _
      $region12: #{tpu_custom_call.1} parent=5 // pred_fallthru
        _
      %p230 = scmp.lt.s32.totalorder %s19, 2
      // Predicated region
      $region37: #{tpu_custom_call.1} parent=5 // pred_check
        %p231 = pneg %p230
      $region38: #{tpu_custom_call.1} parent=5 // pred_check_branch
        %233 = sbr.rel (%p231) target = $region40
      $region39: #{tpu_custom_call.1} parent=5 // pred_region
        // Predicated region
        $region41: #{tpu_custom_call.1} parent=39 // pred_check
          %p234 = pneg %p39
        $region42: #{tpu_custom_call.1} parent=39 // pred_check_branch
          %236 = sbr.rel (%p234) target = $region44
        $region43: #{tpu_custom_call.1} parent=39 // pred_region
          %s237 = sand.u32 %s29, 1
          %s238 = scalar_lea.sflag [#allocation3], %s237
          %s239 = sand.u32 %s29, 1
          %s240 = smul.addr %s239, 128
          %s241 = scalar_lea.vmem [#allocation2], %s240
          %s242 = smul.u32 2, %s19
          %244 = vsyncadd %s238, 0
          %s245 = smul.addr %s242, 8
          %s246 = smul.addr %s245, 8
          %s247 = scalar_lea.hbm %s0, %s246
          %s248 = sshll.u32 %s247, 4
          %s249 = int_to_ptr.hbm [resolvable:$true] %s248
          %s250 = sshll.u32 %s241, 4
          %s251 = int_to_ptr.vmem [resolvable:$true] %s250
          %256 = dma.hbm_to_vmem [thread:$0]  %s249, 2048, %s251, %s238, 128, 128, 8
        $region44: #{tpu_custom_call.1} parent=39 // pred_fallthru
          _
      $region40: #{tpu_custom_call.1} parent=5 // pred_fallthru
        _
      %p257 = scmp.le.s32.totalorder 1, %s19
      %p258 = scmp.lt.s32.totalorder %s19, 3
      %p259 = pnand %p257, %p258
      %p260 = pneg %p259
      // Predicated region
      $region45: #{tpu_custom_call.1} parent=5 // pred_check
        _
      $region46: #{tpu_custom_call.1} parent=5 // pred_check_branch
        %262 = sbr.rel (%p259) target = $region48
      $region47: #{tpu_custom_call.1} parent=5 // pred_region
        %s263 = ssub.s32 %s19, 1
        %s264 = sand.u32 %s32, 1
        %s265 = scalar_lea.sflag [#allocation3], %s264
        %s266 = sand.u32 %s32, 1
        %s267 = smul.addr %s266, 128
        %s268 = scalar_lea.vmem [#allocation2], %s267
        // Predicated region
        $region49: #{tpu_custom_call.1} parent=47 // pred_check
          %p269 = pneg %p45
        $region50: #{tpu_custom_call.1} parent=47 // pred_check_branch
          %271 = sbr.rel (%p269) target = $region52
        $region51: #{tpu_custom_call.1} parent=47 // pred_region
          %273 = dma.done %s265, 2048
        $region52: #{tpu_custom_call.1} parent=47 // pred_fallthru
          _
        %s274 = sand.u32 %s32, 1
        %s275 = scalar_lea.sflag [#allocation3], %s274
        %s276 = sand.u32 %s32, 1
        %s277 = smul.addr %s276, 128
        %s278 = scalar_lea.vmem [#allocation2], %s277
        %p279 = pneg %p45
        %p280 = pneg %p42
        %p281 = pneg %p66
        %p282 = pneg %p63
        %p283 = pneg %p87
        %p284 = pneg %p84
        %p285 = pneg %p108
        %p286 = pneg %p105
        %p287 = pneg %p129
        %p288 = pneg %p126
        %p289 = pneg %p150
        %p290 = pneg %p147
        %p291 = pneg %p171
        %p292 = pneg %p168
        %p293 = pneg %p197
        %p294 = pneg %p194
        %s295 = sand.u32 %s184, 1
        %s296 = scalar_lea.sflag [#allocation4], %s295
        %s297 = sand.u32 %s184, 1
        %s298 = smul.addr %s297, 128
        %s299 = scalar_lea.vmem [#allocation5], %s298
        %s300 = smul.u32 2, %s24
        %s301 = smul.u32 2, %s24
        %v303 = vld [vmem:[%s268] sm:$0xff]
        %v304 = vld [vmem:[%s268 + $0x8] sm:$0xff]
        %v305 = vld [vmem:[%s268 + $0x10] sm:$0xff]
        %v306 = vld [vmem:[%s268 + $0x18] sm:$0xff]
        %v307 = vld [vmem:[%s268 + $0x20] sm:$0xff]
        %v308 = vld [vmem:[%s268 + $0x28] sm:$0xff]
        %v309 = vld [vmem:[%s268 + $0x30] sm:$0xff]
        %v310 = vld [vmem:[%s268 + $0x38] sm:$0xff]
        %v311 = vld [vmem:[%s268 + $0x40] sm:$0xff]
        %v312 = vld [vmem:[%s268 + $0x48] sm:$0xff]
        %v313 = vld [vmem:[%s268 + $0x50] sm:$0xff]
        %v314 = vld [vmem:[%s268 + $0x58] sm:$0xff]
        %v315 = vld [vmem:[%s268 + $0x60] sm:$0xff]
        %v316 = vld [vmem:[%s268 + $0x68] sm:$0xff]
        %v317 = vld [vmem:[%s268 + $0x70] sm:$0xff]
        %v318 = vld [vmem:[%s268 + $0x78] sm:$0xff]
        %v319 = vpack.c.bf16 %v303, %v303
        %v320 = vpack.c.bf16 %v304, %v304
        %v321 = vpack.c.bf16 %v305, %v305
        %v322 = vpack.c.bf16 %v306, %v306
        %v323 = vpack.c.bf16 %v307, %v307
        %v324 = vpack.c.bf16 %v308, %v308
        %v325 = vpack.c.bf16 %v309, %v309
        %v326 = vpack.c.bf16 %v310, %v310
        %v327 = vpack.c.bf16 %v311, %v311
        %v328 = vpack.c.bf16 %v312, %v312
        %v329 = vpack.c.bf16 %v313, %v313
        %v330 = vpack.c.bf16 %v314, %v314
        %v331 = vpack.c.bf16 %v315, %v315
        %v332 = vpack.c.bf16 %v316, %v316
        %v333 = vpack.c.bf16 %v317, %v317
        %v334 = vpack.c.bf16 %v318, %v318
        %v335 = vld [vmem:[%s1] sm:$0xf]
        %v336 = vld [vmem:[%s1 + $0x4] sm:$0xf]
        %v337 = vld [vmem:[%s2] sm:$0x1]
        %v339 = vperm.slane %v337, 0
        %v357 = vunpack.c.l.b16 %v319
        %v358 = vunpack.c.l.b16 %v320
        %v359 = vunpack.c.l.b16 %v321
        %v360 = vunpack.c.l.b16 %v322
        %v361 = vunpack.c.l.b16 %v323
        %v362 = vunpack.c.l.b16 %v324
        %v363 = vunpack.c.l.b16 %v325
        %v364 = vunpack.c.l.b16 %v326
        %v365 = vunpack.c.l.b16 %v327
        %v366 = vunpack.c.l.b16 %v328
        %v367 = vunpack.c.l.b16 %v329
        %v368 = vunpack.c.l.b16 %v330
        %v369 = vunpack.c.l.b16 %v331
        %v370 = vunpack.c.l.b16 %v332
        %v371 = vunpack.c.l.b16 %v333
        %v372 = vunpack.c.l.b16 %v334
        %v373 = vpack.c.b16 %v358, %v357
        %v374 = vpack.c.b16 %v360, %v359
        %v375 = vpack.c.b16 %v362, %v361
        %v376 = vpack.c.b16 %v364, %v363
        %v377 = vpack.c.b16 %v366, %v365
        %v378 = vpack.c.b16 %v368, %v367
        %v379 = vpack.c.b16 %v370, %v369
        %v380 = vpack.c.b16 %v372, %v371
        %v383 = vunpack.c.l.b16 %v335
        %v384 = vunpack.c.l.b16 %v336
        %v385 = vpack.c.b16 %v384, %v383
        %vm387 = vcmask 130048
        %v389 = vsel %vm387, %v373, 0
        %v392 = vsel %vm387, %v374, 0
        %v395 = vsel %vm387, %v375, 0
        %v398 = vsel %vm387, %v376, 0
        %v401 = vsel %vm387, %v377, 0
        %v404 = vsel %vm387, %v378, 0
        %v407 = vsel %vm387, %v379, 0
        %v410 = vsel %vm387, %v380, 0
        %412 = vmatpush.bf16.msra.mxu0 0
        %413 = vmatpush.bf16.msra.mxu0 0
        %414 = vmatpush.bf16.msra.mxu0 0
        %415 = vmatpush.bf16.msra.mxu0 0
        %416 = vmatpush.bf16.msra.mxu0 0
        %417 = vmatpush.bf16.msra.mxu0 0
        %418 = vmatpush.bf16.msra.mxu0 0
        %419 = vmatpush.bf16.msra.mxu0 %v385
        %420 = vmatmul.bf16.gmra.mxu0 %v389
        %v421 = vpop.f32.mrf.mxu0
        %v422 = vadd.f32 %v339, %v421
        %v423 = vpop.f32.mrf.mxu0
        %v424 = vadd.f32 %v339, %v423
        %425 = vmatmul.bf16.gmra.mxu0 %v392
        %v426 = vpop.f32.mrf.mxu0
        %v427 = vadd.f32 %v339, %v426
        %v428 = vpop.f32.mrf.mxu0
        %v429 = vadd.f32 %v339, %v428
        %430 = vmatmul.bf16.gmra.mxu0 %v395
        %v431 = vpop.f32.mrf.mxu0
        %v432 = vadd.f32 %v339, %v431
        %v433 = vpop.f32.mrf.mxu0
        %v434 = vadd.f32 %v339, %v433
        %435 = vmatmul.bf16.gmra.mxu0 %v398
        %v436 = vpop.f32.mrf.mxu0
        %v437 = vadd.f32 %v339, %v436
        %v438 = vpop.f32.mrf.mxu0
        %v439 = vadd.f32 %v339, %v438
        %440 = vmatmul.bf16.gmra.mxu0 %v401
        %v441 = vpop.f32.mrf.mxu0
        %v442 = vadd.f32 %v339, %v441
        %v443 = vpop.f32.mrf.mxu0
        %v444 = vadd.f32 %v339, %v443
        %445 = vmatmul.bf16.gmra.mxu0 %v404
        %v446 = vpop.f32.mrf.mxu0
        %v447 = vadd.f32 %v339, %v446
        %v448 = vpop.f32.mrf.mxu0
        %v449 = vadd.f32 %v339, %v448
        %450 = vmatmul.bf16.gmra.mxu0 %v407
        %v451 = vpop.f32.mrf.mxu0
        %v452 = vadd.f32 %v339, %v451
        %v453 = vpop.f32.mrf.mxu0
        %v454 = vadd.f32 %v339, %v453
        %455 = vmatmul.bf16.gmra.mxu0 %v410
        %v456 = vpop.f32.mrf.mxu0
        %v457 = vadd.f32 %v339, %v456
        %v458 = vpop.f32.mrf.mxu0
        %v459 = vadd.f32 %v339, %v458
        %460 = vdwg.mxu0
        %v461 = vmax.f32 %v422, 0.0
        %v462 = vmax.f32 %v424, 0.0
        %v463 = vmax.f32 %v427, 0.0
        %v464 = vmax.f32 %v429, 0.0
        %v465 = vmax.f32 %v432, 0.0
        %v466 = vmax.f32 %v434, 0.0
        %v467 = vmax.f32 %v437, 0.0
        %v468 = vmax.f32 %v439, 0.0
        %v469 = vmax.f32 %v442, 0.0
        %v470 = vmax.f32 %v444, 0.0
        %v471 = vmax.f32 %v447, 0.0
        %v472 = vmax.f32 %v449, 0.0
        %v473 = vmax.f32 %v452, 0.0
        %v474 = vmax.f32 %v454, 0.0
        %v475 = vmax.f32 %v457, 0.0
        %v476 = vmax.f32 %v459, 0.0
        %v477 = vrot.slane %v461, 7
        %v478 = vrot.slane %v462, 7
        %v479 = vrot.slane %v463, 7
        %v480 = vrot.slane %v464, 7
        %v481 = vrot.slane %v465, 7
        %v482 = vrot.slane %v466, 7
        %v483 = vrot.slane %v467, 7
        %v484 = vrot.slane %v468, 7
        %v485 = vrot.slane %v469, 7
        %v486 = vrot.slane %v470, 7
        %v487 = vrot.slane %v471, 7
        %v488 = vrot.slane %v472, 7
        %v489 = vrot.slane %v473, 7
        %v490 = vrot.slane %v474, 7
        %v491 = vrot.slane %v475, 7
        %v492 = vrot.slane %v476, 7
        %v493 = vlaneseq
        %v494 = vshrl.u32 %v493, 7
        %vm495 = vcmp.lt.s32.totalorder %v494, 1
        %v496 = vsel %vm495, %v492, 0.0
        %v497 = vsel %vm495, 0.0, %v492
        %v498 = vsel %vm495, %v491, 0.0
        %v499 = vsel %vm495, 0.0, %v491
        %v500 = vsel %vm495, %v490, 0.0
        %v501 = vsel %vm495, 0.0, %v490
        %v502 = vsel %vm495, %v489, 0.0
        %v503 = vsel %vm495, 0.0, %v489
        %v504 = vsel %vm495, %v488, 0.0
        %v505 = vsel %vm495, 0.0, %v488
        %v506 = vsel %vm495, %v487, 0.0
        %v507 = vsel %vm495, 0.0, %v487
        %v508 = vsel %vm495, %v486, 0.0
        %v509 = vsel %vm495, 0.0, %v486
        %v510 = vsel %vm495, %v485, 0.0
        %v511 = vsel %vm495, 0.0, %v485
        %v512 = vsel %vm495, %v484, 0.0
        %v513 = vsel %vm495, 0.0, %v484
        %v514 = vsel %vm495, %v483, 0.0
        %v515 = vsel %vm495, 0.0, %v483
        %v516 = vsel %vm495, %v482, 0.0
        %v517 = vsel %vm495, 0.0, %v482
        %v518 = vsel %vm495, %v481, 0.0
        %v519 = vsel %vm495, 0.0, %v481
        %v520 = vsel %vm495, %v480, 0.0
        %v521 = vsel %vm495, 0.0, %v480
        %v522 = vsel %vm495, %v479, 0.0
        %v523 = vsel %vm495, 0.0, %v479
        %v524 = vsel %vm495, %v478, 0.0
        %v525 = vsel %vm495, 0.0, %v478
        %v526 = vsel %vm495, %v477, 0.0
        %v527 = vsel %vm495, 0.0, %v477
        %v528 = vrot.slane %v461, 1
        %v529 = vrot.slane %v462, 1
        %v530 = vrot.slane %v463, 1
        %v531 = vrot.slane %v464, 1
        %v532 = vrot.slane %v465, 1
        %v533 = vrot.slane %v466, 1
        %v534 = vrot.slane %v467, 1
        %v535 = vrot.slane %v468, 1
        %v536 = vrot.slane %v469, 1
        %v537 = vrot.slane %v470, 1
        %v538 = vrot.slane %v471, 1
        %v539 = vrot.slane %v472, 1
        %v540 = vrot.slane %v473, 1
        %v541 = vrot.slane %v474, 1
        %v542 = vrot.slane %v475, 1
        %v543 = vrot.slane %v476, 1
        %vm544 = vcmp.lt.s32.totalorder %v494, 7
        %v545 = vsel %vm544, %v543, 0.0
        %v546 = vsel %vm544, 0.0, %v543
        %v547 = vsel %vm544, %v542, 0.0
        %v548 = vsel %vm544, 0.0, %v542
        %v549 = vsel %vm544, %v541, 0.0
        %v550 = vsel %vm544, 0.0, %v541
        %v551 = vsel %vm544, %v540, 0.0
        %v552 = vsel %vm544, 0.0, %v540
        %v553 = vsel %vm544, %v539, 0.0
        %v554 = vsel %vm544, 0.0, %v539
        %v555 = vsel %vm544, %v538, 0.0
        %v556 = vsel %vm544, 0.0, %v538
        %v557 = vsel %vm544, %v537, 0.0
        %v558 = vsel %vm544, 0.0, %v537
        %v559 = vsel %vm544, %v536, 0.0
        %v560 = vsel %vm544, 0.0, %v536
        %v561 = vsel %vm544, %v535, 0.0
        %v562 = vsel %vm544, 0.0, %v535
        %v563 = vsel %vm544, %v534, 0.0
        %v564 = vsel %vm544, 0.0, %v534
        %v565 = vsel %vm544, %v533, 0.0
        %v566 = vsel %vm544, 0.0, %v533
        %v567 = vsel %vm544, %v532, 0.0
        %v568 = vsel %vm544, 0.0, %v532
        %v569 = vsel %vm544, %v531, 0.0
        %v570 = vsel %vm544, 0.0, %v531
        %v571 = vsel %vm544, %v530, 0.0
        %v572 = vsel %vm544, 0.0, %v530
        %v573 = vsel %vm544, %v529, 0.0
        %v574 = vsel %vm544, 0.0, %v529
        %v575 = vsel %vm544, %v528, 0.0
        %v576 = vsel %vm544, 0.0, %v528
        %v577 = vpack.c.bf16 0.0, 0.0
        %v578 = vpack.c.bf16 %v527, %v527
        %v579 = vpack.c.bf16 %v526, %v526
        %v580 = vpack.c.bf16 %v525, %v525
        %v581 = vpack.c.bf16 %v524, %v524
        %v582 = vpack.c.bf16 %v523, %v523
        %v583 = vpack.c.bf16 %v522, %v522
        %v584 = vpack.c.bf16 %v521, %v521
        %v585 = vpack.c.bf16 %v520, %v520
        %v586 = vpack.c.bf16 %v519, %v519
        %v587 = vpack.c.bf16 %v518, %v518
        %v588 = vpack.c.bf16 %v517, %v517
        %v589 = vpack.c.bf16 %v516, %v516
        %v590 = vpack.c.bf16 %v515, %v515
        %v591 = vpack.c.bf16 %v514, %v514
        %v592 = vpack.c.bf16 %v513, %v513
        %v593 = vpack.c.bf16 %v512, %v512
        %v594 = vpack.c.bf16 %v511, %v511
        %v595 = vpack.c.bf16 %v510, %v510
        %v596 = vpack.c.bf16 %v509, %v509
        %v597 = vpack.c.bf16 %v508, %v508
        %v598 = vpack.c.bf16 %v507, %v507
        %v599 = vpack.c.bf16 %v506, %v506
        %v600 = vpack.c.bf16 %v505, %v505
        %v601 = vpack.c.bf16 %v504, %v504
        %v602 = vpack.c.bf16 %v503, %v503
        %v603 = vpack.c.bf16 %v502, %v502
        %v604 = vpack.c.bf16 %v501, %v501
        %v605 = vpack.c.bf16 %v500, %v500
        %v606 = vpack.c.bf16 %v499, %v499
        %v607 = vpack.c.bf16 %v498, %v498
        %v608 = vpack.c.bf16 %v497, %v497
        %v609 = vpack.c.bf16 %v496, %v496
        %v610 = vpack.c.bf16 0.0, 0.0
        %v611 = vpack.c.bf16 %v461, %v461
        %v612 = vpack.c.bf16 %v462, %v462
        %v613 = vpack.c.bf16 %v463, %v463
        %v614 = vpack.c.bf16 %v464, %v464
        %v615 = vpack.c.bf16 %v465, %v465
        %v616 = vpack.c.bf16 %v466, %v466
        %v617 = vpack.c.bf16 %v467, %v467
        %v618 = vpack.c.bf16 %v468, %v468
        %v619 = vpack.c.bf16 %v469, %v469
        %v620 = vpack.c.bf16 %v470, %v470
        %v621 = vpack.c.bf16 %v471, %v471
        %v622 = vpack.c.bf16 %v472, %v472
        %v623 = vpack.c.bf16 %v473, %v473
        %v624 = vpack.c.bf16 %v474, %v474
        %v625 = vpack.c.bf16 %v475, %v475
        %v626 = vpack.c.bf16 %v476, %v476
        %v627 = vpack.c.bf16 0.0, 0.0
        %v628 = vpack.c.bf16 %v576, %v576
        %v629 = vpack.c.bf16 %v575, %v575
        %v630 = vpack.c.bf16 %v574, %v574
        %v631 = vpack.c.bf16 %v573, %v573
        %v632 = vpack.c.bf16 %v572, %v572
        %v633 = vpack.c.bf16 %v571, %v571
        %v634 = vpack.c.bf16 %v570, %v570
        %v635 = vpack.c.bf16 %v569, %v569
        %v636 = vpack.c.bf16 %v568, %v568
        %v637 = vpack.c.bf16 %v567, %v567
        %v638 = vpack.c.bf16 %v566, %v566
        %v639 = vpack.c.bf16 %v565, %v565
        %v640 = vpack.c.bf16 %v564, %v564
        %v641 = vpack.c.bf16 %v563, %v563
        %v642 = vpack.c.bf16 %v562, %v562
        %v643 = vpack.c.bf16 %v561, %v561
        %v644 = vpack.c.bf16 %v560, %v560
        %v645 = vpack.c.bf16 %v559, %v559
        %v646 = vpack.c.bf16 %v558, %v558
        %v647 = vpack.c.bf16 %v557, %v557
        %v648 = vpack.c.bf16 %v556, %v556
        %v649 = vpack.c.bf16 %v555, %v555
        %v650 = vpack.c.bf16 %v554, %v554
        %v651 = vpack.c.bf16 %v553, %v553
        %v652 = vpack.c.bf16 %v552, %v552
        %v653 = vpack.c.bf16 %v551, %v551
        %v654 = vpack.c.bf16 %v550, %v550
        %v655 = vpack.c.bf16 %v549, %v549
        %v656 = vpack.c.bf16 %v548, %v548
        %v657 = vpack.c.bf16 %v547, %v547
        %v658 = vpack.c.bf16 %v546, %v546
        %v659 = vpack.c.bf16 %v545, %v545
        %v693 = vunpack.c.l.b16 %v577
        %v694 = vunpack.c.l.b16 %v578
        %v695 = vunpack.c.l.b16 %v579
        %v696 = vunpack.c.l.b16 %v580
        %v697 = vunpack.c.l.b16 %v581
        %v698 = vunpack.c.l.b16 %v582
        %v699 = vunpack.c.l.b16 %v583
        %v700 = vunpack.c.l.b16 %v584
        %v701 = vunpack.c.l.b16 %v585
        %v702 = vunpack.c.l.b16 %v586
        %v703 = vunpack.c.l.b16 %v587
        %v704 = vunpack.c.l.b16 %v588
        %v705 = vunpack.c.l.b16 %v589
        %v706 = vunpack.c.l.b16 %v590
        %v707 = vunpack.c.l.b16 %v591
        %v708 = vunpack.c.l.b16 %v592
        %v709 = vunpack.c.l.b16 %v593
        %v710 = vunpack.c.l.b16 %v594
        %v711 = vunpack.c.l.b16 %v595
        %v712 = vunpack.c.l.b16 %v596
        %v713 = vunpack.c.l.b16 %v597
        %v714 = vunpack.c.l.b16 %v598
        %v715 = vunpack.c.l.b16 %v599
        %v716 = vunpack.c.l.b16 %v600
        %v717 = vunpack.c.l.b16 %v601
        %v718 = vunpack.c.l.b16 %v602
        %v719 = vunpack.c.l.b16 %v603
        %v720 = vunpack.c.l.b16 %v604
        %v721 = vunpack.c.l.b16 %v605
        %v722 = vunpack.c.l.b16 %v606
        %v723 = vunpack.c.l.b16 %v607
        %v724 = vunpack.c.l.b16 %v608
        %v725 = vunpack.c.l.b16 %v609
        %v726 = vpack.c.b16 %v693, %v693
        %v727 = vpack.c.b16 %v695, %v694
        %v728 = vpack.c.b16 %v697, %v696
        %v729 = vpack.c.b16 %v699, %v698
        %v730 = vpack.c.b16 %v701, %v700
        %v731 = vpack.c.b16 %v703, %v702
        %v732 = vpack.c.b16 %v705, %v704
        %v733 = vpack.c.b16 %v707, %v706
        %v734 = vpack.c.b16 %v709, %v708
        %v735 = vpack.c.b16 %v711, %v710
        %v736 = vpack.c.b16 %v713, %v712
        %v737 = vpack.c.b16 %v715, %v714
        %v738 = vpack.c.b16 %v717, %v716
        %v739 = vpack.c.b16 %v719, %v718
        %v740 = vpack.c.b16 %v721, %v720
        %v741 = vpack.c.b16 %v723, %v722
        %v742 = vpack.c.b16 %v725, %v724
        %v760 = vunpack.c.l.b16 %v610
        %v761 = vunpack.c.l.b16 %v611
        %v762 = vunpack.c.l.b16 %v612
        %v763 = vunpack.c.l.b16 %v613
        %v764 = vunpack.c.l.b16 %v614
        %v765 = vunpack.c.l.b16 %v615
        %v766 = vunpack.c.l.b16 %v616
        %v767 = vunpack.c.l.b16 %v617
        %v768 = vunpack.c.l.b16 %v618
        %v769 = vunpack.c.l.b16 %v619
        %v770 = vunpack.c.l.b16 %v620
        %v771 = vunpack.c.l.b16 %v621
        %v772 = vunpack.c.l.b16 %v622
        %v773 = vunpack.c.l.b16 %v623
        %v774 = vunpack.c.l.b16 %v624
        %v775 = vunpack.c.l.b16 %v625
        %v776 = vunpack.c.l.b16 %v626
        %v777 = vpack.c.b16 %v760, %v760
        %v778 = vpack.c.b16 %v760, %v761
        %v779 = vpack.c.b16 %v760, %v762
        %v780 = vpack.c.b16 %v760, %v763
        %v781 = vpack.c.b16 %v760, %v764
        %v782 = vpack.c.b16 %v760, %v765
        %v783 = vpack.c.b16 %v760, %v766
        %v784 = vpack.c.b16 %v760, %v767
        %v785 = vpack.c.b16 %v760, %v768
        %v786 = vpack.c.b16 %v760, %v769
        %v787 = vpack.c.b16 %v760, %v770
        %v788 = vpack.c.b16 %v760, %v771
        %v789 = vpack.c.b16 %v760, %v772
        %v790 = vpack.c.b16 %v760, %v773
        %v791 = vpack.c.b16 %v760, %v774
        %v792 = vpack.c.b16 %v760, %v775
        %v793 = vpack.c.b16 %v760, %v776
        %794 = vrot.lane.b32.xlu0 %v777, 8
        %v795 = vpop.permute.xlu0 %794
        %796 = vrot.lane.b32.xlu0 %v778, 8
        %v797 = vpop.permute.xlu0 %796
        %798 = vrot.lane.b32.xlu0 %v779, 8
        %v799 = vpop.permute.xlu0 %798
        %800 = vrot.lane.b32.xlu0 %v780, 8
        %v801 = vpop.permute.xlu0 %800
        %802 = vrot.lane.b32.xlu0 %v781, 8
        %v803 = vpop.permute.xlu0 %802
        %804 = vrot.lane.b32.xlu0 %v782, 8
        %v805 = vpop.permute.xlu0 %804
        %806 = vrot.lane.b32.xlu0 %v783, 8
        %v807 = vpop.permute.xlu0 %806
        %808 = vrot.lane.b32.xlu0 %v784, 8
        %v809 = vpop.permute.xlu0 %808
        %810 = vrot.lane.b32.xlu0 %v785, 8
        %v811 = vpop.permute.xlu0 %810
        %812 = vrot.lane.b32.xlu0 %v786, 8
        %v813 = vpop.permute.xlu0 %812
        %814 = vrot.lane.b32.xlu0 %v787, 8
        %v815 = vpop.permute.xlu0 %814
        %816 = vrot.lane.b32.xlu0 %v788, 8
        %v817 = vpop.permute.xlu0 %816
        %818 = vrot.lane.b32.xlu0 %v789, 8
        %v819 = vpop.permute.xlu0 %818
        %820 = vrot.lane.b32.xlu0 %v790, 8
        %v821 = vpop.permute.xlu0 %820
        %822 = vrot.lane.b32.xlu0 %v791, 8
        %v823 = vpop.permute.xlu0 %822
        %824 = vrot.lane.b32.xlu0 %v792, 8
        %v825 = vpop.permute.xlu0 %824
        %826 = vrot.lane.b32.xlu0 %v793, 8
        %v827 = vpop.permute.xlu0 %826
        %v861 = vunpack.c.l.b16 %v627
        %v862 = vunpack.c.l.b16 %v628
        %v863 = vunpack.c.l.b16 %v629
        %v864 = vunpack.c.l.b16 %v630
        %v865 = vunpack.c.l.b16 %v631
        %v866 = vunpack.c.l.b16 %v632
        %v867 = vunpack.c.l.b16 %v633
        %v868 = vunpack.c.l.b16 %v634
        %v869 = vunpack.c.l.b16 %v635
        %v870 = vunpack.c.l.b16 %v636
        %v871 = vunpack.c.l.b16 %v637
        %v872 = vunpack.c.l.b16 %v638
        %v873 = vunpack.c.l.b16 %v639
        %v874 = vunpack.c.l.b16 %v640
        %v875 = vunpack.c.l.b16 %v641
        %v876 = vunpack.c.l.b16 %v642
        %v877 = vunpack.c.l.b16 %v643
        %v878 = vunpack.c.l.b16 %v644
        %v879 = vunpack.c.l.b16 %v645
        %v880 = vunpack.c.l.b16 %v646
        %v881 = vunpack.c.l.b16 %v647
        %v882 = vunpack.c.l.b16 %v648
        %v883 = vunpack.c.l.b16 %v649
        %v884 = vunpack.c.l.b16 %v650
        %v885 = vunpack.c.l.b16 %v651
        %v886 = vunpack.c.l.b16 %v652
        %v887 = vunpack.c.l.b16 %v653
        %v888 = vunpack.c.l.b16 %v654
        %v889 = vunpack.c.l.b16 %v655
        %v890 = vunpack.c.l.b16 %v656
        %v891 = vunpack.c.l.b16 %v657
        %v892 = vunpack.c.l.b16 %v658
        %v893 = vunpack.c.l.b16 %v659
        %v894 = vpack.c.b16 %v862, %v861
        %v895 = vpack.c.b16 %v864, %v863
        %v896 = vpack.c.b16 %v866, %v865
        %v897 = vpack.c.b16 %v868, %v867
        %v898 = vpack.c.b16 %v870, %v869
        %v899 = vpack.c.b16 %v872, %v871
        %v900 = vpack.c.b16 %v874, %v873
        %v901 = vpack.c.b16 %v876, %v875
        %v902 = vpack.c.b16 %v861, %v877
        %v903 = vpack.c.b16 %v861, %v861
        %v904 = vpack.c.b16 %v878, %v861
        %v905 = vpack.c.b16 %v880, %v879
        %v906 = vpack.c.b16 %v882, %v881
        %v907 = vpack.c.b16 %v884, %v883
        %v908 = vpack.c.b16 %v886, %v885
        %v909 = vpack.c.b16 %v888, %v887
        %v910 = vpack.c.b16 %v890, %v889
        %v911 = vpack.c.b16 %v892, %v891
        %v912 = vpack.c.b16 %v861, %v893
        %913 = vrot.lane.b32.xlu0 %v894, 16
        %v914 = vpop.permute.xlu0 %913
        %915 = vrot.lane.b32.xlu0 %v895, 16
        %v916 = vpop.permute.xlu0 %915
        %917 = vrot.lane.b32.xlu0 %v896, 16
        %v918 = vpop.permute.xlu0 %917
        %919 = vrot.lane.b32.xlu0 %v897, 16
        %v920 = vpop.permute.xlu0 %919
        %921 = vrot.lane.b32.xlu0 %v898, 16
        %v922 = vpop.permute.xlu0 %921
        %923 = vrot.lane.b32.xlu0 %v899, 16
        %v924 = vpop.permute.xlu0 %923
        %925 = vrot.lane.b32.xlu0 %v900, 16
        %v926 = vpop.permute.xlu0 %925
        %927 = vrot.lane.b32.xlu0 %v901, 16
        %v928 = vpop.permute.xlu0 %927
        %929 = vrot.lane.b32.xlu0 %v902, 16
        %v930 = vpop.permute.xlu0 %929
        %931 = vrot.lane.b32.xlu0 %v903, 16
        %v932 = vpop.permute.xlu0 %931
        %933 = vrot.lane.b32.xlu0 %v904, 16
        %v934 = vpop.permute.xlu0 %933
        %935 = vrot.lane.b32.xlu0 %v905, 16
        %v936 = vpop.permute.xlu0 %935
        %937 = vrot.lane.b32.xlu0 %v906, 16
        %v938 = vpop.permute.xlu0 %937
        %939 = vrot.lane.b32.xlu0 %v907, 16
        %v940 = vpop.permute.xlu0 %939
        %941 = vrot.lane.b32.xlu0 %v908, 16
        %v942 = vpop.permute.xlu0 %941
        %943 = vrot.lane.b32.xlu0 %v909, 16
        %v944 = vpop.permute.xlu0 %943
        %945 = vrot.lane.b32.xlu0 %v910, 16
        %v946 = vpop.permute.xlu0 %945
        %947 = vrot.lane.b32.xlu0 %v911, 16
        %v948 = vpop.permute.xlu0 %947
        %949 = vrot.lane.b32.xlu0 %v912, 16
        %v950 = vpop.permute.xlu0 %949
        %vm951 = vcmask 64512
        %v954 = vsel %vm951, %v726, %v795
        %v957 = vsel %vm951, %v727, %v797
        %v960 = vsel %vm951, %v728, %v799
        %v963 = vsel %vm951, %v729, %v801
        %v966 = vsel %vm951, %v730, %v803
        %v969 = vsel %vm951, %v731, %v805
        %v972 = vsel %vm951, %v732, %v807
        %v975 = vsel %vm951, %v733, %v809
        %v978 = vsel %vm951, %v734, %v811
        %v981 = vsel %vm951, %v735, %v813
        %v984 = vsel %vm951, %v736, %v815
        %v987 = vsel %vm951, %v737, %v817
        %v990 = vsel %vm951, %v738, %v819
        %v993 = vsel %vm951, %v739, %v821
        %v996 = vsel %vm951, %v740, %v823
        %v999 = vsel %vm951, %v741, %v825
        %v1002 = vsel %vm951, %v742, %v827
        %v1004 = vsel %vm387, %v954, %v914
        %v1006 = vsel %vm387, %v957, %v916
        %v1008 = vsel %vm387, %v960, %v918
        %v1010 = vsel %vm387, %v963, %v920
        %v1012 = vsel %vm387, %v966, %v922
        %v1014 = vsel %vm387, %v969, %v924
        %v1016 = vsel %vm387, %v972, %v926
        %v1018 = vsel %vm387, %v975, %v928
        %v1020 = vsel %vm387, %v978, %v930
        %v1022 = vsel %vm387, %v954, %v932
        %v1024 = vsel %vm387, %v954, %v934
        %v1026 = vsel %vm387, %v981, %v936
        %v1028 = vsel %vm387, %v984, %v938
        %v1030 = vsel %vm387, %v987, %v940
        %v1032 = vsel %vm387, %v990, %v942
        %v1034 = vsel %vm387, %v993, %v944
        %v1036 = vsel %vm387, %v996, %v946
        %v1038 = vsel %vm387, %v999, %v948
        %v1040 = vsel %vm387, %v1002, %v950
        %v1041 = vld [vmem:[%s3] sm:$0xf]
        %v1042 = vld [vmem:[%s3 + $0x4] sm:$0xf]
        %v1043 = vld [vmem:[%s3 + $0x8] sm:$0xf]
        %s1044 = scalar_lea.vmem %s3, 12
        %v1045 = vld [vmem:[%s1044] sm:$0xf]
        %v1046 = vld [vmem:[%s1044 + $0x4] sm:$0xf]
        %v1047 = vld [vmem:[%s1044 + $0x8] sm:$0xf]
        %v1051 = vunpack.c.l.b16 %v1045
        %v1052 = vunpack.c.l.b16 %v1046
        %v1053 = vunpack.c.l.b16 %v1047
        %v1054 = vpack.c.b16 %v1052, %v1051
        %v1055 = vpack.c.b16 %v1053, %v1053
        %vm1057 = vcmask 195584
        %v1058 = vsel %vm1057, %v1006, 0
        %v1060 = vsel %vm1057, %v1008, 0
        %v1062 = vsel %vm1057, %v1010, 0
        %v1064 = vsel %vm1057, %v1012, 0
        %v1066 = vsel %vm1057, %v1014, 0
        %v1068 = vsel %vm1057, %v1016, 0
        %v1070 = vsel %vm1057, %v1018, 0
        %v1072 = vsel %vm1057, %v1020, 0
        %v1074 = vsel %vm1057, %v1022, 0
        %v1076 = vsel %vm1057, %v1024, 0
        %v1078 = vsel %vm1057, %v1026, 0
        %v1080 = vsel %vm1057, %v1028, 0
        %v1082 = vsel %vm1057, %v1030, 0
        %v1084 = vsel %vm1057, %v1032, 0
        %v1086 = vsel %vm1057, %v1034, 0
        %v1088 = vsel %vm1057, %v1036, 0
        %v1090 = vsel %vm1057, %v1038, 0
        %v1092 = vsel %vm1057, %v1040, 0
        %vm1094 = vcmask 1043456
        %v1096 = vsel %vm1094, %v1055, 0
        %1098 = vmatpush.bf16.msra.mxu0 0
        %1099 = vmatpush.bf16.msra.mxu0 0
        %1100 = vmatpush.bf16.msra.mxu0 0
        %1101 = vmatpush.bf16.msra.mxu0 0
        %1102 = vmatpush.bf16.msra.mxu0 0
        %1103 = vmatpush.bf16.msra.mxu0 0
        %1104 = vmatpush.bf16.msra.mxu0 %v1096
        %1105 = vmatpush.bf16.msra.mxu0 %v1054
        %1106 = vmatmul.bf16.gmra.mxu0 %v1058
        %v1107 = vpop.f32.mrf.mxu0
        %v1108 = vadd.f32 0.0, %v1107
        %v1109 = vpop.f32.mrf.mxu0
        %v1110 = vadd.f32 0.0, %v1109
        %1111 = vmatmul.bf16.gmra.mxu0 %v1060
        %v1112 = vpop.f32.mrf.mxu0
        %v1113 = vadd.f32 0.0, %v1112
        %v1114 = vpop.f32.mrf.mxu0
        %v1115 = vadd.f32 0.0, %v1114
        %1116 = vmatmul.bf16.gmra.mxu0 %v1062
        %v1117 = vpop.f32.mrf.mxu0
        %v1118 = vadd.f32 0.0, %v1117
        %v1119 = vpop.f32.mrf.mxu0
        %v1120 = vadd.f32 0.0, %v1119
        %1121 = vmatmul.bf16.gmra.mxu0 %v1064
        %v1122 = vpop.f32.mrf.mxu0
        %v1123 = vadd.f32 0.0, %v1122
        %v1124 = vpop.f32.mrf.mxu0
        %v1125 = vadd.f32 0.0, %v1124
        %1126 = vmatmul.bf16.gmra.mxu0 %v1066
        %v1127 = vpop.f32.mrf.mxu0
        %v1128 = vadd.f32 0.0, %v1127
        %v1129 = vpop.f32.mrf.mxu0
        %v1130 = vadd.f32 0.0, %v1129
        %1131 = vmatmul.bf16.gmra.mxu0 %v1068
        %v1132 = vpop.f32.mrf.mxu0
        %v1133 = vadd.f32 0.0, %v1132
        %v1134 = vpop.f32.mrf.mxu0
        %v1135 = vadd.f32 0.0, %v1134
        %1136 = vmatmul.bf16.gmra.mxu0 %v1070
        %v1137 = vpop.f32.mrf.mxu0
        %v1138 = vadd.f32 0.0, %v1137
        %v1139 = vpop.f32.mrf.mxu0
        %v1140 = vadd.f32 0.0, %v1139
        %1141 = vmatmul.bf16.gmra.mxu0 %v1072
        %v1142 = vpop.f32.mrf.mxu0
        %v1143 = vadd.f32 0.0, %v1142
        %v1144 = vpop.f32.mrf.mxu0
        %v1145 = vadd.f32 0.0, %v1144
        %1146 = vmatmul.bf16.gmra.mxu0 %v1074
        %v1147 = vpop.f32.mrf.mxu0
        %v1148 = vadd.f32 0.0, %v1147
        %v1149 = vpop.f32.mrf.mxu0
        %v1150 = vadd.f32 0.0, %v1149
        %1151 = vmatmul.bf16.gmra.mxu0 %v1076
        %v1152 = vpop.f32.mrf.mxu0
        %v1153 = vadd.f32 0.0, %v1152
        %v1154 = vpop.f32.mrf.mxu0
        %v1155 = vadd.f32 0.0, %v1154
        %1156 = vmatmul.bf16.gmra.mxu0 %v1078
        %v1157 = vpop.f32.mrf.mxu0
        %v1158 = vadd.f32 0.0, %v1157
        %v1159 = vpop.f32.mrf.mxu0
        %v1160 = vadd.f32 0.0, %v1159
        %1161 = vmatmul.bf16.gmra.mxu0 %v1080
        %v1162 = vpop.f32.mrf.mxu0
        %v1163 = vadd.f32 0.0, %v1162
        %v1164 = vpop.f32.mrf.mxu0
        %v1165 = vadd.f32 0.0, %v1164
        %1166 = vmatmul.bf16.gmra.mxu0 %v1082
        %v1167 = vpop.f32.mrf.mxu0
        %v1168 = vadd.f32 0.0, %v1167
        %v1169 = vpop.f32.mrf.mxu0
        %v1170 = vadd.f32 0.0, %v1169
        %1171 = vmatmul.bf16.gmra.mxu0 %v1084
        %v1172 = vpop.f32.mrf.mxu0
        %v1173 = vadd.f32 0.0, %v1172
        %v1174 = vpop.f32.mrf.mxu0
        %v1175 = vadd.f32 0.0, %v1174
        %1176 = vmatmul.bf16.gmra.mxu0 %v1086
        %v1177 = vpop.f32.mrf.mxu0
        %v1178 = vadd.f32 0.0, %v1177
        %v1179 = vpop.f32.mrf.mxu0
        %v1180 = vadd.f32 0.0, %v1179
        %1181 = vmatmul.bf16.gmra.mxu0 %v1088
        %v1182 = vpop.f32.mrf.mxu0
        %v1183 = vadd.f32 0.0, %v1182
        %v1184 = vpop.f32.mrf.mxu0
        %v1185 = vadd.f32 0.0, %v1184
        %1186 = vmatmul.bf16.gmra.mxu0 %v1090
        %v1187 = vpop.f32.mrf.mxu0
        %v1188 = vadd.f32 0.0, %v1187
        %v1189 = vpop.f32.mrf.mxu0
        %v1190 = vadd.f32 0.0, %v1189
        %1191 = vmatmul.bf16.gmra.mxu0 %v1092
        %v1192 = vpop.f32.mrf.mxu0
        %v1193 = vadd.f32 0.0, %v1192
        %v1194 = vpop.f32.mrf.mxu0
        %v1195 = vadd.f32 0.0, %v1194
        %1196 = vdwg.mxu0
        %v1200 = vunpack.c.l.b16 %v1041
        %v1201 = vunpack.c.l.b16 %v1042
        %v1202 = vunpack.c.l.b16 %v1043
        %v1203 = vpack.c.b16 %v1201, %v1200
        %v1204 = vpack.c.b16 %v1202, %v1202
        %v1206 = vsel %vm1057, %v1004, 0
        %v1209 = vsel %vm1094, %v1204, 0
        %1211 = vmatpush.bf16.msra.mxu0 0
        %1212 = vmatpush.bf16.msra.mxu0 0
        %1213 = vmatpush.bf16.msra.mxu0 0
        %1214 = vmatpush.bf16.msra.mxu0 0
        %1215 = vmatpush.bf16.msra.mxu0 0
        %1216 = vmatpush.bf16.msra.mxu0 0
        %1217 = vmatpush.bf16.msra.mxu0 %v1209
        %1218 = vmatpush.bf16.msra.mxu0 %v1203
        %1219 = vmatmul.bf16.gmra.mxu0 %v1206
        %v1220 = vpop.f32.mrf.mxu0
        %v1221 = vadd.f32 %v1108, %v1220
        %v1222 = vpop.f32.mrf.mxu0
        %v1223 = vadd.f32 %v1110, %v1222
        %1224 = vmatmul.bf16.gmra.mxu0 %v1058
        %v1225 = vpop.f32.mrf.mxu0
        %v1226 = vadd.f32 %v1113, %v1225
        %v1227 = vpop.f32.mrf.mxu0
        %v1228 = vadd.f32 %v1115, %v1227
        %1229 = vmatmul.bf16.gmra.mxu0 %v1060
        %v1230 = vpop.f32.mrf.mxu0
        %v1231 = vadd.f32 %v1118, %v1230
        %v1232 = vpop.f32.mrf.mxu0
        %v1233 = vadd.f32 %v1120, %v1232
        %1234 = vmatmul.bf16.gmra.mxu0 %v1062
        %v1235 = vpop.f32.mrf.mxu0
        %v1236 = vadd.f32 %v1123, %v1235
        %v1237 = vpop.f32.mrf.mxu0
        %v1238 = vadd.f32 %v1125, %v1237
        %1239 = vmatmul.bf16.gmra.mxu0 %v1064
        %v1240 = vpop.f32.mrf.mxu0
        %v1241 = vadd.f32 %v1128, %v1240
        %v1242 = vpop.f32.mrf.mxu0
        %v1243 = vadd.f32 %v1130, %v1242
        %1244 = vmatmul.bf16.gmra.mxu0 %v1066
        %v1245 = vpop.f32.mrf.mxu0
        %v1246 = vadd.f32 %v1133, %v1245
        %v1247 = vpop.f32.mrf.mxu0
        %v1248 = vadd.f32 %v1135, %v1247
        %1249 = vmatmul.bf16.gmra.mxu0 %v1068
        %v1250 = vpop.f32.mrf.mxu0
        %v1251 = vadd.f32 %v1138, %v1250
        %v1252 = vpop.f32.mrf.mxu0
        %v1253 = vadd.f32 %v1140, %v1252
        %1254 = vmatmul.bf16.gmra.mxu0 %v1070
        %v1255 = vpop.f32.mrf.mxu0
        %v1256 = vadd.f32 %v1143, %v1255
        %v1257 = vpop.f32.mrf.mxu0
        %v1258 = vadd.f32 %v1145, %v1257
        %1259 = vmatmul.bf16.gmra.mxu0 %v1072
        %v1260 = vpop.f32.mrf.mxu0
        %v1261 = vadd.f32 %v1148, %v1260
        %v1262 = vpop.f32.mrf.mxu0
        %v1263 = vadd.f32 %v1150, %v1262
        %1264 = vmatmul.bf16.gmra.mxu0 %v1074
        %v1265 = vpop.f32.mrf.mxu0
        %v1266 = vadd.f32 %v1153, %v1265
        %v1267 = vpop.f32.mrf.mxu0
        %v1268 = vadd.f32 %v1155, %v1267
        %1269 = vmatmul.bf16.gmra.mxu0 %v1076
        %v1270 = vpop.f32.mrf.mxu0
        %v1271 = vadd.f32 %v1158, %v1270
        %v1272 = vpop.f32.mrf.mxu0
        %v1273 = vadd.f32 %v1160, %v1272
        %1274 = vmatmul.bf16.gmra.mxu0 %v1078
        %v1275 = vpop.f32.mrf.mxu0
        %v1276 = vadd.f32 %v1163, %v1275
        %v1277 = vpop.f32.mrf.mxu0
        %v1278 = vadd.f32 %v1165, %v1277
        %1279 = vmatmul.bf16.gmra.mxu0 %v1080
        %v1280 = vpop.f32.mrf.mxu0
        %v1281 = vadd.f32 %v1168, %v1280
        %v1282 = vpop.f32.mrf.mxu0
        %v1283 = vadd.f32 %v1170, %v1282
        %1284 = vmatmul.bf16.gmra.mxu0 %v1082
        %v1285 = vpop.f32.mrf.mxu0
        %v1286 = vadd.f32 %v1173, %v1285
        %v1287 = vpop.f32.mrf.mxu0
        %v1288 = vadd.f32 %v1175, %v1287
        %1289 = vmatmul.bf16.gmra.mxu0 %v1084
        %v1290 = vpop.f32.mrf.mxu0
        %v1291 = vadd.f32 %v1178, %v1290
        %v1292 = vpop.f32.mrf.mxu0
        %v1293 = vadd.f32 %v1180, %v1292
        %1294 = vmatmul.bf16.gmra.mxu0 %v1086
        %v1295 = vpop.f32.mrf.mxu0
        %v1296 = vadd.f32 %v1183, %v1295
        %v1297 = vpop.f32.mrf.mxu0
        %v1298 = vadd.f32 %v1185, %v1297
        %1299 = vmatmul.bf16.gmra.mxu0 %v1088
        %v1300 = vpop.f32.mrf.mxu0
        %v1301 = vadd.f32 %v1188, %v1300
        %v1302 = vpop.f32.mrf.mxu0
        %v1303 = vadd.f32 %v1190, %v1302
        %1304 = vmatmul.bf16.gmra.mxu0 %v1090
        %v1305 = vpop.f32.mrf.mxu0
        %v1306 = vadd.f32 %v1193, %v1305
        %v1307 = vpop.f32.mrf.mxu0
        %v1308 = vadd.f32 %v1195, %v1307
        %1309 = vdwg.mxu0
        %s1310 = scalar_lea.vmem %s3, 24
        %v1311 = vld [vmem:[%s1310] sm:$0xf]
        %v1312 = vld [vmem:[%s1310 + $0x4] sm:$0xf]
        %v1313 = vld [vmem:[%s1310 + $0x8] sm:$0xf]
        %v1317 = vunpack.c.l.b16 %v1311
        %v1318 = vunpack.c.l.b16 %v1312
        %v1319 = vunpack.c.l.b16 %v1313
        %v1320 = vpack.c.b16 %v1318, %v1317
        %v1321 = vpack.c.b16 %v1319, %v1319
        %v1324 = vsel %vm1094, %v1321, 0
        %1326 = vmatpush.bf16.msra.mxu0 0
        %1327 = vmatpush.bf16.msra.mxu0 0
        %1328 = vmatpush.bf16.msra.mxu0 0
        %1329 = vmatpush.bf16.msra.mxu0 0
        %1330 = vmatpush.bf16.msra.mxu0 0
        %1331 = vmatpush.bf16.msra.mxu0 0
        %1332 = vmatpush.bf16.msra.mxu0 %v1324
        %1333 = vmatpush.bf16.msra.mxu0 %v1320
        %1334 = vmatmul.bf16.gmra.mxu0 %v1060
        %v1335 = vpop.f32.mrf.mxu0
        %v1336 = vadd.f32 0.0, %v1335
        %v1337 = vpop.f32.mrf.mxu0
        %v1338 = vadd.f32 0.0, %v1337
        %1339 = vmatmul.bf16.gmra.mxu0 %v1062
        %v1340 = vpop.f32.mrf.mxu0
        %v1341 = vadd.f32 0.0, %v1340
        %v1342 = vpop.f32.mrf.mxu0
        %v1343 = vadd.f32 0.0, %v1342
        %1344 = vmatmul.bf16.gmra.mxu0 %v1064
        %v1345 = vpop.f32.mrf.mxu0
        %v1346 = vadd.f32 0.0, %v1345
        %v1347 = vpop.f32.mrf.mxu0
        %v1348 = vadd.f32 0.0, %v1347
        %1349 = vmatmul.bf16.gmra.mxu0 %v1066
        %v1350 = vpop.f32.mrf.mxu0
        %v1351 = vadd.f32 0.0, %v1350
        %v1352 = vpop.f32.mrf.mxu0
        %v1353 = vadd.f32 0.0, %v1352
        %1354 = vmatmul.bf16.gmra.mxu0 %v1068
        %v1355 = vpop.f32.mrf.mxu0
        %v1356 = vadd.f32 0.0, %v1355
        %v1357 = vpop.f32.mrf.mxu0
        %v1358 = vadd.f32 0.0, %v1357
        %1359 = vmatmul.bf16.gmra.mxu0 %v1070
        %v1360 = vpop.f32.mrf.mxu0
        %v1361 = vadd.f32 0.0, %v1360
        %v1362 = vpop.f32.mrf.mxu0
        %v1363 = vadd.f32 0.0, %v1362
        %1364 = vmatmul.bf16.gmra.mxu0 %v1072
        %v1365 = vpop.f32.mrf.mxu0
        %v1366 = vadd.f32 0.0, %v1365
        %v1367 = vpop.f32.mrf.mxu0
        %v1368 = vadd.f32 0.0, %v1367
        %1369 = vmatmul.bf16.gmra.mxu0 %v1074
        %v1370 = vpop.f32.mrf.mxu0
        %v1371 = vadd.f32 0.0, %v1370
        %v1372 = vpop.f32.mrf.mxu0
        %v1373 = vadd.f32 0.0, %v1372
        %1374 = vmatmul.bf16.gmra.mxu0 %v1076
        %v1375 = vpop.f32.mrf.mxu0
        %v1376 = vadd.f32 0.0, %v1375
        %v1377 = vpop.f32.mrf.mxu0
        %v1378 = vadd.f32 0.0, %v1377
        %1379 = vmatmul.bf16.gmra.mxu0 %v1078
        %v1380 = vpop.f32.mrf.mxu0
        %v1381 = vadd.f32 0.0, %v1380
        %v1382 = vpop.f32.mrf.mxu0
        %v1383 = vadd.f32 0.0, %v1382
        %1384 = vmatmul.bf16.gmra.mxu0 %v1080
        %v1385 = vpop.f32.mrf.mxu0
        %v1386 = vadd.f32 0.0, %v1385
        %v1387 = vpop.f32.mrf.mxu0
        %v1388 = vadd.f32 0.0, %v1387
        %1389 = vmatmul.bf16.gmra.mxu0 %v1082
        %v1390 = vpop.f32.mrf.mxu0
        %v1391 = vadd.f32 0.0, %v1390
        %v1392 = vpop.f32.mrf.mxu0
        %v1393 = vadd.f32 0.0, %v1392
        %1394 = vmatmul.bf16.gmra.mxu0 %v1084
        %v1395 = vpop.f32.mrf.mxu0
        %v1396 = vadd.f32 0.0, %v1395
        %v1397 = vpop.f32.mrf.mxu0
        %v1398 = vadd.f32 0.0, %v1397
        %1399 = vmatmul.bf16.gmra.mxu0 %v1086
        %v1400 = vpop.f32.mrf.mxu0
        %v1401 = vadd.f32 0.0, %v1400
        %v1402 = vpop.f32.mrf.mxu0
        %v1403 = vadd.f32 0.0, %v1402
        %1404 = vmatmul.bf16.gmra.mxu0 %v1088
        %v1405 = vpop.f32.mrf.mxu0
        %v1406 = vadd.f32 0.0, %v1405
        %v1407 = vpop.f32.mrf.mxu0
        %v1408 = vadd.f32 0.0, %v1407
        %1409 = vmatmul.bf16.gmra.mxu0 %v1090
        %v1410 = vpop.f32.mrf.mxu0
        %v1411 = vadd.f32 0.0, %v1410
        %v1412 = vpop.f32.mrf.mxu0
        %v1413 = vadd.f32 0.0, %v1412
        %1414 = vmatmul.bf16.gmra.mxu0 %v1092
        %v1415 = vpop.f32.mrf.mxu0
        %v1416 = vadd.f32 0.0, %v1415
        %v1417 = vpop.f32.mrf.mxu0
        %v1418 = vadd.f32 0.0, %v1417
        %1419 = vmatmul.bf16.gmra.mxu0 %v1074
        %v1420 = vpop.f32.mrf.mxu0
        %v1421 = vadd.f32 0.0, %v1420
        %v1422 = vpop.f32.mrf.mxu0
        %v1423 = vadd.f32 0.0, %v1422
        %1424 = vdwg.mxu0
        %v1425 = vadd.f32 %v1221, %v1336
        %v1426 = vadd.f32 %v1223, %v1338
        %v1427 = vadd.f32 %v1226, %v1341
        %v1428 = vadd.f32 %v1228, %v1343
        %v1429 = vadd.f32 %v1231, %v1346
        %v1430 = vadd.f32 %v1233, %v1348
        %v1431 = vadd.f32 %v1236, %v1351
        %v1432 = vadd.f32 %v1238, %v1353
        %v1433 = vadd.f32 %v1241, %v1356
        %v1434 = vadd.f32 %v1243, %v1358
        %v1435 = vadd.f32 %v1246, %v1361
        %v1436 = vadd.f32 %v1248, %v1363
        %v1437 = vadd.f32 %v1251, %v1366
        %v1438 = vadd.f32 %v1253, %v1368
        %v1439 = vadd.f32 %v1256, %v1371
        %v1440 = vadd.f32 %v1258, %v1373
        %v1441 = vadd.f32 %v1261, %v1376
        %v1442 = vadd.f32 %v1263, %v1378
        %v1443 = vadd.f32 %v1266, %v1381
        %v1444 = vadd.f32 %v1268, %v1383
        %v1445 = vadd.f32 %v1271, %v1386
        %v1446 = vadd.f32 %v1273, %v1388
        %v1447 = vadd.f32 %v1276, %v1391
        %v1448 = vadd.f32 %v1278, %v1393
        %v1449 = vadd.f32 %v1281, %v1396
        %v1450 = vadd.f32 %v1283, %v1398
        %v1451 = vadd.f32 %v1286, %v1401
        %v1452 = vadd.f32 %v1288, %v1403
        %v1453 = vadd.f32 %v1291, %v1406
        %v1454 = vadd.f32 %v1293, %v1408
        %v1455 = vadd.f32 %v1296, %v1411
        %v1456 = vadd.f32 %v1298, %v1413
        %v1457 = vadd.f32 %v1301, %v1416
        %v1458 = vadd.f32 %v1303, %v1418
        %v1459 = vadd.f32 %v1306, %v1421
        %v1460 = vadd.f32 %v1308, %v1423
        %v1461 = vld [vmem:[%s4] sm:$0x1]
        %v1463 = vperm.slane %v1461, 0
        %v1465 = vadd.f32 %v1425, %v1463
        %v1466 = vadd.f32 %v1426, %v1463
        %v1467 = vadd.f32 %v1427, %v1463
        %v1468 = vadd.f32 %v1428, %v1463
        %v1469 = vadd.f32 %v1429, %v1463
        %v1470 = vadd.f32 %v1430, %v1463
        %v1471 = vadd.f32 %v1431, %v1463
        %v1472 = vadd.f32 %v1432, %v1463
        %v1473 = vadd.f32 %v1433, %v1463
        %v1474 = vadd.f32 %v1434, %v1463
        %v1475 = vadd.f32 %v1435, %v1463
        %v1476 = vadd.f32 %v1436, %v1463
        %v1477 = vadd.f32 %v1437, %v1463
        %v1478 = vadd.f32 %v1438, %v1463
        %v1479 = vadd.f32 %v1439, %v1463
        %v1480 = vadd.f32 %v1440, %v1463
        %v1481 = vadd.f32 %v1441, %v1463
        %v1482 = vadd.f32 %v1442, %v1463
        %v1483 = vadd.f32 %v1443, %v1463
        %v1484 = vadd.f32 %v1444, %v1463
        %v1485 = vadd.f32 %v1445, %v1463
        %v1486 = vadd.f32 %v1446, %v1463
        %v1487 = vadd.f32 %v1447, %v1463
        %v1488 = vadd.f32 %v1448, %v1463
        %v1489 = vadd.f32 %v1449, %v1463
        %v1490 = vadd.f32 %v1450, %v1463
        %v1491 = vadd.f32 %v1451, %v1463
        %v1492 = vadd.f32 %v1452, %v1463
        %v1493 = vadd.f32 %v1453, %v1463
        %v1494 = vadd.f32 %v1454, %v1463
        %v1495 = vadd.f32 %v1455, %v1463
        %v1496 = vadd.f32 %v1456, %v1463
        %v1497 = vadd.f32 %v1457, %v1463
        %v1498 = vadd.f32 %v1458, %v1463
        %v1499 = vadd.f32 %v1459, %v1463
        %v1500 = vadd.f32 %v1460, %v1463
        %v1501 = vmax.f32 %v1465, 0.0
        %v1502 = vmax.f32 %v1466, 0.0
        %v1503 = vmax.f32 %v1467, 0.0
        %v1504 = vmax.f32 %v1468, 0.0
        %v1505 = vmax.f32 %v1469, 0.0
        %v1506 = vmax.f32 %v1470, 0.0
        %v1507 = vmax.f32 %v1471, 0.0
        %v1508 = vmax.f32 %v1472, 0.0
        %v1509 = vmax.f32 %v1473, 0.0
        %v1510 = vmax.f32 %v1474, 0.0
        %v1511 = vmax.f32 %v1475, 0.0
        %v1512 = vmax.f32 %v1476, 0.0
        %v1513 = vmax.f32 %v1477, 0.0
        %v1514 = vmax.f32 %v1478, 0.0
        %v1515 = vmax.f32 %v1479, 0.0
        %v1516 = vmax.f32 %v1480, 0.0
        %v1517 = vmax.f32 %v1481, 0.0
        %v1518 = vmax.f32 %v1482, 0.0
        %v1519 = vmax.f32 %v1483, 0.0
        %v1520 = vmax.f32 %v1484, 0.0
        %v1521 = vmax.f32 %v1485, 0.0
        %v1522 = vmax.f32 %v1486, 0.0
        %v1523 = vmax.f32 %v1487, 0.0
        %v1524 = vmax.f32 %v1488, 0.0
        %v1525 = vmax.f32 %v1489, 0.0
        %v1526 = vmax.f32 %v1490, 0.0
        %v1527 = vmax.f32 %v1491, 0.0
        %v1528 = vmax.f32 %v1492, 0.0
        %v1529 = vmax.f32 %v1493, 0.0
        %v1530 = vmax.f32 %v1494, 0.0
        %v1531 = vmax.f32 %v1495, 0.0
        %v1532 = vmax.f32 %v1496, 0.0
        %v1533 = vmax.f32 %v1497, 0.0
        %v1534 = vmax.f32 %v1498, 0.0
        %v1535 = vmax.f32 %v1499, 0.0
        %v1536 = vmax.f32 %v1500, 0.0
        %v1537 = vpack.c.bf16 %v1502, %v1501
        %v1538 = vpack.c.bf16 %v1504, %v1503
        %v1539 = vpack.c.bf16 %v1506, %v1505
        %v1540 = vpack.c.bf16 %v1508, %v1507
        %v1541 = vpack.c.bf16 %v1510, %v1509
        %v1542 = vpack.c.bf16 %v1512, %v1511
        %v1543 = vpack.c.bf16 %v1514, %v1513
        %v1544 = vpack.c.bf16 %v1516, %v1515
        %v1545 = vpack.c.bf16 %v1518, %v1517
        %v1546 = vpack.c.bf16 %v1520, %v1519
        %v1547 = vpack.c.bf16 %v1522, %v1521
        %v1548 = vpack.c.bf16 %v1524, %v1523
        %v1549 = vpack.c.bf16 %v1526, %v1525
        %v1550 = vpack.c.bf16 %v1528, %v1527
        %v1551 = vpack.c.bf16 %v1530, %v1529
        %v1552 = vpack.c.bf16 %v1532, %v1531
        %v1553 = vpack.c.bf16 %v1534, %v1533
        %v1554 = vpack.c.bf16 %v1536, %v1535
        %v1555 = vld [vmem:[%s5] sm:$0xf]
        %v1556 = vld [vmem:[%s6] sm:$0x1]
        %v1558 = vperm.slane %v1556, 0
        %v1561 = vsel %vm951, %v1537, 0
        %v1564 = vsel %vm951, %v1538, 0
        %v1567 = vsel %vm951, %v1539, 0
        %v1570 = vsel %vm951, %v1540, 0
        %v1573 = vsel %vm951, %v1541, 0
        %v1576 = vsel %vm951, %v1542, 0
        %v1579 = vsel %vm951, %v1543, 0
        %v1582 = vsel %vm951, %v1544, 0
        %v1585 = vsel %vm951, %v1545, 0
        %v1588 = vsel %vm951, %v1546, 0
        %v1591 = vsel %vm951, %v1547, 0
        %v1594 = vsel %vm951, %v1548, 0
        %v1597 = vsel %vm951, %v1549, 0
        %v1600 = vsel %vm951, %v1550, 0
        %v1603 = vsel %vm951, %v1551, 0
        %v1606 = vsel %vm951, %v1552, 0
        %v1609 = vsel %vm951, %v1553, 0
        %v1612 = vsel %vm951, %v1554, 0
        %v1615 = vsel %vm1094, %v1555, 0
        %1617 = vmatpush.bf16.msra.mxu0 0
        %1618 = vmatpush.bf16.msra.mxu0 0
        %1619 = vmatpush.bf16.msra.mxu0 0
        %1620 = vmatpush.bf16.msra.mxu0 0
        %1621 = vmatpush.bf16.msra.mxu0 0
        %1622 = vmatpush.bf16.msra.mxu0 0
        %1623 = vmatpush.bf16.msra.mxu0 0
        %1624 = vmatpush.bf16.msra.mxu0 %v1615
        %1625 = vmatmul.bf16.gmra.mxu0 %v1561
        %v1626 = vpop.f32.mrf.mxu0
        %v1627 = vadd.f32 %v1558, %v1626
        %v1628 = vpop.f32.mrf.mxu0
        %1629 = vmatmul.bf16.gmra.mxu0 %v1564
        %v1630 = vpop.f32.mrf.mxu0
        %v1631 = vadd.f32 %v1558, %v1630
        %v1632 = vpop.f32.mrf.mxu0
        %1633 = vmatmul.bf16.gmra.mxu0 %v1567
        %v1634 = vpop.f32.mrf.mxu0
        %v1635 = vadd.f32 %v1558, %v1634
        %v1636 = vpop.f32.mrf.mxu0
        %1637 = vmatmul.bf16.gmra.mxu0 %v1570
        %v1638 = vpop.f32.mrf.mxu0
        %v1639 = vadd.f32 %v1558, %v1638
        %v1640 = vpop.f32.mrf.mxu0
        %1641 = vmatmul.bf16.gmra.mxu0 %v1573
        %v1642 = vpop.f32.mrf.mxu0
        %v1643 = vadd.f32 %v1558, %v1642
        %v1644 = vpop.f32.mrf.mxu0
        %1645 = vmatmul.bf16.gmra.mxu0 %v1576
        %v1646 = vpop.f32.mrf.mxu0
        %v1647 = vadd.f32 %v1558, %v1646
        %v1648 = vpop.f32.mrf.mxu0
        %1649 = vmatmul.bf16.gmra.mxu0 %v1579
        %v1650 = vpop.f32.mrf.mxu0
        %v1651 = vadd.f32 %v1558, %v1650
        %v1652 = vpop.f32.mrf.mxu0
        %1653 = vmatmul.bf16.gmra.mxu0 %v1582
        %v1654 = vpop.f32.mrf.mxu0
        %v1655 = vadd.f32 %v1558, %v1654
        %v1656 = vpop.f32.mrf.mxu0
        %1657 = vmatmul.bf16.gmra.mxu0 %v1585
        %v1658 = vpop.f32.mrf.mxu0
        %v1659 = vpop.f32.mrf.mxu0
        %1660 = vmatmul.bf16.gmra.mxu0 %v1588
        %v1661 = vpop.f32.mrf.mxu0
        %v1662 = vpop.f32.mrf.mxu0
        %1663 = vmatmul.bf16.gmra.mxu0 %v1591
        %v1664 = vpop.f32.mrf.mxu0
        %v1665 = vadd.f32 %v1558, %v1664
        %v1666 = vpop.f32.mrf.mxu0
        %1667 = vmatmul.bf16.gmra.mxu0 %v1594
        %v1668 = vpop.f32.mrf.mxu0
        %v1669 = vadd.f32 %v1558, %v1668
        %v1670 = vpop.f32.mrf.mxu0
        %1671 = vmatmul.bf16.gmra.mxu0 %v1597
        %v1672 = vpop.f32.mrf.mxu0
        %v1673 = vadd.f32 %v1558, %v1672
        %v1674 = vpop.f32.mrf.mxu0
        %1675 = vmatmul.bf16.gmra.mxu0 %v1600
        %v1676 = vpop.f32.mrf.mxu0
        %v1677 = vadd.f32 %v1558, %v1676
        %v1678 = vpop.f32.mrf.mxu0
        %1679 = vmatmul.bf16.gmra.mxu0 %v1603
        %v1680 = vpop.f32.mrf.mxu0
        %v1681 = vadd.f32 %v1558, %v1680
        %v1682 = vpop.f32.mrf.mxu0
        %1683 = vmatmul.bf16.gmra.mxu0 %v1606
        %v1684 = vpop.f32.mrf.mxu0
        %v1685 = vadd.f32 %v1558, %v1684
        %v1686 = vpop.f32.mrf.mxu0
        %1687 = vmatmul.bf16.gmra.mxu0 %v1609
        %v1688 = vpop.f32.mrf.mxu0
        %v1689 = vadd.f32 %v1558, %v1688
        %v1690 = vpop.f32.mrf.mxu0
        %1691 = vmatmul.bf16.gmra.mxu0 %v1612
        %v1692 = vpop.f32.mrf.mxu0
        %v1693 = vadd.f32 %v1558, %v1692
        %v1694 = vpop.f32.mrf.mxu0
        %1695 = vdwg.mxu0
        %v1696 = vadd.f32 %v1627, %v303
        %v1697 = vadd.f32 %v1631, %v304
        %v1698 = vadd.f32 %v1635, %v305
        %v1699 = vadd.f32 %v1639, %v306
        %v1700 = vadd.f32 %v1643, %v307
        %v1701 = vadd.f32 %v1647, %v308
        %v1702 = vadd.f32 %v1651, %v309
        %v1703 = vadd.f32 %v1655, %v310
        %v1704 = vmax.f32 %v1696, 0.0
        %v1705 = vmax.f32 %v1697, 0.0
        %v1706 = vmax.f32 %v1698, 0.0
        %v1707 = vmax.f32 %v1699, 0.0
        %v1708 = vmax.f32 %v1700, 0.0
        %v1709 = vmax.f32 %v1701, 0.0
        %v1710 = vmax.f32 %v1702, 0.0
        %v1711 = vmax.f32 %v1703, 0.0
        %1712 = vst.msk [vmem:[%s299] sm:$0xff] %vm387, %v1704
        %1713 = vst.msk [vmem:[%s299 + $0x8] sm:$0xff] %vm387, %v1705
        %1714 = vst.msk [vmem:[%s299 + $0x10] sm:$0xff] %vm387, %v1706
        %1715 = vst.msk [vmem:[%s299 + $0x18] sm:$0xff] %vm387, %v1707
        %1716 = vst.msk [vmem:[%s299 + $0x20] sm:$0xff] %vm387, %v1708
        %1717 = vst.msk [vmem:[%s299 + $0x28] sm:$0xff] %vm387, %v1709
        %1718 = vst.msk [vmem:[%s299 + $0x30] sm:$0xff] %vm387, %v1710
        %1719 = vst.msk [vmem:[%s299 + $0x38] sm:$0xff] %vm387, %v1711
        %v1720 = vadd.f32 %v1665, %v311
        %v1721 = vadd.f32 %v1669, %v312
        %v1722 = vadd.f32 %v1673, %v313
        %v1723 = vadd.f32 %v1677, %v314
        %v1724 = vadd.f32 %v1681, %v315
        %v1725 = vadd.f32 %v1685, %v316
        %v1726 = vadd.f32 %v1689, %v317
        %v1727 = vadd.f32 %v1693, %v318
        %v1728 = vmax.f32 %v1720, 0.0
        %v1729 = vmax.f32 %v1721, 0.0
        %v1730 = vmax.f32 %v1722, 0.0
        %v1731 = vmax.f32 %v1723, 0.0
        %v1732 = vmax.f32 %v1724, 0.0
        %v1733 = vmax.f32 %v1725, 0.0
        %v1734 = vmax.f32 %v1726, 0.0
        %v1735 = vmax.f32 %v1727, 0.0
        %s1736 = scalar_lea.vmem %s299, 64 [#allocation5]
        %1737 = vst.msk [vmem:[%s1736] sm:$0xff] %vm387, %v1728
        %1738 = vst.msk [vmem:[%s1736 + $0x8] sm:$0xff] %vm387, %v1729
        %1739 = vst.msk [vmem:[%s1736 + $0x10] sm:$0xff] %vm387, %v1730
        %1740 = vst.msk [vmem:[%s1736 + $0x18] sm:$0xff] %vm387, %v1731
        %1741 = vst.msk [vmem:[%s1736 + $0x20] sm:$0xff] %vm387, %v1732
        %1742 = vst.msk [vmem:[%s1736 + $0x28] sm:$0xff] %vm387, %v1733
        %1743 = vst.msk [vmem:[%s1736 + $0x30] sm:$0xff] %vm387, %v1734
        %1744 = vst.msk [vmem:[%s1736 + $0x38] sm:$0xff] %vm387, %v1735
        %s1745 = sand.u32 %s184, 1
        %s1746 = scalar_lea.sflag [#allocation4], %s1745
        %s1747 = sand.u32 %s184, 1
        %s1748 = smul.addr %s1747, 128
        %s1749 = scalar_lea.vmem [#allocation5], %s1748
        // Predicated region
        $region53: #{tpu_custom_call.1} parent=47 // pred_check
          %p1750 = pneg %p194
        $region54: #{tpu_custom_call.1} parent=47 // pred_check_branch
          %1752 = sbr.rel (%p1750) target = $region56
        $region55: #{tpu_custom_call.1} parent=47 // pred_region
          %s1753 = smul.u32 2, %s24
          %1755 = vsyncadd %s1746, 0
          %s1756 = smul.addr %s1753, 8
          %s1757 = smul.addr %s1756, 8
          %s1758 = scalar_lea.hbm %s7, %s1757
          %s1759 = sshll.u32 %s1749, 4
          %s1760 = int_to_ptr.vmem [resolvable:$true] %s1759
          %s1761 = sshll.u32 %s1758, 4
          %s1762 = int_to_ptr.hbm [resolvable:$true] %s1761
          %1767 = dma.vmem_to_hbm [thread:$0]  %s1760, 2048, %s1762, %s1746, 128, 128, 8
        $region56: #{tpu_custom_call.1} parent=47 // pred_fallthru
          _
      $region48: #{tpu_custom_call.1} parent=5 // pred_fallthru
        _
      %p1768 = scmp.le.s32.totalorder 2, %s19
      // Predicated region
      $region57: #{tpu_custom_call.1} parent=5 // pred_check
        %p1769 = pneg %p1768
      $region58: #{tpu_custom_call.1} parent=5 // pred_check_branch
        %1771 = sbr.rel (%p1769) target = $region60
      $region59: #{tpu_custom_call.1} parent=5 // pred_region
        %s1772 = ssub.s32 %s19, 2
        // Predicated region
        $region61: #{tpu_custom_call.1} parent=59 // pred_check
          %p1773 = pneg %p200
        $region62: #{tpu_custom_call.1} parent=59 // pred_check_branch
          %1775 = sbr.rel (%p1773) target = $region64
        $region63: #{tpu_custom_call.1} parent=59 // pred_region
          %s1776 = sand.u32 %s185, 1
          %s1777 = scalar_lea.sflag [#allocation4], %s1776
          %s1778 = sand.u32 %s185, 1
          %s1779 = smul.addr %s1778, 128
          %s1780 = scalar_lea.vmem [#allocation5], %s1779
          %1782 = dma.done %s1777, 2048
        $region64: #{tpu_custom_call.1} parent=59 // pred_fallthru
          _
      $region60: #{tpu_custom_call.1} parent=5 // pred_fallthru
        _
    $region6: #{tpu_custom_call.1} parent=1 // loop_footer
      %s23 = sadd.s32 1, %s19
    $region7: #{tpu_custom_call.1} parent=1 // loop_footer_branch
      %18 = sbr.rel target = $region3
    $region8: #{tpu_custom_call.1} parent=1 // loop_exit
      _
    %1783 = vsyncpa [#allocation3], 1
    %s1784 = scalar_lea.sflag [#allocation3], 1
    %1785 = vsyncpa %s1784, 1
    %1786 = vsyncpa [#allocation4], 1
    %s1787 = scalar_lea.sflag [#allocation4], 1
    %1788 = vsyncpa %s1787, 1

</llo_original>
